<compile_context>
chip_gen: v7x
topology: tpu7x:2x2x1
jax: 0.10.0
libtpu: 0.0.40
codegen_flags: <defaults>
</compile_context>

<pallas_src>
import functools
import math

import numpy as np
import jax
import jax.numpy as jnp
from jax.experimental import pallas as pl
from jax.experimental.pallas import tpu as pltpu


_COMPUTE_DTYPE = jnp.bfloat16   # bf16 MXU inputs, f32 accumulation
_OUTPUT_DTYPE = jnp.bfloat16    # bf16 features / logits / upsampled outputs (halves HBM writes)


@functools.lru_cache(maxsize=None)
def _vmem_capacity_bytes():
    try:
        return int(pltpu.get_tpu_info().vmem_capacity_bytes)
    except Exception:
        return 128 * 1024 * 1024


def _vmem_limit_bytes():
    # Per-generation scoped VMEM limit: ~3/4 of physical (48 MiB on v7x's 64 MiB,
    # 96 MiB on v5e/v6e's 128 MiB) — leaves headroom for compiler-internal scratch.
    return int(min(_vmem_capacity_bytes() * 3 // 4, 96 * 1024 * 1024))


def _vmem_block_budget():
    # Fraction of the scoped limit we allow tile blocks (incl. double buffers) to use.
    return int(_vmem_limit_bytes() * 0.8)


def _compiler_params(*semantics):
    return pltpu.CompilerParams(
        dimension_semantics=tuple(semantics),
        vmem_limit_bytes=_vmem_limit_bytes(),
    )


# ----------------------------------------------------------------------------
# Kernel 1: fused 2x2-stride-2 conv (+bias, +ReLU) — the body hot path
# ----------------------------------------------------------------------------
def _conv2x2_kernel(x_ref, w0_ref, w1_ref, b_ref, o_ref, *, apply_relu):
    # x_ref : (tm, 2, w2, 2*Cin)  paired input rows; (kw, ci) folded into lanes
    # w*_ref: (2*Cin, Cout)       weights for kh = 0 / 1
    # o_ref : (tm * w2, Cout)
    # NOTE: the kh slice + reshape is a pure sublane merge when w2 % 8 == 0 (true for
    # realistic image widths); otherwise Mosaic inserts a small relayout copy.
    tm, _, w2, kc = x_ref.shape
    a0 = x_ref[:, 0, :, :].reshape(tm * w2, kc)
    a1 = x_ref[:, 1, :, :].reshape(tm * w2, kc)
    acc = jnp.dot(a0, w0_ref[...], preferred_element_type=jnp.float32)
    acc = acc + jnp.dot(a1, w1_ref[...], preferred_element_type=jnp.float32)
    acc = acc + b_ref[...]
    if apply_relu:
        acc = jnp.maximum(acc, 0.0)
    o_ref[...] = acc.astype(o_ref.dtype)


def _pick_row_tile(rows, w2, kc, cout, in_esize, out_esize, budget, target_m=4096):
    """Row tile for the conv kernel (flattened M = tm*w2), VMEM-budget aware, no-pad preferred."""
    align = 8 // math.gcd(w2, 8)            # smallest tm with (tm * w2) % 8 == 0

    def block_bytes(tm):
        m = tm * w2
        return (2 * tm * 2 * w2 * kc * in_esize     # double-buffered input block
                + 2 * m * cout * out_esize           # double-buffered output block
                + m * cout * 4)                      # live f32 accumulator

    cap = min(rows, max(align, -(-target_m // w2)))
    while cap > align and block_bytes(cap) > budget:
        cap = max(align, cap - align)
    # Prefer an exact (aligned) divisor of `rows` -> no HBM padding copy.
    for tm in range(cap, 0, -1):
        if rows % tm == 0 and (tm % align == 0 or tm == rows):
            return tm, rows
    # Fallback: pad the ragged last tile.
    # TODO(synk): handle the tail in-kernel with pl.when + masked store instead of padding.
    tm = max(align, cap - cap % align)
    return tm, -(-rows // tm) * tm


def conv2x2_stride2(x_nhwc, w, b, *, relu, compute_dtype=_COMPUTE_DTYPE, target_m=4096):
    """PyTorch-equivalent Conv2d(kernel=2, stride=2) on NHWC input, fully in-kernel.

    x_nhwc: (B, H, W, Cin); w: (Cout, Cin, 2, 2) (PyTorch layout); b: (Cout,).
    Returns (B, H//2, W//2, Cout) in `compute_dtype`.
    """
    B, H, W, Cin = x_nhwc.shape
    assert H % 2 == 0 and W % 2 == 0
    Cout = w.shape[0]
    h2, w2 = H // 2, W // 2

    # Zero-copy (layout-preserving) reshapes only: fold (kw, ci) into lanes, split kh out.
    xp = x_nhwc.reshape(B, H, w2, 2 * Cin)
    xp = xp.reshape(B, h2, 2, w2, 2 * Cin).reshape(B * h2, 2, w2, 2 * Cin)
    xp = xp.astype(compute_dtype)

    # (Cout, Cin, 2, 2) -> per-kh (2*Cin, Cout) with (kw, ci) row ordering (matches fold above).
    wk = [
        jnp.transpose(w[:, :, kh, :], (2, 1, 0)).reshape(2 * Cin, Cout).astype(compute_dtype)
        for kh in (0, 1)
    ]
    bias = b.reshape(1, Cout).astype(jnp.float32)

    rows = B * h2
    esize = np.dtype(compute_dtype).itemsize
    tm, rows_p = _pick_row_tile(rows, w2, 2 * Cin, Cout, esize, esize,
                                _vmem_block_budget(), target_m)
    if rows_p != rows:
        xp = jnp.pad(xp, ((0, rows_p - rows), (0, 0), (0, 0), (0, 0)))
    grid = (rows_p // tm,)

    y = pl.pallas_call(
        functools.partial(_conv2x2_kernel, apply_relu=relu),
        out_shape=jax.ShapeDtypeStruct((rows_p * w2, Cout), compute_dtype),
        grid=grid,
        in_specs=[
            pl.BlockSpec((tm, 2, w2, 2 * Cin), lambda i: (i, 0, 0, 0)),
            pl.BlockSpec((2 * Cin, Cout), lambda i: (0, 0)),
            pl.BlockSpec((2 * Cin, Cout), lambda i: (0, 0)),
            pl.BlockSpec((1, Cout), lambda i: (0, 0)),
        ],
        out_specs=pl.BlockSpec((tm * w2, Cout), lambda i: (i, 0)),
        compiler_params=_compiler_params("parallel"),
    )(xp, wk[0], wk[1], bias)
    y = y[: rows * w2]
    return y.reshape(B, h2, w2, Cout)


# ----------------------------------------------------------------------------
# Kernel 2: fused head 1x1 conv + ReLU + cls 1x1 conv (intermediate stays in VMEM)
# ----------------------------------------------------------------------------
def _head_cls_kernel(x_ref, wh_ref, bh_ref, wc_ref, bc_ref, *out_refs, with_features):
    # x_ref: (tp, Cin).  Chain: relu(x @ Wh + bh) then classifier; intermediates stay in VMEM.
    x = x_ref[...]
    h = jnp.dot(x, wh_ref[...], preferred_element_type=jnp.float32) + bh_ref[...]
    h = jnp.maximum(h, 0.0)                                            # (tp, C_head) f32
    if with_features:
        feat_ref, sem_ref = out_refs
        # Single transpose, reused: channels-major features store AND channels-major
        # classifier (Wc @ h^T) -> no second transpose / extra live f32 copy.
        h_t = h.astype(wc_ref.dtype).T                                 # (C_head, tp)
        feat_ref[...] = h_t.astype(feat_ref.dtype)
        s_t = jnp.dot(wc_ref[...], h_t,
                      preferred_element_type=jnp.float32) + bc_ref[...]  # (n_cls, tp)
        sem_ref[...] = s_t.astype(sem_ref.dtype)                       # lane-dense NCHW store
    else:
        (sem_ref,) = out_refs
        s = jnp.dot(h.astype(wc_ref.dtype), wc_ref[...],
                    preferred_element_type=jnp.float32) + bc_ref[...]  # (tp, n_cls)
        sem_ref[...] = s.T.astype(sem_ref.dtype)                       # (n_cls, tp)


def _pick_pixel_tile(P, cin, ch, ncls, in_esize, out_esize, budget, target_p=2048):
    """Pixel tile for the head kernel, VMEM-budget aware; prefers exact divisors (no pad)."""
    def block_bytes(tp):
        return (2 * tp * cin * in_esize                  # double-buffered input block
                + 2 * tp * (ch + ncls) * out_esize       # double-buffered output blocks
                + tp * ch * (4 + in_esize))              # f32 h + compute-dtype h^T

    if P <= target_p and block_bytes(P) <= budget:
        return P, P
    cap = min(P, target_p)
    cap -= cap % 128
    while cap > 128 and block_bytes(cap) > budget:
        cap -= 128
    cap = max(cap, 128)
    for tp in range(cap, 0, -128):                       # 128-aligned exact divisor -> no pad,
        if P % tp == 0:                                  # lane-dense channels-major stores
            return tp, P
    if block_bytes(P) <= budget and P <= 4 * target_p:
        return P, P                                      # full-extent block (no (8,128) rule)
    # TODO(synk): handle the ragged tail in-kernel with a masked store instead of padding.
    return cap, -(-P // cap) * cap


def head_cls_fused(x_bpc, w_head, b_head, w_cls, b_cls, *, with_features,
                   compute_dtype=_COMPUTE_DTYPE, out_dtype=_OUTPUT_DTYPE, target_p=2048):
    """Fused 1x1-conv head (+ReLU) and 1x1-conv classifier.

    x_bpc: (B, P, Cin) channels-last activations.
    Returns channels-major (NCHW-flat) tensors in `out_dtype`:
      (features (B, C_head, P), logits (B, n_cls, P)) if with_features else (logits,).
    """
    B, P, Cin = x_bpc.shape
    Ch = w_head.shape[0]
    ncls = w_cls.shape[0]

    wh = w_head.reshape(Ch, Cin).T.astype(compute_dtype)        # (Cin, C_head)
    bh = b_head.reshape(1, Ch).astype(jnp.float32)
    if with_features:
        wc = w_cls.reshape(ncls, Ch).astype(compute_dtype)      # (n_cls, C_head): Wc @ h^T
        bc = b_cls.reshape(ncls, 1).astype(jnp.float32)
    else:
        wc = w_cls.reshape(ncls, Ch).T.astype(compute_dtype)    # (C_head, n_cls): h @ Wc
        bc = b_cls.reshape(1, ncls).astype(jnp.float32)

    in_esize = np.dtype(compute_dtype).itemsize
    out_esize = np.dtype(out_dtype).itemsize
    tp, Pp = _pick_pixel_tile(P, Cin, Ch, ncls, in_esize, out_esize,
                              _vmem_block_budget(), target_p)
    xp = x_bpc.astype(compute_dtype)
    if Pp != P:
        xp = jnp.pad(xp, ((0, 0), (0, Pp - P), (0, 0)))
    grid = (B, Pp // tp)

    out_shape, out_specs = [], []
    if with_features:
        out_shape.append(jax.ShapeDtypeStruct((B, Ch, Pp), out_dtype))
        out_specs.append(pl.BlockSpec((None, Ch, tp), lambda b, i: (b, 0, i)))
    out_shape.append(jax.ShapeDtypeStruct((B, ncls, Pp), out_dtype))
    out_specs.append(pl.BlockSpec((None, ncls, tp), lambda b, i: (b, 0, i)))

    outs = pl.pallas_call(
        functools.partial(_head_cls_kernel, with_features=with_features),
        out_shape=tuple(out_shape),
        grid=grid,
        in_specs=[
            pl.BlockSpec((None, tp, Cin), lambda b, i: (b, i, 0)),
            pl.BlockSpec((Cin, Ch), lambda b, i: (0, 0)),
            pl.BlockSpec((1, Ch), lambda b, i: (0, 0)),
            pl.BlockSpec(wc.shape, lambda b, i: (0, 0)),
            pl.BlockSpec(bc.shape, lambda b, i: (0, 0)),
        ],
        out_specs=tuple(out_specs),
        compiler_params=_compiler_params("parallel", "parallel"),
    )(xp, wh, bh, wc, bc)
    if not isinstance(outs, (tuple, list)):
        outs = (outs,)
    return tuple(o[:, :, :P] for o in outs)


# ----------------------------------------------------------------------------
# Kernel 3: bilinear resize (align_corners=False), class-tiled separable matmuls, NCHW out
# ----------------------------------------------------------------------------
def _bilinear_kernel(x_ref, wh_ref, wwt_ref, o_ref, *, merged_w_pass):
    # x_ref: (Ct, h, w) logits; wh_ref: (th, h); wwt_ref: (w, W); o_ref: (Ct, th, W)
    wh = wh_ref[...]
    wwt = wwt_ref[...]
    ct, h, w = x_ref.shape
    if merged_w_pass:
        # h % 8 == 0 -> (Ct, h) sublane merge is a pure layout merge: one big W-pass matmul.
        t = jnp.dot(x_ref[...].reshape(ct * h, w), wwt, preferred_element_type=jnp.float32)
        t = t.astype(wh.dtype).reshape(ct, h, -1)
    for c in range(ct):                                   # bounded class-tile loop (Ct <= 16)
        tc = (t[c] if merged_w_pass
              else jnp.dot(x_ref[c], wwt, preferred_element_type=jnp.float32).astype(wh.dtype))
        o_ref[c, :, :] = jnp.dot(wh, tc, preferred_element_type=jnp.float32).astype(o_ref.dtype)


def _bilinear_matrix(out_size, in_size):
    """Row-stochastic (out, in) matrix reproducing torch bilinear align_corners=False."""
    scale = in_size / out_size
    i = np.arange(out_size)
    src = (i + 0.5) * scale - 0.5
    src = np.clip(src, 0.0, None)
    i0 = np.clip(np.floor(src).astype(np.int64), 0, in_size - 1)
    i1 = np.minimum(i0 + 1, in_size - 1)
    lam = (src - i0).astype(np.float32)
    W = np.zeros((out_size, in_size), np.float32)
    W[i, i0] += (1.0 - lam)
    W[i, i1] += lam
    return jnp.asarray(W)


def _pick_bilinear_tiles(B, C, h, w, H, W, in_esize, out_esize, budget, max_ct=16):
    """Class tile Ct and output-row tile th, VMEM-budgeted, preferring >= 8 grid steps (v7x 2 TCs)."""
    if H % 8 == 0:
        th_cands = [d for d in range(min(H, 256), 0, -8) if H % d == 0] or [H]
    else:
        th_cands = [H]                                    # full extent (exempt from (8,128) rule)
    ct_cands = [d for d in range(min(C, max_ct), 0, -1) if C % d == 0]

    def fits(ct, th):
        blk_in = 2 * ct * h * w * in_esize                # double-buffered input block
        blk_out = 2 * ct * th * W * out_esize             # double-buffered output block
        t_tmp = ct * h * W * (4 + in_esize)               # f32 W-pass result + compute-dtype copy
        wcoef = 2 * (th * h + w * W) * in_esize           # interpolation-matrix blocks
        return blk_in + blk_out + t_tmp + wcoef <= budget

    for want_steps in (8, 1):
        for ct in ct_cands:
            for th in th_cands:
                if fits(ct, th) and B * (C // ct) * (H // th) >= want_steps:
                    return ct, th
    return ct_cands[-1], th_cands[-1]


def pallas_bilinear_resize(x_nchw, out_hw, *, compute_dtype=_COMPUTE_DTYPE,
                           out_dtype=_OUTPUT_DTYPE):
    """Bilinear resize (align_corners=False).  x: (B, C, h, w) -> (B, C, H, W), NCHW out."""
    B, C, h, w = x_nchw.shape
    H, W = int(out_hw[0]), int(out_hw[1])
    wh = _bilinear_matrix(H, h).astype(compute_dtype)     # (H, h)
    wwt = _bilinear_matrix(W, w).T.astype(compute_dtype)  # (w, W)
    in_esize = np.dtype(compute_dtype).itemsize
    out_esize = np.dtype(out_dtype).itemsize
    ct, th = _pick_bilinear_tiles(B, C, h, w, H, W, in_esize, out_esize, _vmem_block_budget())
    grid = (B, C // ct, H // th)
    return pl.pallas_call(
        functools.partial(_bilinear_kernel, merged_w_pass=(h % 8 == 0)),
        out_shape=jax.ShapeDtypeStruct((B, C, H, W), out_dtype),
        grid=grid,
        in_specs=[
            pl.BlockSpec((None, ct, h, w), lambda b, c, i: (b, c, 0, 0)),
            pl.BlockSpec((th, h), lambda b, c, i: (i, 0)),
            pl.BlockSpec((w, W), lambda b, c, i: (0, 0)),
        ],
        out_specs=pl.BlockSpec((None, ct, th, W), lambda b, c, i: (b, c, i, 0)),
        compiler_params=_compiler_params("parallel", "parallel", "parallel"),
    )(x_nchw.astype(compute_dtype), wh, wwt)


# ----------------------------------------------------------------------------
# SegmentationModule.forward  (body -> head -> cls -> interpolate)
# ----------------------------------------------------------------------------
def segmentation_module_forward(params, x, body_and_head=False, custom_outsize=None,
                                interpolate=True, compute_dtype=_COMPUTE_DTYPE,
                                output_dtype=_OUTPUT_DTYPE):
    """Mirror of SegmentationModule.forward.

    compute_dtype / output_dtype are configurable (pass jnp.float32 for f32-conv parity);
    defaults are bf16 MXU inputs + f32 accumulation + bf16 outputs (documented trade-off).
    """
    B, _, H, W = x.shape
    out_size = (H, W)

    # NCHW -> NHWC once for the (small) network input; everything downstream is fused.
    x_nhwc = jnp.transpose(x, (0, 2, 3, 1)).astype(compute_dtype)

    # body: two 2x2-stride-2 conv + ReLU stages
    f1 = conv2x2_stride2(x_nhwc, params["body_w1"], params["body_b1"],
                         relu=True, compute_dtype=compute_dtype)          # (B, H/2, W/2, C1)
    f2 = conv2x2_stride2(f1, params["body_w2"], params["body_b2"],
                         relu=True, compute_dtype=compute_dtype)          # (B, H/4, W/4, C2)
    h2, w2 = H // 2, W // 2
    h4, w4 = H // 4, W // 4

    # head + cls fused (main branch): NCHW features and logits come straight out of the kernel
    feat_flat, sem_flat = head_cls_fused(
        f2.reshape(B, h4 * w4, f2.shape[-1]),
        params["head_w"], params["head_b"], params["cls_w"], params["cls_b"],
        with_features=True, compute_dtype=compute_dtype, out_dtype=output_dtype)
    features = feat_flat.reshape(B, feat_flat.shape[1], h4, w4)           # (B, C_head, H/4, W/4)
    sem_output = sem_flat.reshape(B, sem_flat.shape[1], h4, w4)           # (B, n_cls, H/4, W/4)

    # deepsup head + cls fused: its (tp, C_head_ds) intermediate never leaves VMEM
    (sem_ds_flat,) = head_cls_fused(
        f1.reshape(B, h2 * w2, f1.shape[-1]),
        params["head_ds_w"], params["head_ds_b"], params["cls_ds_w"], params["cls_ds_b"],
        with_features=False, compute_dtype=compute_dtype, out_dtype=output_dtype)
    sem_output_deepsup = sem_ds_flat.reshape(B, sem_ds_flat.shape[1], h2, w2)

    if interpolate:
        # Matches PyTorch: sem_output -> custom_outsize (or input size); deepsup -> input size.
        size = tuple(custom_outsize) if custom_outsize is not None else out_size
        sem_output = pallas_bilinear_resize(sem_output, size,
                                            compute_dtype=compute_dtype, out_dtype=output_dtype)
        sem_output_deepsup = pallas_bilinear_resize(sem_output_deepsup, out_size,
                                                    compute_dtype=compute_dtype,
                                                    out_dtype=output_dtype)

    if body_and_head:
        feat_body = jnp.transpose(f2, (0, 3, 1, 2)).astype(output_dtype)
        return sem_output, sem_output_deepsup, features, feat_body
    return sem_output, sem_output_deepsup, features


# ----------------------------------------------------------------------------
# deterministic parameter init + pure-JAX reference (for a tolerance check)
# ----------------------------------------------------------------------------
def _init_conv(key, out_c, in_c, k):
    k1, k2 = jax.random.split(key)
    fan_in = in_c * k * k
    w = jax.random.normal(k1, (out_c, in_c, k, k), jnp.float32) / np.sqrt(fan_in)
    b = 0.01 * jax.random.normal(k2, (out_c,), jnp.float32)
    return w, b


def init_params(key, c_in, c1, c2, c_head, c_head_ds, n_cls):
    keys = jax.random.split(key, 6)
    p = {}
    p["body_w1"], p["body_b1"] = _init_conv(keys[0], c1, c_in, 2)
    p["body_w2"], p["body_b2"] = _init_conv(keys[1], c2, c1, 2)
    p["head_w"], p["head_b"] = _init_conv(keys[2], c_head, c2, 1)
    p["head_ds_w"], p["head_ds_b"] = _init_conv(keys[3], c_head_ds, c1, 1)
    p["cls_w"], p["cls_b"] = _init_conv(keys[4], n_cls, c_head, 1)
    p["cls_ds_w"], p["cls_ds_b"] = _init_conv(keys[5], n_cls, c_head_ds, 1)
    return p


def _reference_forward(params, x):
    """Pure-JAX f32 reference of the same forward pass."""
    def conv(z, w, b, stride):
        dn = jax.lax.conv_dimension_numbers(z.shape, w.shape, ("NCHW", "OIHW", "NCHW"))
        y = jax.lax.conv_general_dilated(z, w, (stride, stride), "VALID",
                                         dimension_numbers=dn)
        return y + b[None, :, None, None]

    f1 = jax.nn.relu(conv(x, params["body_w1"], params["body_b1"], 2))
    f2 = jax.nn.relu(conv(f1, params["body_w2"], params["body_b2"], 2))
    feat = jax.nn.relu(jnp.einsum("bchw,oc->bohw", f2, params["head_w"][:, :, 0, 0])
                       + params["head_b"][None, :, None, None])
    feat_ds = jax.nn.relu(jnp.einsum("bchw,oc->bohw", f1, params["head_ds_w"][:, :, 0, 0])
                          + params["head_ds_b"][None, :, None, None])
    sem = (jnp.einsum("bchw,oc->bohw", feat, params["cls_w"][:, :, 0, 0])
           + params["cls_b"][None, :, None, None])
    sem_ds = (jnp.einsum("bchw,oc->bohw", feat_ds, params["cls_ds_w"][:, :, 0, 0])
              + params["cls_ds_b"][None, :, None, None])
    H, W = x.shape[-2:]

    def up(z):
        _, _, h, w = z.shape
        return jnp.einsum("Hh,bchw,wW->bcHW",
                          _bilinear_matrix(H, h), z, _bilinear_matrix(W, w).T)

    return up(sem), up(sem_ds), feat


if __name__ == "__main__":
    B, C_IN, H, W = 2, 4, 16, 16
    C1, C2 = 16, 32
    C_HEAD, C_HEAD_DS = 32, 16
    N_CLS = 8

    key = jax.random.PRNGKey(0)
    k_x, k_p = jax.random.split(key)
    x = jax.random.normal(k_x, (B, C_IN, H, W), jnp.float32)
    params = init_params(k_p, C_IN, C1, C2, C_HEAD, C_HEAD_DS, N_CLS)

    fwd = jax.jit(lambda p, xx: segmentation_module_forward(p, xx))
    sem, sem_ds, feats = fwd(params, x)
    jax.block_until_ready((sem, sem_ds, feats))

    assert sem.shape == (B, N_CLS, H, W)
    assert sem_ds.shape == (B, N_CLS, H, W)
    assert feats.shape == (B, C_HEAD, H // 4, W // 4)
    assert bool(jnp.all(jnp.isfinite(sem)))
    assert bool(jnp.all(jnp.isfinite(sem_ds)))
    assert bool(jnp.all(jnp.isfinite(feats)))

    # Tolerance check against a pure-JAX f32 reference.  Defaults use bf16 MXU inputs,
    # f32 accumulation and bf16 outputs, hence the loose tolerance; pass
    # compute_dtype=output_dtype=jnp.float32 to segmentation_module_forward for f32 parity.
    sem_r, sem_ds_r, feats_r = _reference_forward(params, x)
    for got, ref in ((sem, sem_r), (sem_ds, sem_ds_r), (feats, feats_r)):
        g = got.astype(jnp.float32)
        assert bool(jnp.allclose(g, ref, atol=0.1, rtol=0.05)), (
            f"max abs err {float(jnp.max(jnp.abs(g - ref)))}")

    print("KERNEL_OK")
</pallas_src>

<mosaic_0001>
module attributes {stable_mosaic.version = 11 : i64} {
  func.func @_conv2x2_kernel(%arg0: i32, %arg1: memref<16x2x8x8xbf16, #tpu.memory_space<vmem>>, %arg2: memref<8x16xbf16, #tpu.memory_space<vmem>>, %arg3: memref<8x16xbf16, #tpu.memory_space<vmem>>, %arg4: memref<1x16xf32, #tpu.memory_space<vmem>>, %arg5: memref<128x16xbf16, #tpu.memory_space<vmem>>) attributes {dimension_semantics = [#tpu.dimension_semantics<parallel>], iteration_bounds = array<i64: 1>, scalar_prefetch = 0 : i64, scratch_operands = 0 : i64, tpu.core_type = #tpu.core_type<tc>, window_params = [{transform_indices = @transform_0, window_bounds = array<i64: 16, 2, 8, 8>}, {pipeline_mode = #tpu.pipeline_mode<synchronous>, transform_indices = @transform_1, window_bounds = array<i64: 8, 16>}, {pipeline_mode = #tpu.pipeline_mode<synchronous>, transform_indices = @transform_2, window_bounds = array<i64: 8, 16>}, {pipeline_mode = #tpu.pipeline_mode<synchronous>, transform_indices = @transform_3, window_bounds = array<i64: 1, 16>}, {transform_indices = @transform_4, window_bounds = array<i64: 128, 16>}]} {
    %c0 = arith.constant 0 : index
    %c0_0 = arith.constant 0 : index
    %c0_1 = arith.constant 0 : index
    %c0_2 = arith.constant 0 : index
    %0 = vector.load %arg1[%c0, %c0_0, %c0_1, %c0_2] : memref<16x2x8x8xbf16, #tpu.memory_space<vmem>>, vector<16x1x8x8xbf16>
    %1 = vector.shape_cast %0 : vector<16x1x8x8xbf16> to vector<16x8x8xbf16>
    %2 = vector.shape_cast %1 : vector<16x8x8xbf16> to vector<128x8xbf16>
    %c0_3 = arith.constant 0 : index
    %c1 = arith.constant 1 : index
    %c0_4 = arith.constant 0 : index
    %c0_5 = arith.constant 0 : index
    %3 = vector.load %arg1[%c0_3, %c1, %c0_4, %c0_5] : memref<16x2x8x8xbf16, #tpu.memory_space<vmem>>, vector<16x1x8x8xbf16>
    %4 = vector.shape_cast %3 : vector<16x1x8x8xbf16> to vector<16x8x8xbf16>
    %5 = vector.shape_cast %4 : vector<16x8x8xbf16> to vector<128x8xbf16>
    %c0_6 = arith.constant 0 : index
    %c0_7 = arith.constant 0 : index
    %6 = vector.load %arg2[%c0_6, %c0_7] : memref<8x16xbf16, #tpu.memory_space<vmem>>, vector<8x16xbf16>
    %cst = arith.constant dense<0.000000e+00> : vector<128x16xf32>
    %7 = tpu.matmul %2, %6, %cst {dimension_numbers = #tpu.dot_dimension_numbers<[1], [0], [0], [1], [0, 0, 1, 1], [], []>} : vector<128x8xbf16>, vector<8x16xbf16>, vector<128x16xf32> -> vector<128x16xf32>
    %c0_8 = arith.constant 0 : index
    %c0_9 = arith.constant 0 : index
    %8 = vector.load %arg3[%c0_8, %c0_9] : memref<8x16xbf16, #tpu.memory_space<vmem>>, vector<8x16xbf16>
    %cst_10 = arith.constant dense<0.000000e+00> : vector<128x16xf32>
    %9 = tpu.matmul %5, %8, %cst_10 {dimension_numbers = #tpu.dot_dimension_numbers<[1], [0], [0], [1], [0, 0, 1, 1], [], []>} : vector<128x8xbf16>, vector<8x16xbf16>, vector<128x16xf32> -> vector<128x16xf32>
    %10 = arith.addf %7, %9 : vector<128x16xf32>
    %c0_11 = arith.constant 0 : index
    %c0_12 = arith.constant 0 : index
    %11 = vector.load %arg4[%c0_11, %c0_12] : memref<1x16xf32, #tpu.memory_space<vmem>>, vector<1x16xf32>
    %12 = vector.broadcast %11 : vector<1x16xf32> to vector<128x16xf32>
    %13 = arith.addf %10, %12 : vector<128x16xf32>
    %cst_13 = arith.constant 0.000000e+00 : f32
    %14 = vector.broadcast %cst_13 : f32 to vector<128x16xf32>
    %15 = arith.maximumf %13, %14 : vector<128x16xf32>
    %16 = arith.truncf %15 : vector<128x16xf32> to vector<128x16xbf16>
    %c0_14 = arith.constant 0 : index
    %c0_15 = arith.constant 0 : index
    %17 = vector.load %arg5[%c0_14, %c0_15] : memref<128x16xbf16, #tpu.memory_space<vmem>>, vector<128x16xbf16>
    tpu.vector_store %arg5[%c0_14, %c0_15], %16 {strides = array<i32>} : memref<128x16xbf16, #tpu.memory_space<vmem>>, vector<128x16xbf16>,
    return
  }
  func.func @transform_0(%arg0: i32) -> (i32, i32, i32, i32) {
    %c0_i32 = arith.constant 0 : i32
    %c0_i32_0 = arith.constant 0 : i32
    %c0_i32_1 = arith.constant 0 : i32
    %c0_i32_2 = arith.constant 0 : i32
    return %arg0, %c0_i32, %c0_i32_0, %c0_i32_1 : i32, i32, i32, i32
  }
  func.func @transform_1(%arg0: i32) -> (i32, i32) {
    %c0_i32 = arith.constant 0 : i32
    %c0_i32_0 = arith.constant 0 : i32
    %c0_i32_1 = arith.constant 0 : i32
    return %c0_i32, %c0_i32_0 : i32, i32
  }
  func.func @transform_2(%arg0: i32) -> (i32, i32) {
    %c0_i32 = arith.constant 0 : i32
    %c0_i32_0 = arith.constant 0 : i32
    %c0_i32_1 = arith.constant 0 : i32
    return %c0_i32, %c0_i32_0 : i32, i32
  }
  func.func @transform_3(%arg0: i32) -> (i32, i32) {
    %c0_i32 = arith.constant 0 : i32
    %c0_i32_0 = arith.constant 0 : i32
    %c0_i32_1 = arith.constant 0 : i32
    return %c0_i32, %c0_i32_0 : i32, i32
  }
  func.func @transform_4(%arg0: i32) -> (i32, i32) {
    %c0_i32 = arith.constant 0 : i32
    %c0_i32_0 = arith.constant 0 : i32
    return %arg0, %c0_i32 : i32, i32
  }
}

module attributes {stable_mosaic.version = 11 : i64} {
  func.func @_conv2x2_kernel(%arg0: i32, %arg1: memref<8x2x4x32xbf16, #tpu.memory_space<vmem>>, %arg2: memref<32x32xbf16, #tpu.memory_space<vmem>>, %arg3: memref<32x32xbf16, #tpu.memory_space<vmem>>, %arg4: memref<1x32xf32, #tpu.memory_space<vmem>>, %arg5: memref<32x32xbf16, #tpu.memory_space<vmem>>) attributes {dimension_semantics = [#tpu.dimension_semantics<parallel>], iteration_bounds = array<i64: 1>, scalar_prefetch = 0 : i64, scratch_operands = 0 : i64, tpu.core_type = #tpu.core_type<tc>, window_params = [{transform_indices = @transform_0, window_bounds = array<i64: 8, 2, 4, 32>}, {pipeline_mode = #tpu.pipeline_mode<synchronous>, transform_indices = @transform_1, window_bounds = array<i64: 32, 32>}, {pipeline_mode = #tpu.pipeline_mode<synchronous>, transform_indices = @transform_2, window_bounds = array<i64: 32, 32>}, {pipeline_mode = #tpu.pipeline_mode<synchronous>, transform_indices = @transform_3, window_bounds = array<i64: 1, 32>}, {transform_indices = @transform_4, window_bounds = array<i64: 32, 32>}]} {
    %c0 = arith.constant 0 : index
    %c0_0 = arith.constant 0 : index
    %c0_1 = arith.constant 0 : index
    %c0_2 = arith.constant 0 : index
    %0 = vector.load %arg1[%c0, %c0_0, %c0_1, %c0_2] : memref<8x2x4x32xbf16, #tpu.memory_space<vmem>>, vector<8x1x4x32xbf16>
    %1 = vector.shape_cast %0 : vector<8x1x4x32xbf16> to vector<8x4x32xbf16>
    %2 = vector.shape_cast %1 : vector<8x4x32xbf16> to vector<32x32xbf16>
    %c0_3 = arith.constant 0 : index
    %c1 = arith.constant 1 : index
    %c0_4 = arith.constant 0 : index
    %c0_5 = arith.constant 0 : index
    %3 = vector.load %arg1[%c0_3, %c1, %c0_4, %c0_5] : memref<8x2x4x32xbf16, #tpu.memory_space<vmem>>, vector<8x1x4x32xbf16>
    %4 = vector.shape_cast %3 : vector<8x1x4x32xbf16> to vector<8x4x32xbf16>
    %5 = vector.shape_cast %4 : vector<8x4x32xbf16> to vector<32x32xbf16>
    %c0_6 = arith.constant 0 : index
    %c0_7 = arith.constant 0 : index
    %6 = vector.load %arg2[%c0_6, %c0_7] : memref<32x32xbf16, #tpu.memory_space<vmem>>, vector<32x32xbf16>
    %cst = arith.constant dense<0.000000e+00> : vector<32x32xf32>
    %7 = tpu.matmul %2, %6, %cst {dimension_numbers = #tpu.dot_dimension_numbers<[1], [0], [0], [1], [0, 0, 1, 1], [], []>} : vector<32x32xbf16>, vector<32x32xbf16>, vector<32x32xf32> -> vector<32x32xf32>
    %c0_8 = arith.constant 0 : index
    %c0_9 = arith.constant 0 : index
    %8 = vector.load %arg3[%c0_8, %c0_9] : memref<32x32xbf16, #tpu.memory_space<vmem>>, vector<32x32xbf16>
    %cst_10 = arith.constant dense<0.000000e+00> : vector<32x32xf32>
    %9 = tpu.matmul %5, %8, %cst_10 {dimension_numbers = #tpu.dot_dimension_numbers<[1], [0], [0], [1], [0, 0, 1, 1], [], []>} : vector<32x32xbf16>, vector<32x32xbf16>, vector<32x32xf32> -> vector<32x32xf32>
    %10 = arith.addf %7, %9 : vector<32x32xf32>
    %c0_11 = arith.constant 0 : index
    %c0_12 = arith.constant 0 : index
    %11 = vector.load %arg4[%c0_11, %c0_12] : memref<1x32xf32, #tpu.memory_space<vmem>>, vector<1x32xf32>
    %12 = vector.broadcast %11 : vector<1x32xf32> to vector<32x32xf32>
    %13 = arith.addf %10, %12 : vector<32x32xf32>
    %cst_13 = arith.constant 0.000000e+00 : f32
    %14 = vector.broadcast %cst_13 : f32 to vector<32x32xf32>
    %15 = arith.maximumf %13, %14 : vector<32x32xf32>
    %16 = arith.truncf %15 : vector<32x32xf32> to vector<32x32xbf16>
    %c0_14 = arith.constant 0 : index
    %c0_15 = arith.constant 0 : index
    %17 = vector.load %arg5[%c0_14, %c0_15] : memref<32x32xbf16, #tpu.memory_space<vmem>>, vector<32x32xbf16>
    tpu.vector_store %arg5[%c0_14, %c0_15], %16 {strides = array<i32>} : memref<32x32xbf16, #tpu.memory_space<vmem>>, vector<32x32xbf16>,
    return
  }
  func.func @transform_0(%arg0: i32) -> (i32, i32, i32, i32) {
    %c0_i32 = arith.constant 0 : i32
    %c0_i32_0 = arith.constant 0 : i32
    %c0_i32_1 = arith.constant 0 : i32
    %c0_i32_2 = arith.constant 0 : i32
    return %arg0, %c0_i32, %c0_i32_0, %c0_i32_1 : i32, i32, i32, i32
  }
  func.func @transform_1(%arg0: i32) -> (i32, i32) {
    %c0_i32 = arith.constant 0 : i32
    %c0_i32_0 = arith.constant 0 : i32
    %c0_i32_1 = arith.constant 0 : i32
    return %c0_i32, %c0_i32_0 : i32, i32
  }
  func.func @transform_2(%arg0: i32) -> (i32, i32) {
    %c0_i32 = arith.constant 0 : i32
    %c0_i32_0 = arith.constant 0 : i32
    %c0_i32_1 = arith.constant 0 : i32
    return %c0_i32, %c0_i32_0 : i32, i32
  }
  func.func @transform_3(%arg0: i32) -> (i32, i32) {
    %c0_i32 = arith.constant 0 : i32
    %c0_i32_0 = arith.constant 0 : i32
    %c0_i32_1 = arith.constant 0 : i32
    return %c0_i32, %c0_i32_0 : i32, i32
  }
  func.func @transform_4(%arg0: i32) -> (i32, i32) {
    %c0_i32 = arith.constant 0 : i32
    %c0_i32_0 = arith.constant 0 : i32
    return %arg0, %c0_i32 : i32, i32
  }
}

module attributes {stable_mosaic.version = 11 : i64} {
  func.func @_head_cls_kernel(%arg0: i32, %arg1: i32, %arg2: memref<1x16x32xbf16, #tpu.memory_space<vmem>>, %arg3: memref<32x32xbf16, #tpu.memory_space<vmem>>, %arg4: memref<1x32xf32, #tpu.memory_space<vmem>>, %arg5: memref<8x32xbf16, #tpu.memory_space<vmem>>, %arg6: memref<8x1xf32, #tpu.memory_space<vmem>>, %arg7: memref<1x32x16xbf16, #tpu.memory_space<vmem>>, %arg8: memref<1x8x16xbf16, #tpu.memory_space<vmem>>) attributes {dimension_semantics = [#tpu.dimension_semantics<parallel>, #tpu.dimension_semantics<parallel>], iteration_bounds = array<i64: 2, 1>, scalar_prefetch = 0 : i64, scratch_operands = 0 : i64, tpu.core_type = #tpu.core_type<tc>, window_params = [{transform_indices = @transform_0, window_bounds = array<i64: 1, 16, 32>}, {pipeline_mode = #tpu.pipeline_mode<synchronous>, transform_indices = @transform_1, window_bounds = array<i64: 32, 32>}, {pipeline_mode = #tpu.pipeline_mode<synchronous>, transform_indices = @transform_2, window_bounds = array<i64: 1, 32>}, {pipeline_mode = #tpu.pipeline_mode<synchronous>, transform_indices = @transform_3, window_bounds = array<i64: 8, 32>}, {pipeline_mode = #tpu.pipeline_mode<synchronous>, transform_indices = @transform_4, window_bounds = array<i64: 8, 1>}, {transform_indices = @transform_5, window_bounds = array<i64: 1, 32, 16>}, {transform_indices = @transform_6, window_bounds = array<i64: 1, 8, 16>}]} {
    %c0 = arith.constant 0 : index
    %c0_0 = arith.constant 0 : index
    %c0_1 = arith.constant 0 : index
    %0 = vector.load %arg2[%c0, %c0_0, %c0_1] : memref<1x16x32xbf16, #tpu.memory_space<vmem>>, vector<1x16x32xbf16>
    %1 = vector.shape_cast %0 : vector<1x16x32xbf16> to vector<16x32xbf16>
    %c0_2 = arith.constant 0 : index
    %c0_3 = arith.constant 0 : index
    %2 = vector.load %arg3[%c0_2, %c0_3] : memref<32x32xbf16, #tpu.memory_space<vmem>>, vector<32x32xbf16>
    %cst = arith.constant dense<0.000000e+00> : vector<16x32xf32>
    %3 = tpu.matmul %1, %2, %cst {dimension_numbers = #tpu.dot_dimension_numbers<[1], [0], [0], [1], [0, 0, 1, 1], [], []>} : vector<16x32xbf16>, vector<32x32xbf16>, vector<16x32xf32> -> vector<16x32xf32>
    %c0_4 = arith.constant 0 : index
    %c0_5 = arith.constant 0 : index
    %4 = vector.load %arg4[%c0_4, %c0_5] : memref<1x32xf32, #tpu.memory_space<vmem>>, vector<1x32xf32>
    %5 = vector.broadcast %4 : vector<1x32xf32> to vector<16x32xf32>
    %6 = arith.addf %3, %5 : vector<16x32xf32>
    %cst_6 = arith.constant 0.000000e+00 : f32
    %7 = vector.broadcast %cst_6 : f32 to vector<16x32xf32>
    %8 = arith.maximumf %6, %7 : vector<16x32xf32>
    %9 = arith.truncf %8 : vector<16x32xf32> to vector<16x32xbf16>
    %10 = tpu.transpose %9, [1, 0] : vector<16x32xbf16> -> vector<32x16xbf16>
    %c0_7 = arith.constant 0 : index
    %c0_8 = arith.constant 0 : index
    %c0_9 = arith.constant 0 : index
    %11 = vector.load %arg7[%c0_7, %c0_8, %c0_9] : memref<1x32x16xbf16, #tpu.memory_space<vmem>>, vector<1x32x16xbf16>
    %12 = vector.shape_cast %11 : vector<1x32x16xbf16> to vector<32x16xbf16>
    %13 = vector.shape_cast %10 : vector<32x16xbf16> to vector<1x32x16xbf16>
    tpu.vector_store %arg7[%c0_7, %c0_8, %c0_9], %13 {strides = array<i32>} : memref<1x32x16xbf16, #tpu.memory_space<vmem>>, vector<1x32x16xbf16>,
    %c0_10 = arith.constant 0 : index
    %c0_11 = arith.constant 0 : index
    %14 = vector.load %arg5[%c0_10, %c0_11] : memref<8x32xbf16, #tpu.memory_space<vmem>>, vector<8x32xbf16>
    %cst_12 = arith.constant dense<0.000000e+00> : vector<8x16xf32>
    %15 = tpu.matmul %14, %10, %cst_12 {dimension_numbers = #tpu.dot_dimension_numbers<[1], [0], [0], [1], [0, 0, 1, 1], [], []>} : vector<8x32xbf16>, vector<32x16xbf16>, vector<8x16xf32> -> vector<8x16xf32>
    %c0_13 = arith.constant 0 : index
    %c0_14 = arith.constant 0 : index
    %16 = vector.load %arg6[%c0_13, %c0_14] : memref<8x1xf32, #tpu.memory_space<vmem>>, vector<8x1xf32>
    %17 = vector.broadcast %16 : vector<8x1xf32> to vector<8x16xf32>
    %18 = arith.addf %15, %17 : vector<8x16xf32>
    %19 = arith.truncf %18 : vector<8x16xf32> to vector<8x16xbf16>
    %c0_15 = arith.constant 0 : index
    %c0_16 = arith.constant 0 : index
    %c0_17 = arith.constant 0 : index
    %20 = vector.load %arg8[%c0_15, %c0_16, %c0_17] : memref<1x8x16xbf16, #tpu.memory_space<vmem>>, vector<1x8x16xbf16>
    %21 = vector.shape_cast %20 : vector<1x8x16xbf16> to vector<8x16xbf16>
    %22 = vector.shape_cast %19 : vector<8x16xbf16> to vector<1x8x16xbf16>
    tpu.vector_store %arg8[%c0_15, %c0_16, %c0_17], %22 {strides = array<i32>} : memref<1x8x16xbf16, #tpu.memory_space<vmem>>, vector<1x8x16xbf16>,
    return
  }
  func.func @transform_0(%arg0: i32, %arg1: i32) -> (i32, i32, i32) {
    %c0_i32 = arith.constant 0 : i32
    %c0_i32_0 = arith.constant 0 : i32
    return %arg0, %arg1, %c0_i32 : i32, i32, i32
  }
  func.func @transform_1(%arg0: i32, %arg1: i32) -> (i32, i32) {
    %c0_i32 = arith.constant 0 : i32
    %c0_i32_0 = arith.constant 0 : i32
    %c0_i32_1 = arith.constant 0 : i32
    return %c0_i32, %c0_i32_0 : i32, i32
  }
  func.func @transform_2(%arg0: i32, %arg1: i32) -> (i32, i32) {
    %c0_i32 = arith.constant 0 : i32
    %c0_i32_0 = arith.constant 0 : i32
    %c0_i32_1 = arith.constant 0 : i32
    return %c0_i32, %c0_i32_0 : i32, i32
  }
  func.func @transform_3(%arg0: i32, %arg1: i32) -> (i32, i32) {
    %c0_i32 = arith.constant 0 : i32
    %c0_i32_0 = arith.constant 0 : i32
    %c0_i32_1 = arith.constant 0 : i32
    return %c0_i32, %c0_i32_0 : i32, i32
  }
  func.func @transform_4(%arg0: i32, %arg1: i32) -> (i32, i32) {
    %c0_i32 = arith.constant 0 : i32
    %c0_i32_0 = arith.constant 0 : i32
    %c0_i32_1 = arith.constant 0 : i32
    return %c0_i32, %c0_i32_0 : i32, i32
  }
  func.func @transform_5(%arg0: i32, %arg1: i32) -> (i32, i32, i32) {
    %c0_i32 = arith.constant 0 : i32
    %c0_i32_0 = arith.constant 0 : i32
    return %arg0, %c0_i32, %arg1 : i32, i32, i32
  }
  func.func @transform_6(%arg0: i32, %arg1: i32) -> (i32, i32, i32) {
    %c0_i32 = arith.constant 0 : i32
    %c0_i32_0 = arith.constant 0 : i32
    return %arg0, %c0_i32, %arg1 : i32, i32, i32
  }
}

module attributes {stable_mosaic.version = 11 : i64} {
  func.func @_bilinear_kernel(%arg0: i32, %arg1: i32, %arg2: i32, %arg3: memref<1x4x4x4xbf16, #tpu.memory_space<vmem>>, %arg4: memref<8x4xbf16, #tpu.memory_space<vmem>>, %arg5: memref<4x16xbf16, #tpu.memory_space<vmem>>, %arg6: memref<1x4x8x16xbf16, #tpu.memory_space<vmem>>) attributes {dimension_semantics = [#tpu.dimension_semantics<parallel>, #tpu.dimension_semantics<parallel>, #tpu.dimension_semantics<parallel>], iteration_bounds = array<i64: 2, 2, 2>, scalar_prefetch = 0 : i64, scratch_operands = 0 : i64, tpu.core_type = #tpu.core_type<tc>, window_params = [{transform_indices = @transform_0, window_bounds = array<i64: 1, 4, 4, 4>}, {transform_indices = @transform_1, window_bounds = array<i64: 8, 4>}, {pipeline_mode = #tpu.pipeline_mode<synchronous>, transform_indices = @transform_2, window_bounds = array<i64: 4, 16>}, {transform_indices = @transform_3, window_bounds = array<i64: 1, 4, 8, 16>}]} {
    %c0 = arith.constant 0 : index
    %c0_0 = arith.constant 0 : index
    %0 = vector.load %arg4[%c0, %c0_0] : memref<8x4xbf16, #tpu.memory_space<vmem>>, vector<8x4xbf16>
    %c0_1 = arith.constant 0 : index
    %c0_2 = arith.constant 0 : index
    %1 = vector.load %arg5[%c0_1, %c0_2] : memref<4x16xbf16, #tpu.memory_space<vmem>>, vector<4x16xbf16>
    %c0_3 = arith.constant 0 : index
    %c0_4 = arith.constant 0 : index
    %c0_5 = arith.constant 0 : index
    %c0_6 = arith.constant 0 : index
    %2 = vector.load %arg3[%c0_3, %c0_4, %c0_5, %c0_6] : memref<1x4x4x4xbf16, #tpu.memory_space<vmem>>, vector<1x1x4x4xbf16>
    %3 = vector.shape_cast %2 : vector<1x1x4x4xbf16> to vector<4x4xbf16>
    %cst = arith.constant dense<0.000000e+00> : vector<4x16xf32>
    %4 = tpu.matmul %3, %1, %cst {dimension_numbers = #tpu.dot_dimension_numbers<[1], [0], [0], [1], [0, 0, 1, 1], [], []>} : vector<4x4xbf16>, vector<4x16xbf16>, vector<4x16xf32> -> vector<4x16xf32>
    %5 = arith.truncf %4 : vector<4x16xf32> to vector<4x16xbf16>
    %cst_7 = arith.constant dense<0.000000e+00> : vector<8x16xf32>
    %6 = tpu.matmul %0, %5, %cst_7 {dimension_numbers = #tpu.dot_dimension_numbers<[1], [0], [0], [1], [0, 0, 1, 1], [], []>} : vector<8x4xbf16>, vector<4x16xbf16>, vector<8x16xf32> -> vector<8x16xf32>
    %7 = arith.truncf %6 : vector<8x16xf32> to vector<8x16xbf16>
    %c0_8 = arith.constant 0 : index
    %c0_9 = arith.constant 0 : index
    %c0_10 = arith.constant 0 : index
    %c0_11 = arith.constant 0 : index
    %8 = vector.load %arg6[%c0_8, %c0_9, %c0_10, %c0_11] : memref<1x4x8x16xbf16, #tpu.memory_space<vmem>>, vector<1x1x8x16xbf16>
    %9 = vector.shape_cast %8 : vector<1x1x8x16xbf16> to vector<8x16xbf16>
    %10 = vector.shape_cast %7 : vector<8x16xbf16> to vector<1x1x8x16xbf16>
    tpu.vector_store %arg6[%c0_8, %c0_9, %c0_10, %c0_11], %10 {strides = array<i32>} : memref<1x4x8x16xbf16, #tpu.memory_space<vmem>>, vector<1x1x8x16xbf16>,
    %c0_12 = arith.constant 0 : index
    %c1 = arith.constant 1 : index
    %c0_13 = arith.constant 0 : index
    %c0_14 = arith.constant 0 : index
    %11 = vector.load %arg3[%c0_12, %c1, %c0_13, %c0_14] : memref<1x4x4x4xbf16, #tpu.memory_space<vmem>>, vector<1x1x4x4xbf16>
    %12 = vector.shape_cast %11 : vector<1x1x4x4xbf16> to vector<4x4xbf16>
    %cst_15 = arith.constant dense<0.000000e+00> : vector<4x16xf32>
    %13 = tpu.matmul %12, %1, %cst_15 {dimension_numbers = #tpu.dot_dimension_numbers<[1], [0], [0], [1], [0, 0, 1, 1], [], []>} : vector<4x4xbf16>, vector<4x16xbf16>, vector<4x16xf32> -> vector<4x16xf32>
    %14 = arith.truncf %13 : vector<4x16xf32> to vector<4x16xbf16>
    %cst_16 = arith.constant dense<0.000000e+00> : vector<8x16xf32>
    %15 = tpu.matmul %0, %14, %cst_16 {dimension_numbers = #tpu.dot_dimension_numbers<[1], [0], [0], [1], [0, 0, 1, 1], [], []>} : vector<8x4xbf16>, vector<4x16xbf16>, vector<8x16xf32> -> vector<8x16xf32>
    %16 = arith.truncf %15 : vector<8x16xf32> to vector<8x16xbf16>
    %c0_17 = arith.constant 0 : index
    %c1_18 = arith.constant 1 : index
    %c0_19 = arith.constant 0 : index
    %c0_20 = arith.constant 0 : index
    %17 = vector.load %arg6[%c0_17, %c1_18, %c0_19, %c0_20] : memref<1x4x8x16xbf16, #tpu.memory_space<vmem>>, vector<1x1x8x16xbf16>
    %18 = vector.shape_cast %17 : vector<1x1x8x16xbf16> to vector<8x16xbf16>
    %19 = vector.shape_cast %16 : vector<8x16xbf16> to vector<1x1x8x16xbf16>
    tpu.vector_store %arg6[%c0_17, %c1_18, %c0_19, %c0_20], %19 {strides = array<i32>} : memref<1x4x8x16xbf16, #tpu.memory_space<vmem>>, vector<1x1x8x16xbf16>,
    %c0_21 = arith.constant 0 : index
    %c2 = arith.constant 2 : index
    %c0_22 = arith.constant 0 : index
    %c0_23 = arith.constant 0 : index
    %20 = vector.load %arg3[%c0_21, %c2, %c0_22, %c0_23] : memref<1x4x4x4xbf16, #tpu.memory_space<vmem>>, vector<1x1x4x4xbf16>
    %21 = vector.shape_cast %20 : vector<1x1x4x4xbf16> to vector<4x4xbf16>
    %cst_24 = arith.constant dense<0.000000e+00> : vector<4x16xf32>
    %22 = tpu.matmul %21, %1, %cst_24 {dimension_numbers = #tpu.dot_dimension_numbers<[1], [0], [0], [1], [0, 0, 1, 1], [], []>} : vector<4x4xbf16>, vector<4x16xbf16>, vector<4x16xf32> -> vector<4x16xf32>
    %23 = arith.truncf %22 : vector<4x16xf32> to vector<4x16xbf16>
    %cst_25 = arith.constant dense<0.000000e+00> : vector<8x16xf32>
    %24 = tpu.matmul %0, %23, %cst_25 {dimension_numbers = #tpu.dot_dimension_numbers<[1], [0], [0], [1], [0, 0, 1, 1], [], []>} : vector<8x4xbf16>, vector<4x16xbf16>, vector<8x16xf32> -> vector<8x16xf32>
    %25 = arith.truncf %24 : vector<8x16xf32> to vector<8x16xbf16>
    %c0_26 = arith.constant 0 : index
    %c2_27 = arith.constant 2 : index
    %c0_28 = arith.constant 0 : index
    %c0_29 = arith.constant 0 : index
    %26 = vector.load %arg6[%c0_26, %c2_27, %c0_28, %c0_29] : memref<1x4x8x16xbf16, #tpu.memory_space<vmem>>, vector<1x1x8x16xbf16>
    %27 = vector.shape_cast %26 : vector<1x1x8x16xbf16> to vector<8x16xbf16>
    %28 = vector.shape_cast %25 : vector<8x16xbf16> to vector<1x1x8x16xbf16>
    tpu.vector_store %arg6[%c0_26, %c2_27, %c0_28, %c0_29], %28 {strides = array<i32>} : memref<1x4x8x16xbf16, #tpu.memory_space<vmem>>, vector<1x1x8x16xbf16>,
    %c0_30 = arith.constant 0 : index
    %c3 = arith.constant 3 : index
    %c0_31 = arith.constant 0 : index
    %c0_32 = arith.constant 0 : index
    %29 = vector.load %arg3[%c0_30, %c3, %c0_31, %c0_32] : memref<1x4x4x4xbf16, #tpu.memory_space<vmem>>, vector<1x1x4x4xbf16>
    %30 = vector.shape_cast %29 : vector<1x1x4x4xbf16> to vector<4x4xbf16>
    %cst_33 = arith.constant dense<0.000000e+00> : vector<4x16xf32>
    %31 = tpu.matmul %30, %1, %cst_33 {dimension_numbers = #tpu.dot_dimension_numbers<[1], [0], [0], [1], [0, 0, 1, 1], [], []>} : vector<4x4xbf16>, vector<4x16xbf16>, vector<4x16xf32> -> vector<4x16xf32>
    %32 = arith.truncf %31 : vector<4x16xf32> to vector<4x16xbf16>
    %cst_34 = arith.constant dense<0.000000e+00> : vector<8x16xf32>
    %33 = tpu.matmul %0, %32, %cst_34 {dimension_numbers = #tpu.dot_dimension_numbers<[1], [0], [0], [1], [0, 0, 1, 1], [], []>} : vector<8x4xbf16>, vector<4x16xbf16>, vector<8x16xf32> -> vector<8x16xf32>
    %34 = arith.truncf %33 : vector<8x16xf32> to vector<8x16xbf16>
    %c0_35 = arith.constant 0 : index
    %c3_36 = arith.constant 3 : index
    %c0_37 = arith.constant 0 : index
    %c0_38 = arith.constant 0 : index
    %35 = vector.load %arg6[%c0_35, %c3_36, %c0_37, %c0_38] : memref<1x4x8x16xbf16, #tpu.memory_space<vmem>>, vector<1x1x8x16xbf16>
    %36 = vector.shape_cast %35 : vector<1x1x8x16xbf16> to vector<8x16xbf16>
    %37 = vector.shape_cast %34 : vector<8x16xbf16> to vector<1x1x8x16xbf16>
    tpu.vector_store %arg6[%c0_35, %c3_36, %c0_37, %c0_38], %37 {strides = array<i32>} : memref<1x4x8x16xbf16, #tpu.memory_space<vmem>>, vector<1x1x8x16xbf16>,
    return
  }
  func.func @transform_0(%arg0: i32, %arg1: i32, %arg2: i32) -> (i32, i32, i32, i32) {
    %c0_i32 = arith.constant 0 : i32
    %c0_i32_0 = arith.constant 0 : i32
    %c0_i32_1 = arith.constant 0 : i32
    return %arg0, %arg1, %c0_i32, %c0_i32_0 : i32, i32, i32, i32
  }
  func.func @transform_1(%arg0: i32, %arg1: i32, %arg2: i32) -> (i32, i32) {
    %c0_i32 = arith.constant 0 : i32
    %c0_i32_0 = arith.constant 0 : i32
    return %arg2, %c0_i32 : i32, i32
  }
  func.func @transform_2(%arg0: i32, %arg1: i32, %arg2: i32) -> (i32, i32) {
    %c0_i32 = arith.constant 0 : i32
    %c0_i32_0 = arith.constant 0 : i32
    %c0_i32_1 = arith.constant 0 : i32
    return %c0_i32, %c0_i32_0 : i32, i32
  }
  func.func @transform_3(%arg0: i32, %arg1: i32, %arg2: i32) -> (i32, i32, i32, i32) {
    %c0_i32 = arith.constant 0 : i32
    %c0_i32_0 = arith.constant 0 : i32
    return %arg0, %arg1, %arg2, %c0_i32 : i32, i32, i32, i32
  }
}

module attributes {stable_mosaic.version = 11 : i64} {
  func.func @_head_cls_kernel(%arg0: i32, %arg1: i32, %arg2: memref<1x64x16xbf16, #tpu.memory_space<vmem>>, %arg3: memref<16x16xbf16, #tpu.memory_space<vmem>>, %arg4: memref<1x16xf32, #tpu.memory_space<vmem>>, %arg5: memref<16x8xbf16, #tpu.memory_space<vmem>>, %arg6: memref<1x8xf32, #tpu.memory_space<vmem>>, %arg7: memref<1x8x64xbf16, #tpu.memory_space<vmem>>) attributes {dimension_semantics = [#tpu.dimension_semantics<parallel>, #tpu.dimension_semantics<parallel>], iteration_bounds = array<i64: 2, 1>, scalar_prefetch = 0 : i64, scratch_operands = 0 : i64, tpu.core_type = #tpu.core_type<tc>, window_params = [{transform_indices = @transform_0, window_bounds = array<i64: 1, 64, 16>}, {pipeline_mode = #tpu.pipeline_mode<synchronous>, transform_indices = @transform_1, window_bounds = array<i64: 16, 16>}, {pipeline_mode = #tpu.pipeline_mode<synchronous>, transform_indices = @transform_2, window_bounds = array<i64: 1, 16>}, {pipeline_mode = #tpu.pipeline_mode<synchronous>, transform_indices = @transform_3, window_bounds = array<i64: 16, 8>}, {pipeline_mode = #tpu.pipeline_mode<synchronous>, transform_indices = @transform_4, window_bounds = array<i64: 1, 8>}, {transform_indices = @transform_5, window_bounds = array<i64: 1, 8, 64>}]} {
    %c0 = arith.constant 0 : index
    %c0_0 = arith.constant 0 : index
    %c0_1 = arith.constant 0 : index
    %0 = vector.load %arg2[%c0, %c0_0, %c0_1] : memref<1x64x16xbf16, #tpu.memory_space<vmem>>, vector<1x64x16xbf16>
    %1 = vector.shape_cast %0 : vector<1x64x16xbf16> to vector<64x16xbf16>
    %c0_2 = arith.constant 0 : index
    %c0_3 = arith.constant 0 : index
    %2 = vector.load %arg3[%c0_2, %c0_3] : memref<16x16xbf16, #tpu.memory_space<vmem>>, vector<16x16xbf16>
    %cst = arith.constant dense<0.000000e+00> : vector<64x16xf32>
    %3 = tpu.matmul %1, %2, %cst {dimension_numbers = #tpu.dot_dimension_numbers<[1], [0], [0], [1], [0, 0, 1, 1], [], []>} : vector<64x16xbf16>, vector<16x16xbf16>, vector<64x16xf32> -> vector<64x16xf32>
    %c0_4 = arith.constant 0 : index
    %c0_5 = arith.constant 0 : index
    %4 = vector.load %arg4[%c0_4, %c0_5] : memref<1x16xf32, #tpu.memory_space<vmem>>, vector<1x16xf32>
    %5 = vector.broadcast %4 : vector<1x16xf32> to vector<64x16xf32>
    %6 = arith.addf %3, %5 : vector<64x16xf32>
    %cst_6 = arith.constant 0.000000e+00 : f32
    %7 = vector.broadcast %cst_6 : f32 to vector<64x16xf32>
    %8 = arith.maximumf %6, %7 : vector<64x16xf32>
    %9 = arith.truncf %8 : vector<64x16xf32> to vector<64x16xbf16>
    %c0_7 = arith.constant 0 : index
    %c0_8 = arith.constant 0 : index
    %10 = vector.load %arg5[%c0_7, %c0_8] : memref<16x8xbf16, #tpu.memory_space<vmem>>, vector<16x8xbf16>
    %cst_9 = arith.constant dense<0.000000e+00> : vector<64x8xf32>
    %11 = tpu.matmul %9, %10, %cst_9 {dimension_numbers = #tpu.dot_dimension_numbers<[1], [0], [0], [1], [0, 0, 1, 1], [], []>} : vector<64x16xbf16>, vector<16x8xbf16>, vector<64x8xf32> -> vector<64x8xf32>
    %c0_10 = arith.constant 0 : index
    %c0_11 = arith.constant 0 : index
    %12 = vector.load %arg6[%c0_10, %c0_11] : memref<1x8xf32, #tpu.memory_space<vmem>>, vector<1x8xf32>
    %13 = vector.broadcast %12 : vector<1x8xf32> to vector<64x8xf32>
    %14 = arith.addf %11, %13 : vector<64x8xf32>
    %15 = tpu.transpose %14, [1, 0] : vector<64x8xf32> -> vector<8x64xf32>
    %16 = arith.truncf %15 : vector<8x64xf32> to vector<8x64xbf16>
    %c0_12 = arith.constant 0 : index
    %c0_13 = arith.constant 0 : index
    %c0_14 = arith.constant 0 : index
    %17 = vector.load %arg7[%c0_12, %c0_13, %c0_14] : memref<1x8x64xbf16, #tpu.memory_space<vmem>>, vector<1x8x64xbf16>
    %18 = vector.shape_cast %17 : vector<1x8x64xbf16> to vector<8x64xbf16>
    %19 = vector.shape_cast %16 : vector<8x64xbf16> to vector<1x8x64xbf16>
    tpu.vector_store %arg7[%c0_12, %c0_13, %c0_14], %19 {strides = array<i32>} : memref<1x8x64xbf16, #tpu.memory_space<vmem>>, vector<1x8x64xbf16>,
    return
  }
  func.func @transform_0(%arg0: i32, %arg1: i32) -> (i32, i32, i32) {
    %c0_i32 = arith.constant 0 : i32
    %c0_i32_0 = arith.constant 0 : i32
    return %arg0, %arg1, %c0_i32 : i32, i32, i32
  }
  func.func @transform_1(%arg0: i32, %arg1: i32) -> (i32, i32) {
    %c0_i32 = arith.constant 0 : i32
    %c0_i32_0 = arith.constant 0 : i32
    %c0_i32_1 = arith.constant 0 : i32
    return %c0_i32, %c0_i32_0 : i32, i32
  }
  func.func @transform_2(%arg0: i32, %arg1: i32) -> (i32, i32) {
    %c0_i32 = arith.constant 0 : i32
    %c0_i32_0 = arith.constant 0 : i32
    %c0_i32_1 = arith.constant 0 : i32
    return %c0_i32, %c0_i32_0 : i32, i32
  }
  func.func @transform_3(%arg0: i32, %arg1: i32) -> (i32, i32) {
    %c0_i32 = arith.constant 0 : i32
    %c0_i32_0 = arith.constant 0 : i32
    %c0_i32_1 = arith.constant 0 : i32
    return %c0_i32, %c0_i32_0 : i32, i32
  }
  func.func @transform_4(%arg0: i32, %arg1: i32) -> (i32, i32) {
    %c0_i32 = arith.constant 0 : i32
    %c0_i32_0 = arith.constant 0 : i32
    %c0_i32_1 = arith.constant 0 : i32
    return %c0_i32, %c0_i32_0 : i32, i32
  }
  func.func @transform_5(%arg0: i32, %arg1: i32) -> (i32, i32, i32) {
    %c0_i32 = arith.constant 0 : i32
    %c0_i32_0 = arith.constant 0 : i32
    return %arg0, %c0_i32, %arg1 : i32, i32, i32
  }
}

module attributes {stable_mosaic.version = 11 : i64} {
  func.func @_bilinear_kernel(%arg0: i32, %arg1: i32, %arg2: i32, %arg3: memref<1x4x8x8xbf16, #tpu.memory_space<vmem>>, %arg4: memref<8x8xbf16, #tpu.memory_space<vmem>>, %arg5: memref<8x16xbf16, #tpu.memory_space<vmem>>, %arg6: memref<1x4x8x16xbf16, #tpu.memory_space<vmem>>) attributes {dimension_semantics = [#tpu.dimension_semantics<parallel>, #tpu.dimension_semantics<parallel>, #tpu.dimension_semantics<parallel>], iteration_bounds = array<i64: 2, 2, 2>, scalar_prefetch = 0 : i64, scratch_operands = 0 : i64, tpu.core_type = #tpu.core_type<tc>, window_params = [{transform_indices = @transform_0, window_bounds = array<i64: 1, 4, 8, 8>}, {transform_indices = @transform_1, window_bounds = array<i64: 8, 8>}, {pipeline_mode = #tpu.pipeline_mode<synchronous>, transform_indices = @transform_2, window_bounds = array<i64: 8, 16>}, {transform_indices = @transform_3, window_bounds = array<i64: 1, 4, 8, 16>}]} {
    %c0 = arith.constant 0 : index
    %c0_0 = arith.constant 0 : index
    %0 = vector.load %arg4[%c0, %c0_0] : memref<8x8xbf16, #tpu.memory_space<vmem>>, vector<8x8xbf16>
    %c0_1 = arith.constant 0 : index
    %c0_2 = arith.constant 0 : index
    %1 = vector.load %arg5[%c0_1, %c0_2] : memref<8x16xbf16, #tpu.memory_space<vmem>>, vector<8x16xbf16>
    %c0_3 = arith.constant 0 : index
    %c0_4 = arith.constant 0 : index
    %c0_5 = arith.constant 0 : index
    %c0_6 = arith.constant 0 : index
    %2 = vector.load %arg3[%c0_3, %c0_4, %c0_5, %c0_6] : memref<1x4x8x8xbf16, #tpu.memory_space<vmem>>, vector<1x4x8x8xbf16>
    %3 = vector.shape_cast %2 : vector<1x4x8x8xbf16> to vector<4x8x8xbf16>
    %4 = vector.shape_cast %3 : vector<4x8x8xbf16> to vector<32x8xbf16>
    %cst = arith.constant dense<0.000000e+00> : vector<32x16xf32>
    %5 = tpu.matmul %4, %1, %cst {dimension_numbers = #tpu.dot_dimension_numbers<[1], [0], [0], [1], [0, 0, 1, 1], [], []>} : vector<32x8xbf16>, vector<8x16xbf16>, vector<32x16xf32> -> vector<32x16xf32>
    %6 = arith.truncf %5 : vector<32x16xf32> to vector<32x16xbf16>
    %7 = vector.shape_cast %6 : vector<32x16xbf16> to vector<4x8x16xbf16>
    %8 = vector.extract_strided_slice %7 {offsets = [0, 0, 0], sizes = [1, 8, 16], strides = [1, 1, 1]} : vector<4x8x16xbf16> to vector<1x8x16xbf16>
    %9 = vector.shape_cast %8 : vector<1x8x16xbf16> to vector<8x16xbf16>
    %cst_7 = arith.constant dense<0.000000e+00> : vector<8x16xf32>
    %10 = tpu.matmul %0, %9, %cst_7 {dimension_numbers = #tpu.dot_dimension_numbers<[1], [0], [0], [1], [0, 0, 1, 1], [], []>} : vector<8x8xbf16>, vector<8x16xbf16>, vector<8x16xf32> -> vector<8x16xf32>
    %11 = arith.truncf %10 : vector<8x16xf32> to vector<8x16xbf16>
    %c0_8 = arith.constant 0 : index
    %c0_9 = arith.constant 0 : index
    %c0_10 = arith.constant 0 : index
    %c0_11 = arith.constant 0 : index
    %12 = vector.load %arg6[%c0_8, %c0_9, %c0_10, %c0_11] : memref<1x4x8x16xbf16, #tpu.memory_space<vmem>>, vector<1x1x8x16xbf16>
    %13 = vector.shape_cast %12 : vector<1x1x8x16xbf16> to vector<8x16xbf16>
    %14 = vector.shape_cast %11 : vector<8x16xbf16> to vector<1x1x8x16xbf16>
    tpu.vector_store %arg6[%c0_8, %c0_9, %c0_10, %c0_11], %14 {strides = array<i32>} : memref<1x4x8x16xbf16, #tpu.memory_space<vmem>>, vector<1x1x8x16xbf16>,
    %15 = vector.extract_strided_slice %7 {offsets = [1, 0, 0], sizes = [1, 8, 16], strides = [1, 1, 1]} : vector<4x8x16xbf16> to vector<1x8x16xbf16>
    %16 = vector.shape_cast %15 : vector<1x8x16xbf16> to vector<8x16xbf16>
    %cst_12 = arith.constant dense<0.000000e+00> : vector<8x16xf32>
    %17 = tpu.matmul %0, %16, %cst_12 {dimension_numbers = #tpu.dot_dimension_numbers<[1], [0], [0], [1], [0, 0, 1, 1], [], []>} : vector<8x8xbf16>, vector<8x16xbf16>, vector<8x16xf32> -> vector<8x16xf32>
    %18 = arith.truncf %17 : vector<8x16xf32> to vector<8x16xbf16>
    %c0_13 = arith.constant 0 : index
    %c1 = arith.constant 1 : index
    %c0_14 = arith.constant 0 : index
    %c0_15 = arith.constant 0 : index
    %19 = vector.load %arg6[%c0_13, %c1, %c0_14, %c0_15] : memref<1x4x8x16xbf16, #tpu.memory_space<vmem>>, vector<1x1x8x16xbf16>
    %20 = vector.shape_cast %19 : vector<1x1x8x16xbf16> to vector<8x16xbf16>
    %21 = vector.shape_cast %18 : vector<8x16xbf16> to vector<1x1x8x16xbf16>
    tpu.vector_store %arg6[%c0_13, %c1, %c0_14, %c0_15], %21 {strides = array<i32>} : memref<1x4x8x16xbf16, #tpu.memory_space<vmem>>, vector<1x1x8x16xbf16>,
    %22 = vector.extract_strided_slice %7 {offsets = [2, 0, 0], sizes = [1, 8, 16], strides = [1, 1, 1]} : vector<4x8x16xbf16> to vector<1x8x16xbf16>
    %23 = vector.shape_cast %22 : vector<1x8x16xbf16> to vector<8x16xbf16>
    %cst_16 = arith.constant dense<0.000000e+00> : vector<8x16xf32>
    %24 = tpu.matmul %0, %23, %cst_16 {dimension_numbers = #tpu.dot_dimension_numbers<[1], [0], [0], [1], [0, 0, 1, 1], [], []>} : vector<8x8xbf16>, vector<8x16xbf16>, vector<8x16xf32> -> vector<8x16xf32>
    %25 = arith.truncf %24 : vector<8x16xf32> to vector<8x16xbf16>
    %c0_17 = arith.constant 0 : index
    %c2 = arith.constant 2 : index
    %c0_18 = arith.constant 0 : index
    %c0_19 = arith.constant 0 : index
    %26 = vector.load %arg6[%c0_17, %c2, %c0_18, %c0_19] : memref<1x4x8x16xbf16, #tpu.memory_space<vmem>>, vector<1x1x8x16xbf16>
    %27 = vector.shape_cast %26 : vector<1x1x8x16xbf16> to vector<8x16xbf16>
    %28 = vector.shape_cast %25 : vector<8x16xbf16> to vector<1x1x8x16xbf16>
    tpu.vector_store %arg6[%c0_17, %c2, %c0_18, %c0_19], %28 {strides = array<i32>} : memref<1x4x8x16xbf16, #tpu.memory_space<vmem>>, vector<1x1x8x16xbf16>,
    %29 = vector.extract_strided_slice %7 {offsets = [3, 0, 0], sizes = [1, 8, 16], strides = [1, 1, 1]} : vector<4x8x16xbf16> to vector<1x8x16xbf16>
    %30 = vector.shape_cast %29 : vector<1x8x16xbf16> to vector<8x16xbf16>
    %cst_20 = arith.constant dense<0.000000e+00> : vector<8x16xf32>
    %31 = tpu.matmul %0, %30, %cst_20 {dimension_numbers = #tpu.dot_dimension_numbers<[1], [0], [0], [1], [0, 0, 1, 1], [], []>} : vector<8x8xbf16>, vector<8x16xbf16>, vector<8x16xf32> -> vector<8x16xf32>
    %32 = arith.truncf %31 : vector<8x16xf32> to vector<8x16xbf16>
    %c0_21 = arith.constant 0 : index
    %c3 = arith.constant 3 : index
    %c0_22 = arith.constant 0 : index
    %c0_23 = arith.constant 0 : index
    %33 = vector.load %arg6[%c0_21, %c3, %c0_22, %c0_23] : memref<1x4x8x16xbf16, #tpu.memory_space<vmem>>, vector<1x1x8x16xbf16>
    %34 = vector.shape_cast %33 : vector<1x1x8x16xbf16> to vector<8x16xbf16>
    %35 = vector.shape_cast %32 : vector<8x16xbf16> to vector<1x1x8x16xbf16>
    tpu.vector_store %arg6[%c0_21, %c3, %c0_22, %c0_23], %35 {strides = array<i32>} : memref<1x4x8x16xbf16, #tpu.memory_space<vmem>>, vector<1x1x8x16xbf16>,
    return
  }
  func.func @transform_0(%arg0: i32, %arg1: i32, %arg2: i32) -> (i32, i32, i32, i32) {
    %c0_i32 = arith.constant 0 : i32
    %c0_i32_0 = arith.constant 0 : i32
    %c0_i32_1 = arith.constant 0 : i32
    return %arg0, %arg1, %c0_i32, %c0_i32_0 : i32, i32, i32, i32
  }
  func.func @transform_1(%arg0: i32, %arg1: i32, %arg2: i32) -> (i32, i32) {
    %c0_i32 = arith.constant 0 : i32
    %c0_i32_0 = arith.constant 0 : i32
    return %arg2, %c0_i32 : i32, i32
  }
  func.func @transform_2(%arg0: i32, %arg1: i32, %arg2: i32) -> (i32, i32) {
    %c0_i32 = arith.constant 0 : i32
    %c0_i32_0 = arith.constant 0 : i32
    %c0_i32_1 = arith.constant 0 : i32
    return %c0_i32, %c0_i32_0 : i32, i32
  }
  func.func @transform_3(%arg0: i32, %arg1: i32, %arg2: i32) -> (i32, i32, i32, i32) {
    %c0_i32 = arith.constant 0 : i32
    %c0_i32_0 = arith.constant 0 : i32
    return %arg0, %arg1, %arg2, %c0_i32 : i32, i32, i32, i32
  }
}

</mosaic_0001>

<llo_original>
// kernel: _lambda_.8
$region0: #{_lambda_.8}
  #allocation0 [shape = 'u32[]', space=smem, size = 0x4, offset = 0x4, fixed_abs, tag = 'smem constant byte address 0x4 - core index']
  #allocation1 [shape = 'u32[144,128]{1,0:T(1,128)}', space=vmem, size = 0x12000, scoped, tag = 'internal scratch']
  %s0 = inlined_call_operand.hbm [shape: bf16[2,16,32], index: 0, kind: input, shape index: {}]
  %s1 = inlined_call_operand.hbm [shape: bf16[32,32], index: 1, kind: input, shape index: {}]
  %s2 = inlined_call_operand.hbm [shape: f32[1,32], index: 2, kind: input, shape index: {}]
  %s3 = inlined_call_operand.hbm [shape: bf16[8,32], index: 3, kind: input, shape index: {}]
  %s4 = inlined_call_operand.hbm [shape: f32[8,1], index: 4, kind: input, shape index: {}]
  %s5 = inlined_call_operand.hbm [shape: bf16[2,32,16], index: 5, kind: output, shape index: {0}]
  %s6 = inlined_call_operand.hbm [shape: bf16[2,8,16], index: 6, kind: output, shape index: {1}]
  %7 = xla_tuple %s5, %s6
  %s8 = sld [smem:[#allocation0]]
  $region81: #{_lambda_.8} parent=0
    _
  %s10 = ssub.s32 1, %s8
  %s11 = scalar_select 0, %s10, %s8
  $region1: #{_lambda_.8} parent=0
    #allocation2 [shape = 'u8[8192]{0}', space=vmem, size = 0x2000, scoped, tag = 'input window, operand 0']
    #allocation3 [shape = 's32[2]{0}', space=sflag, size = 0x8, scoped, tag = 'scoped memory for _lambda_.8']
    #allocation4 [shape = 's32[2]{0}', space=sflag, size = 0x8, scoped, tag = 'scoped memory for _lambda_.8']
    #allocation5 [shape = 'u8[8192]{0}', space=vmem, size = 0x2000, scoped, tag = 'input window, operand 1, single buffered']
    #allocation6 [shape = 's32[1]{0}', space=sflag, size = 0x4, scoped, tag = 'scoped memory for _lambda_.8']
    #allocation7 [shape = 'u8[512]{0}', space=vmem, size = 0x400, scoped, tag = 'input window, operand 2, single buffered']
    #allocation8 [shape = 'u8[2048]{0}', space=vmem, size = 0x800, scoped, tag = 'input window, operand 3, single buffered']
    #allocation9 [shape = 's32[1]{0}', space=sflag, size = 0x4, scoped, tag = 'scoped memory for _lambda_.8']
    #allocation10 [shape = 'u8[4096]{0}', space=vmem, size = 0x1000, scoped, tag = 'input window, operand 4, single buffered']
    #allocation11 [shape = 'u8[16384]{0}', space=vmem, size = 0x4000, scoped, tag = 'output window, operand 0']
    #allocation12 [shape = 'u8[4096]{0}', space=vmem, size = 0x1000, scoped, tag = 'output window, operand 1']
    #allocation13 [shape = 's32[2]{0}', space=sflag, size = 0x8, scoped, tag = 'scoped memory for _lambda_.8']
    %12 = vsyncpa [#allocation3], 0
    %s13 = scalar_lea.sflag [#allocation3], 1
    %14 = vsyncpa %s13, 0
    %15 = vsyncpa [#allocation6], 0
    %16 = vsyncpa [#allocation9], 0
    %17 = vsyncpa [#allocation4], 0
    %s18 = scalar_lea.sflag [#allocation4], 1
    %19 = vsyncpa %s18, 0
    %20 = vsyncpa [#allocation13], 0
    %s21 = scalar_lea.sflag [#allocation13], 1
    %22 = vsyncpa %s21, 0
    loop: start=0, step=1, limit=4
    $region2: #{_lambda_.8} parent=1 // loop_pre_header
      _
    $region3: #{_lambda_.8} parent=1 // loop_header
      %s24 = sphi 0, %s28
      %p25 = scmp.ge.s32.totalorder %s24, 4
      %s31 = sphi 0, %s43
      %s32 = sphi 0, %s39
      %s33 = sphi 0, %s31
      %s34 = sphi 0, %s32
      %s35 = sphi 0, %s33
      %s36 = sphi 0, %s34
      %s48 = sphi 0, %s50
      %s51 = sphi 0, %s48
      %s52 = sphi 0, %s51
      %s68 = sphi 0, %s52
      %s72 = sphi 0, %s72
      %s74 = sphi 0, %s72
      %s75 = sphi 0, %s74
      %s89 = sphi 0, %s75
      %s93 = sphi 0, %s93
      %s95 = sphi 0, %s93
      %s96 = sphi 0, %s95
      %s110 = sphi 0, %s96
      %s114 = sphi 0, %s114
      %s116 = sphi 0, %s114
      %s117 = sphi 0, %s116
      %s131 = sphi 0, %s117
      %s135 = sphi 0, %s135
      %s137 = sphi 0, %s135
      %s138 = sphi 0, %s137
      %s152 = sphi 0, %s138
      %s160 = sphi 0, %s162
      %s163 = sphi 0, %s160
      %s164 = sphi 0, %s163
      %s180 = sphi 0, %s164
      %s188 = sphi 0, %s190
      %s191 = sphi 0, %s188
      %s192 = sphi 0, %s191
      %s208 = sphi 0, %s192
    $region4: #{_lambda_.8} parent=1 // loop_header_branch
      %27 = sbr.rel (%p25) target = $region8
    $region5: #{_lambda_.8} parent=1 // loop_body
      %s29 = ssub.s32 %s24, 1
      %s30 = ssub.s32 %s24, 2
      %s37 = sadd.s32 1, %s32
      %p38 = scmp.ge.s32.totalorder %s37, 1
      %s39 = scalar_select %p38, 0, %s37
      %s40 = sadd.s32 1, %s31
      %s41 = scalar_select %p38, %s40, %s31
      %p42 = scmp.ge.s32.totalorder %s41, 2
      %s43 = scalar_select %p42, 0, %s41
      %s44 = ssub.s32 %s31, %s43
      %s45 = ssub.s32 %s32, %s39
      %s46 = sor.u32 %s44, %s45
      %p47 = scmp.eq.s32.totalorder %s46, 0
      %s49 = sadd.s32 %s48, 1
      %s50 = scalar_select %p47, %s48, %s49
      %p53 = pneg %p47
      %p54 = scmp.eq.s32.totalorder %s24, 1
      %p55 = por %p53, %p54
      %p56 = scmp.ne.s32.totalorder %s48, %s51
      %p57 = scmp.eq.s32.totalorder %s24, 0
      %p58 = por %p56, %p57
      %p59 = scmp.ne.s32.totalorder %s48, %s51
      %p60 = scmp.eq.s32.totalorder %s29, 1
      %p61 = por %p59, %p60
      %p62 = scmp.ne.s32.totalorder %s51, %s52
      %p63 = scmp.eq.s32.totalorder %s29, 0
      %p64 = por %p62, %p63
      %p65 = scmp.ne.s32.totalorder %s51, %s52
      %p66 = scmp.eq.s32.totalorder %s30, 1
      %p67 = por %p65, %p66
      %p69 = scmp.ne.s32.totalorder %s52, %s68
      %p70 = scmp.eq.s32.totalorder %s30, 0
      %p71 = por %p69, %p70
      %s73 = sadd.s32 %s72, 1
      %p76 = scmp.eq.s32.totalorder %s24, 1
      %p77 = scmp.ne.s32.totalorder %s72, %s74
      %p78 = scmp.eq.s32.totalorder %s24, 0
      %p79 = por %p77, %p78
      %p80 = scmp.ne.s32.totalorder %s72, %s74
      %p81 = scmp.eq.s32.totalorder %s29, 1
      %p82 = por %p80, %p81
      %p83 = scmp.ne.s32.totalorder %s74, %s75
      %p84 = scmp.eq.s32.totalorder %s29, 0
      %p85 = por %p83, %p84
      %p86 = scmp.ne.s32.totalorder %s74, %s75
      %p87 = scmp.eq.s32.totalorder %s30, 1
      %p88 = por %p86, %p87
      %p90 = scmp.ne.s32.totalorder %s75, %s89
      %p91 = scmp.eq.s32.totalorder %s30, 0
      %p92 = por %p90, %p91
      %s94 = sadd.s32 %s93, 1
      %p97 = scmp.eq.s32.totalorder %s24, 1
      %p98 = scmp.ne.s32.totalorder %s93, %s95
      %p99 = scmp.eq.s32.totalorder %s24, 0
      %p100 = por %p98, %p99
      %p101 = scmp.ne.s32.totalorder %s93, %s95
      %p102 = scmp.eq.s32.totalorder %s29, 1
      %p103 = por %p101, %p102
      %p104 = scmp.ne.s32.totalorder %s95, %s96
      %p105 = scmp.eq.s32.totalorder %s29, 0
      %p106 = por %p104, %p105
      %p107 = scmp.ne.s32.totalorder %s95, %s96
      %p108 = scmp.eq.s32.totalorder %s30, 1
      %p109 = por %p107, %p108
      %p111 = scmp.ne.s32.totalorder %s96, %s110
      %p112 = scmp.eq.s32.totalorder %s30, 0
      %p113 = por %p111, %p112
      %s115 = sadd.s32 %s114, 1
      %p118 = scmp.eq.s32.totalorder %s24, 1
      %p119 = scmp.ne.s32.totalorder %s114, %s116
      %p120 = scmp.eq.s32.totalorder %s24, 0
      %p121 = por %p119, %p120
      %p122 = scmp.ne.s32.totalorder %s114, %s116
      %p123 = scmp.eq.s32.totalorder %s29, 1
      %p124 = por %p122, %p123
      %p125 = scmp.ne.s32.totalorder %s116, %s117
      %p126 = scmp.eq.s32.totalorder %s29, 0
      %p127 = por %p125, %p126
      %p128 = scmp.ne.s32.totalorder %s116, %s117
      %p129 = scmp.eq.s32.totalorder %s30, 1
      %p130 = por %p128, %p129
      %p132 = scmp.ne.s32.totalorder %s117, %s131
      %p133 = scmp.eq.s32.totalorder %s30, 0
      %p134 = por %p132, %p133
      %s136 = sadd.s32 %s135, 1
      %p139 = scmp.eq.s32.totalorder %s24, 1
      %p140 = scmp.ne.s32.totalorder %s135, %s137
      %p141 = scmp.eq.s32.totalorder %s24, 0
      %p142 = por %p140, %p141
      %p143 = scmp.ne.s32.totalorder %s135, %s137
      %p144 = scmp.eq.s32.totalorder %s29, 1
      %p145 = por %p143, %p144
      %p146 = scmp.ne.s32.totalorder %s137, %s138
      %p147 = scmp.eq.s32.totalorder %s29, 0
      %p148 = por %p146, %p147
      %p149 = scmp.ne.s32.totalorder %s137, %s138
      %p150 = scmp.eq.s32.totalorder %s30, 1
      %p151 = por %p149, %p150
      %p153 = scmp.ne.s32.totalorder %s138, %s152
      %p154 = scmp.eq.s32.totalorder %s30, 0
      %p155 = por %p153, %p154
      %s156 = ssub.s32 %s31, %s43
      %s157 = ssub.s32 %s32, %s39
      %s158 = sor.u32 %s156, %s157
      %p159 = scmp.eq.s32.totalorder %s158, 0
      %s161 = sadd.s32 %s160, 1
      %s162 = scalar_select %p159, %s160, %s161
      %p165 = pneg %p159
      %p166 = scmp.eq.s32.totalorder %s24, 1
      %p167 = por %p165, %p166
      %p168 = scmp.ne.s32.totalorder %s160, %s163
      %p169 = scmp.eq.s32.totalorder %s24, 0
      %p170 = por %p168, %p169
      %p171 = scmp.ne.s32.totalorder %s160, %s163
      %p172 = scmp.eq.s32.totalorder %s29, 1
      %p173 = por %p171, %p172
      %p174 = scmp.ne.s32.totalorder %s163, %s164
      %p175 = scmp.eq.s32.totalorder %s29, 0
      %p176 = por %p174, %p175
      %p177 = scmp.ne.s32.totalorder %s163, %s164
      %p178 = scmp.eq.s32.totalorder %s30, 1
      %p179 = por %p177, %p178
      %p181 = scmp.ne.s32.totalorder %s164, %s180
      %p182 = scmp.eq.s32.totalorder %s30, 0
      %p183 = por %p181, %p182
      %s184 = ssub.s32 %s31, %s43
      %s185 = ssub.s32 %s32, %s39
      %s186 = sor.u32 %s184, %s185
      %p187 = scmp.eq.s32.totalorder %s186, 0
      %s189 = sadd.s32 %s188, 1
      %s190 = scalar_select %p187, %s188, %s189
      %p193 = pneg %p187
      %p194 = scmp.eq.s32.totalorder %s24, 1
      %p195 = por %p193, %p194
      %p196 = scmp.ne.s32.totalorder %s188, %s191
      %p197 = scmp.eq.s32.totalorder %s24, 0
      %p198 = por %p196, %p197
      %p199 = scmp.ne.s32.totalorder %s188, %s191
      %p200 = scmp.eq.s32.totalorder %s29, 1
      %p201 = por %p199, %p200
      %p202 = scmp.ne.s32.totalorder %s191, %s192
      %p203 = scmp.eq.s32.totalorder %s29, 0
      %p204 = por %p202, %p203
      %p205 = scmp.ne.s32.totalorder %s191, %s192
      %p206 = scmp.eq.s32.totalorder %s30, 1
      %p207 = por %p205, %p206
      %p209 = scmp.ne.s32.totalorder %s192, %s208
      %p210 = scmp.eq.s32.totalorder %s30, 0
      %p211 = por %p209, %p210
      %p212 = scmp.le.s32.totalorder 1, %s24
      %p213 = scmp.lt.s32.totalorder %s24, 3
      %p214 = pnand %p212, %p213
      %p215 = pneg %p214
      // Predicated region
      $region9: #{_lambda_.8} parent=5 // pred_check
        _
      $region10: #{_lambda_.8} parent=5 // pred_check_branch
        %217 = sbr.rel (%p214) target = $region12
      $region11: #{_lambda_.8} parent=5 // pred_region
        %s218 = ssub.s32 %s24, 1
        // Predicated region
        $region13: #{_lambda_.8} parent=11 // pred_check
          %p219 = pneg %p85
        $region14: #{_lambda_.8} parent=11 // pred_check_branch
          %221 = sbr.rel (%p219) target = $region16
        $region15: #{_lambda_.8} parent=11 // pred_region
          %s223 = ssub.s32 256, 256
          %224 = vsyncadd [#allocation6], %s223
          %s225 = sshll.u32 [#allocation5], 4
          %s226 = int_to_ptr.vmem [resolvable:$true] %s225
          %231 = dma.hbm_to_vmem [thread:$0]  %s1, 256, %s226, [#allocation6], 64, 64, 4
        $region16: #{_lambda_.8} parent=11 // pred_fallthru
          _
        // Predicated region
        $region17: #{_lambda_.8} parent=11 // pred_check
          %p232 = pneg %p106
        $region18: #{_lambda_.8} parent=11 // pred_check_branch
          %234 = sbr.rel (%p232) target = $region20
        $region19: #{_lambda_.8} parent=11 // pred_region
          %s236 = ssub.s32 16, 16
          %237 = vsyncadd [#allocation6], %s236
          %s239 = sshll.u32 [#allocation7], 4
          %s240 = int_to_ptr.vmem [resolvable:$true] %s239
          %242 = dma.hbm_to_vmem [thread:$0]  %s2, 16, %s240, [#allocation6]
        $region20: #{_lambda_.8} parent=11 // pred_fallthru
          _
        // Predicated region
        $region21: #{_lambda_.8} parent=11 // pred_check
          %p243 = pneg %p127
        $region22: #{_lambda_.8} parent=11 // pred_check_branch
          %245 = sbr.rel (%p243) target = $region24
        $region23: #{_lambda_.8} parent=11 // pred_region
          %s247 = ssub.s32 64, 64
          %248 = vsyncadd [#allocation9], %s247
          %s250 = sshll.u32 [#allocation8], 4
          %s251 = int_to_ptr.vmem [resolvable:$true] %s250
          %253 = dma.hbm_to_vmem [thread:$0]  %s3, 64, %s251, [#allocation9]
        $region24: #{_lambda_.8} parent=11 // pred_fallthru
          _
        // Predicated region
        $region25: #{_lambda_.8} parent=11 // pred_check
          %p254 = pneg %p148
        $region26: #{_lambda_.8} parent=11 // pred_check_branch
          %256 = sbr.rel (%p254) target = $region28
        $region27: #{_lambda_.8} parent=11 // pred_region
          %s258 = ssub.s32 128, 128
          %259 = vsyncadd [#allocation9], %s258
          %s261 = sshll.u32 [#allocation10], 4
          %s262 = int_to_ptr.vmem [resolvable:$true] %s261
          %264 = dma.hbm_to_vmem [thread:$0]  %s4, 128, %s262, [#allocation9]
        $region28: #{_lambda_.8} parent=11 // pred_fallthru
          _
      $region12: #{_lambda_.8} parent=5 // pred_fallthru
        _
      %p265 = scmp.lt.s32.totalorder %s24, 2
      // Predicated region
      $region29: #{_lambda_.8} parent=5 // pred_check
        %p266 = pneg %p265
      $region30: #{_lambda_.8} parent=5 // pred_check_branch
        %268 = sbr.rel (%p266) target = $region32
      $region31: #{_lambda_.8} parent=5 // pred_region
        // Predicated region
        $region33: #{_lambda_.8} parent=31 // pred_check
          %p269 = pneg %p58
        $region34: #{_lambda_.8} parent=31 // pred_check_branch
          %271 = sbr.rel (%p269) target = $region36
        $region35: #{_lambda_.8} parent=31 // pred_region
          %s272 = sand.u32 %s48, 1
          %s273 = scalar_lea.sflag [#allocation3], %s272
          %s274 = sand.u32 %s48, 1
          %s275 = smul.addr %s274, 8
          %s276 = scalar_lea.vmem [#allocation2], %s275
          %s277 = smul.u32 2, %s32
          %s279 = ssub.s32 128, 128
          %280 = vsyncadd %s273, %s279
          %s281 = smul.addr %s31, 2
          %s282 = sadd.s32 %s277, %s281
          %s283 = smul.addr %s282, 64
          %s284 = scalar_lea.hbm %s0, %s283
          %s285 = sshll.u32 %s276, 4
          %s286 = int_to_ptr.vmem [resolvable:$true] %s285
          %291 = dma.hbm_to_vmem [thread:$0]  %s284, 128, %s286, %s273, 64, 64, 4
        $region36: #{_lambda_.8} parent=31 // pred_fallthru
          _
      $region32: #{_lambda_.8} parent=5 // pred_fallthru
        _
      %p292 = scmp.le.s32.totalorder 1, %s24
      %p293 = scmp.lt.s32.totalorder %s24, 3
      %p294 = pnand %p292, %p293
      %p295 = pneg %p294
      // Predicated region
      $region37: #{_lambda_.8} parent=5 // pred_check
        _
      $region38: #{_lambda_.8} parent=5 // pred_check_branch
        %297 = sbr.rel (%p294) target = $region40
      $region39: #{_lambda_.8} parent=5 // pred_region
        %s298 = ssub.s32 %s24, 1
        %s299 = sand.u32 %s51, 1
        %s300 = scalar_lea.sflag [#allocation3], %s299
        %s301 = sand.u32 %s51, 1
        %s302 = smul.addr %s301, 8
        %s303 = scalar_lea.vmem [#allocation2], %s302
        // Predicated region
        $region41: #{_lambda_.8} parent=39 // pred_check
          %p304 = pneg %p64
        $region42: #{_lambda_.8} parent=39 // pred_check_branch
          %306 = sbr.rel (%p304) target = $region44
        $region43: #{_lambda_.8} parent=39 // pred_region
          %307 = dma.done %s300, 128
        $region44: #{_lambda_.8} parent=39 // pred_fallthru
          _
        // Predicated region
        $region45: #{_lambda_.8} parent=39 // pred_check
          %p308 = pneg %p85
        $region46: #{_lambda_.8} parent=39 // pred_check_branch
          %310 = sbr.rel (%p308) target = $region48
        $region47: #{_lambda_.8} parent=39 // pred_region
          %311 = dma.done [#allocation6], 256
        $region48: #{_lambda_.8} parent=39 // pred_fallthru
          _
        // Predicated region
        $region49: #{_lambda_.8} parent=39 // pred_check
          %p312 = pneg %p106
        $region50: #{_lambda_.8} parent=39 // pred_check_branch
          %314 = sbr.rel (%p312) target = $region52
        $region51: #{_lambda_.8} parent=39 // pred_region
          %315 = dma.done [#allocation6], 16
        $region52: #{_lambda_.8} parent=39 // pred_fallthru
          _
        // Predicated region
        $region53: #{_lambda_.8} parent=39 // pred_check
          %p316 = pneg %p127
        $region54: #{_lambda_.8} parent=39 // pred_check_branch
          %318 = sbr.rel (%p316) target = $region56
        $region55: #{_lambda_.8} parent=39 // pred_region
          %319 = dma.done [#allocation9], 64
        $region56: #{_lambda_.8} parent=39 // pred_fallthru
          _
        // Predicated region
        $region57: #{_lambda_.8} parent=39 // pred_check
          %p320 = pneg %p148
        $region58: #{_lambda_.8} parent=39 // pred_check_branch
          %322 = sbr.rel (%p320) target = $region60
        $region59: #{_lambda_.8} parent=39 // pred_region
          %323 = dma.done [#allocation9], 128
        $region60: #{_lambda_.8} parent=39 // pred_fallthru
          _
        %s324 = sand.u32 %s51, 1
        %s325 = scalar_lea.sflag [#allocation3], %s324
        %s326 = sand.u32 %s51, 1
        %s327 = smul.addr %s326, 8
        %s328 = scalar_lea.vmem [#allocation2], %s327
        %p329 = pneg %p64
        %p330 = pneg %p61
        %p331 = pneg %p85
        %p332 = pneg %p82
        %p333 = pneg %p106
        %p334 = pneg %p103
        %p335 = pneg %p127
        %p336 = pneg %p124
        %p337 = pneg %p148
        %p338 = pneg %p145
        %p339 = pneg %p176
        %p340 = pneg %p173
        %s341 = sand.u32 %s163, 1
        %s342 = scalar_lea.sflag [#allocation4], %s341
        %s343 = sand.u32 %s163, 1
        %s344 = smul.addr %s343, 16
        %s345 = scalar_lea.vmem [#allocation11], %s344
        %p346 = pneg %p204
        %p347 = pneg %p201
        %s348 = sand.u32 %s191, 1
        %s349 = scalar_lea.sflag [#allocation13], %s348
        %s350 = sand.u32 %s191, 1
        %s351 = smul.addr %s350, 4
        %s352 = scalar_lea.vmem [#allocation12], %s351
        %s353 = smul.u32 2, %s34
        %v355 = vld [vmem:[%s303] sm:$0xf]
        %v356 = vld [vmem:[%s303 + $0x4] sm:$0xf]
        %v357 = vld [vmem:[#allocation5] sm:$0xf]
        %v358 = vld [vmem:[#allocation5 + $0x4] sm:$0xf]
        %v359 = vld [vmem:[#allocation5 + $0x8] sm:$0xf]
        %v360 = vld [vmem:[#allocation5 + $0xc] sm:$0xf]
        %v361 = vld [vmem:[#allocation7] sm:$0x1]
        %v363 = vlaneseq
        %v364 = vshrl.u32 %v363, 7
        %v365 = vsub.s32 0, %v364
        %v366 = vrot.slane %v361, %v365
        %v370 = vunpack.c.l.b16 %v355
        %v371 = vunpack.c.l.b16 %v356
        %v372 = vpack.c.b16 %v371, %v370
        %v377 = vunpack.c.l.b16 %v357
        %v378 = vunpack.c.l.b16 %v358
        %v379 = vunpack.c.l.b16 %v359
        %v380 = vunpack.c.l.b16 %v360
        %v381 = vpack.c.b16 %v378, %v377
        %v382 = vpack.c.b16 %v380, %v379
        %vm385 = vcmask 261120
        %v387 = vsel %vm385, %v372, 0
        %389 = vmatprep.subr.bf16.mxu0 0
        %390 = vmatpush1.bf16.msra.mxu0 %v381
        %391 = vmatprep.subr.bf16.mxu0 0
        %392 = vmatpush1.bf16.msra.mxu0 %v382
        %393 = vmatprep.subr.bf16.mxu0 0
        %394 = vmatpush1.bf16.msra.mxu0 0
        %395 = vmatprep.subr.bf16.mxu0 0
        %396 = vmatpush1.bf16.msra.mxu0 0
        %397 = vmatprep.subr.bf16.mxu0 0
        %398 = vmatpush1.bf16.msra.mxu0 0
        %399 = vmatprep.subr.bf16.mxu0 0
        %400 = vmatpush1.bf16.msra.mxu0 0
        %401 = vmatprep.subr.bf16.mxu0 0
        %402 = vmatpush1.bf16.msra.mxu0 0
        %403 = vmatprep.subr.bf16.mxu0 0
        %404 = vmatpush1.bf16.msra.mxu0 0
        %405 = vmatprep.subr.bf16.mxu0 0
        %406 = vmatpush1.bf16.msra.mxu0 0
        %407 = vmatprep.subr.bf16.mxu0 0
        %408 = vmatpush1.bf16.msra.mxu0 0
        %409 = vmatprep.subr.bf16.mxu0 0
        %410 = vmatpush1.bf16.msra.mxu0 0
        %411 = vmatprep.subr.bf16.mxu0 0
        %412 = vmatpush1.bf16.msra.mxu0 0
        %413 = vmatprep.subr.bf16.mxu0 0
        %414 = vmatpush1.bf16.msra.mxu0 0
        %415 = vmatprep.subr.bf16.mxu0 0
        %416 = vmatpush1.bf16.msra.mxu0 0
        %417 = vmatprep.subr.bf16.mxu0 0
        %418 = vmatpush1.bf16.msra.mxu0 0
        %419 = vmatprep.subr.bf16.mxu0 0
        %420 = vmatpush1.bf16.msra.mxu0 0
        %421 = vmatprep.mubr.bf16.mxu0 0
        %422 = vmatmul.mubr.bf16.gmra.mrb[0].mxu0 %v387
        %v423 = vpop.f32.mrb[0].mxu0
        %v424 = vadd.f32 %v366, %v423
        %v425 = vpop.f32.mrb[0].mxu0
        %v426 = vpop.f32.mrb[0].mxu0
        %v427 = vadd.f32 %v366, %v426
        %v428 = vpop.f32.mrb[0].mxu0
        %429 = vdwg.mxu0
        %v430 = vmax.f32 %v424, 0.0
        %v431 = vmax.f32 %v427, 0.0
        %v432 = vpack.c.bf16 %v431, %v430
        %433 = vxpose.xlu0.c.b16.start [1/8] %v432, 128
        %434 = vxpose.xlu0.c.b16.cont [2/8] 0, 128
        %435 = vxpose.xlu0.c.b16.cont [3/8] 0, 128
        %436 = vxpose.xlu0.c.b16.cont [4/8] 0, 128
        %437 = vxpose.xlu0.c.b16.cont [5/8] 0, 128
        %438 = vxpose.xlu0.c.b16.cont [6/8] 0, 128
        %439 = vxpose.xlu0.c.b16.cont [7/8] 0, 128
        %440 = vxpose.xlu0.c.b16.end [8/8] 0, 128
        %v441 = vpop.trf.xlu0
        %v442 = vpop.trf.xlu0
        %v443 = vpop.trf.xlu0
        %v444 = vpop.trf.xlu0
        %v445 = vpop.trf.xlu0
        %v446 = vpop.trf.xlu0
        %v447 = vpop.trf.xlu0
        %v448 = vpop.trf.xlu0
        %v451 = vunpack.c.l.b16 %v441
        %v452 = vunpack.c.h.b16 %v441
        %v453 = vunpack.c.l.b16 %v442
        %v454 = vunpack.c.h.b16 %v442
        %v455 = vpack.c.b16 %v451, %v451
        %v456 = vpack.c.b16 %v452, %v452
        %v457 = vpack.c.b16 %v453, %v453
        %v458 = vpack.c.b16 %v454, %v454
        %vm463 = vcmask 125952
        %464 = vst.msk [vmem:[%s345] sm:$0xf] %vm463, %v455
        %465 = vst.msk [vmem:[%s345 + $0x4] sm:$0xf] %vm463, %v456
        %466 = vst.msk [vmem:[%s345 + $0x8] sm:$0xf] %vm463, %v457
        %467 = vst.msk [vmem:[%s345 + $0xc] sm:$0xf] %vm463, %v458
        %v468 = vld [vmem:[#allocation8] sm:$0xf]
        %v469 = vld [vmem:[#allocation10] sm:$0xff]
        %471 = vset.pattern.permute.xlu0 0
        %472 = vperm.xlu0 %471, %v469
        %v473 = vpop.permute.xlu0 %472
        %v476 = vsel %vm385, %v468, 0
        %478 = vmatprep.subr.bf16.mxu0 0
        %479 = vmatpush1.bf16.msra.mxu0 %v441
        %480 = vmatprep.subr.bf16.mxu0 0
        %481 = vmatpush1.bf16.msra.mxu0 %v442
        %482 = vmatprep.subr.bf16.mxu0 0
        %483 = vmatpush1.bf16.msra.mxu0 0
        %484 = vmatprep.subr.bf16.mxu0 0
        %485 = vmatpush1.bf16.msra.mxu0 0
        %486 = vmatprep.subr.bf16.mxu0 0
        %487 = vmatpush1.bf16.msra.mxu0 0
        %488 = vmatprep.subr.bf16.mxu0 0
        %489 = vmatpush1.bf16.msra.mxu0 0
        %490 = vmatprep.subr.bf16.mxu0 0
        %491 = vmatpush1.bf16.msra.mxu0 0
        %492 = vmatprep.subr.bf16.mxu0 0
        %493 = vmatpush1.bf16.msra.mxu0 0
        %494 = vmatprep.subr.bf16.mxu0 0
        %495 = vmatpush1.bf16.msra.mxu0 0
        %496 = vmatprep.subr.bf16.mxu0 0
        %497 = vmatpush1.bf16.msra.mxu0 0
        %498 = vmatprep.subr.bf16.mxu0 0
        %499 = vmatpush1.bf16.msra.mxu0 0
        %500 = vmatprep.subr.bf16.mxu0 0
        %501 = vmatpush1.bf16.msra.mxu0 0
        %502 = vmatprep.subr.bf16.mxu0 0
        %503 = vmatpush1.bf16.msra.mxu0 0
        %504 = vmatprep.subr.bf16.mxu0 0
        %505 = vmatpush1.bf16.msra.mxu0 0
        %506 = vmatprep.subr.bf16.mxu0 0
        %507 = vmatpush1.bf16.msra.mxu0 0
        %508 = vmatprep.subr.bf16.mxu0 0
        %509 = vmatpush1.bf16.msra.mxu0 0
        %510 = vmatprep.mubr.bf16.mxu0 0
        %511 = vmatmul.mubr.bf16.gmra.mrb[0].mxu0 %v476
        %v512 = vpop.f32.mrb[0].mxu0
        %v513 = vadd.f32 %v473, %v512
        %v514 = vpop.f32.mrb[0].mxu0
        %v515 = vpop.f32.mrb[0].mxu0
        %v516 = vpop.f32.mrb[0].mxu0
        %517 = vdwg.mxu0
        %v518 = vpack.c.bf16 %v513, %v513
        %519 = vst.msk [vmem:[%s352] sm:$0xf] %vm463, %v518
        %s520 = sand.u32 %s163, 1
        %s521 = scalar_lea.sflag [#allocation4], %s520
        %s522 = sand.u32 %s163, 1
        %s523 = smul.addr %s522, 16
        %s524 = scalar_lea.vmem [#allocation11], %s523
        %s525 = sand.u32 %s191, 1
        %s526 = scalar_lea.sflag [#allocation13], %s525
        %s527 = sand.u32 %s191, 1
        %s528 = smul.addr %s527, 4
        %s529 = scalar_lea.vmem [#allocation12], %s528
        // Predicated region
        $region61: #{_lambda_.8} parent=39 // pred_check
          %p530 = pneg %p173
        $region62: #{_lambda_.8} parent=39 // pred_check_branch
          %532 = sbr.rel (%p530) target = $region64
        $region63: #{_lambda_.8} parent=39 // pred_region
          %s534 = ssub.s32 256, 256
          %535 = vsyncadd %s521, %s534
          %s536 = smul.addr %s33, 4
          %s537 = sadd.s32 %s34, %s536
          %s538 = smul.addr %s537, 64
          %s539 = scalar_lea.hbm %s5, %s538
          %s540 = sshll.u32 %s524, 4
          %s541 = int_to_ptr.vmem [resolvable:$true] %s540
          %546 = dma.vmem_to_hbm [thread:$0]  %s541, 256, %s539, %s521, 64, 64, 4
        $region64: #{_lambda_.8} parent=39 // pred_fallthru
          _
        // Predicated region
        $region65: #{_lambda_.8} parent=39 // pred_check
          %p547 = pneg %p201
        $region66: #{_lambda_.8} parent=39 // pred_check_branch
          %549 = sbr.rel (%p547) target = $region68
        $region67: #{_lambda_.8} parent=39 // pred_region
          %s551 = ssub.s32 64, 64
          %552 = vsyncadd %s526, %s551
          %s553 = sadd.s32 %s34, %s33
          %s554 = smul.addr %s553, 64
          %s555 = scalar_lea.hbm %s6, %s554
          %s557 = sshll.u32 %s529, 4
          %s558 = int_to_ptr.vmem [resolvable:$true] %s557
          %560 = dma.vmem_to_hbm [thread:$0]  %s558, 64, %s555, %s526
        $region68: #{_lambda_.8} parent=39 // pred_fallthru
          _
      $region40: #{_lambda_.8} parent=5 // pred_fallthru
        _
      %p561 = scmp.le.s32.totalorder 2, %s24
      // Predicated region
      $region69: #{_lambda_.8} parent=5 // pred_check
        %p562 = pneg %p561
      $region70: #{_lambda_.8} parent=5 // pred_check_branch
        %564 = sbr.rel (%p562) target = $region72
      $region71: #{_lambda_.8} parent=5 // pred_region
        %s565 = ssub.s32 %s24, 2
        // Predicated region
        $region73: #{_lambda_.8} parent=71 // pred_check
          %p566 = pneg %p179
        $region74: #{_lambda_.8} parent=71 // pred_check_branch
          %568 = sbr.rel (%p566) target = $region76
        $region75: #{_lambda_.8} parent=71 // pred_region
          %s569 = sand.u32 %s164, 1
          %s570 = scalar_lea.sflag [#allocation4], %s569
          %s571 = sand.u32 %s164, 1
          %s572 = smul.addr %s571, 16
          %s573 = scalar_lea.vmem [#allocation11], %s572
          %574 = dma.done %s570, 256
        $region76: #{_lambda_.8} parent=71 // pred_fallthru
          _
        // Predicated region
        $region77: #{_lambda_.8} parent=71 // pred_check
          %p575 = pneg %p207
        $region78: #{_lambda_.8} parent=71 // pred_check_branch
          %577 = sbr.rel (%p575) target = $region80
        $region79: #{_lambda_.8} parent=71 // pred_region
          %s578 = sand.u32 %s192, 1
          %s579 = scalar_lea.sflag [#allocation13], %s578
          %s580 = sand.u32 %s192, 1
          %s581 = smul.addr %s580, 4
          %s582 = scalar_lea.vmem [#allocation12], %s581
          %583 = dma.done %s579, 64
        $region80: #{_lambda_.8} parent=71 // pred_fallthru
          _
      $region72: #{_lambda_.8} parent=5 // pred_fallthru
        _
    $region6: #{_lambda_.8} parent=1 // loop_footer
      %s28 = sadd.s32 1, %s24
    $region7: #{_lambda_.8} parent=1 // loop_footer_branch
      %23 = sbr.rel target = $region3
    $region8: #{_lambda_.8} parent=1 // loop_exit
      _
    %584 = vsyncpa [#allocation3], 1
    %s585 = scalar_lea.sflag [#allocation3], 1
    %586 = vsyncpa %s585, 1
    %587 = vsyncpa [#allocation6], 1
    %588 = vsyncpa [#allocation9], 1
    %589 = vsyncpa [#allocation4], 1
    %s590 = scalar_lea.sflag [#allocation4], 1
    %591 = vsyncpa %s590, 1
    %592 = vsyncpa [#allocation13], 1
    %s593 = scalar_lea.sflag [#allocation13], 1
    %594 = vsyncpa %s593, 1

// kernel: _lambda_.7
$region0: #{_lambda_.7}
  #allocation0 [shape = 'u32[]', space=smem, size = 0x4, offset = 0x4, fixed_abs, tag = 'smem constant byte address 0x4 - core index']
  #allocation1 [shape = 'u32[144,128]{1,0:T(1,128)}', space=vmem, size = 0x12000, scoped, tag = 'internal scratch']
  %s0 = inlined_call_operand.hbm [shape: bf16[8,2,4,32], index: 0, kind: input, shape index: {}]
  %s1 = inlined_call_operand.hbm [shape: bf16[32,32], index: 1, kind: input, shape index: {}]
  %s2 = inlined_call_operand.hbm [shape: bf16[32,32], index: 2, kind: input, shape index: {}]
  %s3 = inlined_call_operand.hbm [shape: f32[1,32], index: 3, kind: input, shape index: {}]
  %s4 = inlined_call_operand.hbm [shape: bf16[32,32], index: 4, kind: output, shape index: {}]
  %s5 = sld [smem:[#allocation0]]
  $region42: #{_lambda_.7} parent=0
    _
  %s7 = ssub.s32 1, %s5
  %s8 = scalar_select 0, %s7, %s5
  $region1: #{_lambda_.7} parent=0
    #allocation2 [shape = 'u8[16384]{0}', space=vmem, size = 0x4000, scoped, tag = 'input window, operand 0, single buffered']
    #allocation3 [shape = 's32[1]{0}', space=sflag, size = 0x4, scoped, tag = 'scoped memory for _lambda_.7']
    #allocation4 [shape = 's32[1]{0}', space=sflag, size = 0x4, scoped, tag = 'scoped memory for _lambda_.7']
    #allocation5 [shape = 'u8[8192]{0}', space=vmem, size = 0x2000, scoped, tag = 'input window, operand 1, single buffered']
    #allocation6 [shape = 's32[1]{0}', space=sflag, size = 0x4, scoped, tag = 'scoped memory for _lambda_.7']
    #allocation7 [shape = 'u8[8192]{0}', space=vmem, size = 0x2000, scoped, tag = 'input window, operand 2, single buffered']
    #allocation8 [shape = 'u8[512]{0}', space=vmem, size = 0x400, scoped, tag = 'input window, operand 3, single buffered']
    #allocation9 [shape = 's32[1]{0}', space=sflag, size = 0x4, scoped, tag = 'scoped memory for _lambda_.7']
    #allocation10 [shape = 'u8[8192]{0}', space=vmem, size = 0x2000, scoped, tag = 'output window, operand 0, single buffered']
    %9 = vsyncpa [#allocation3], 0
    %10 = vsyncpa [#allocation6], 0
    %11 = vsyncpa [#allocation9], 0
    %12 = vsyncpa [#allocation4], 0
    // Predicated region
    $region2: #{_lambda_.7} parent=1 // pred_check
      _
    $region3: #{_lambda_.7} parent=1 // pred_check_branch
      %14 = sbr.rel (0) target = $region5
    $region4: #{_lambda_.7} parent=1 // pred_region
      %s16 = ssub.s32 512, 512
      %17 = vsyncadd [#allocation3], %s16
      %s18 = sshll.u32 [#allocation2], 4
      %s19 = int_to_ptr.vmem [resolvable:$true] %s18
      %24 = dma.hbm_to_vmem [thread:$0]  %s0, 512, %s19, [#allocation3], 32, 32, 2
    $region5: #{_lambda_.7} parent=1 // pred_fallthru
      _
    // Predicated region
    $region6: #{_lambda_.7} parent=1 // pred_check
      _
    $region7: #{_lambda_.7} parent=1 // pred_check_branch
      %26 = sbr.rel (0) target = $region9
    $region8: #{_lambda_.7} parent=1 // pred_region
      %s28 = ssub.s32 256, 256
      %29 = vsyncadd [#allocation6], %s28
      %s30 = sshll.u32 [#allocation5], 4
      %s31 = int_to_ptr.vmem [resolvable:$true] %s30
      %36 = dma.hbm_to_vmem [thread:$0]  %s1, 256, %s31, [#allocation6], 64, 64, 4
    $region9: #{_lambda_.7} parent=1 // pred_fallthru
      _
    // Predicated region
    $region10: #{_lambda_.7} parent=1 // pred_check
      _
    $region11: #{_lambda_.7} parent=1 // pred_check_branch
      %38 = sbr.rel (0) target = $region13
    $region12: #{_lambda_.7} parent=1 // pred_region
      %s40 = ssub.s32 256, 256
      %41 = vsyncadd [#allocation6], %s40
      %s42 = sshll.u32 [#allocation7], 4
      %s43 = int_to_ptr.vmem [resolvable:$true] %s42
      %48 = dma.hbm_to_vmem [thread:$0]  %s2, 256, %s43, [#allocation6], 64, 64, 4
    $region13: #{_lambda_.7} parent=1 // pred_fallthru
      _
    // Predicated region
    $region14: #{_lambda_.7} parent=1 // pred_check
      _
    $region15: #{_lambda_.7} parent=1 // pred_check_branch
      %50 = sbr.rel (0) target = $region17
    $region16: #{_lambda_.7} parent=1 // pred_region
      %s52 = ssub.s32 16, 16
      %53 = vsyncadd [#allocation9], %s52
      %s55 = sshll.u32 [#allocation8], 4
      %s56 = int_to_ptr.vmem [resolvable:$true] %s55
      %58 = dma.hbm_to_vmem [thread:$0]  %s3, 16, %s56, [#allocation9]
    $region17: #{_lambda_.7} parent=1 // pred_fallthru
      _
    // Predicated region
    $region18: #{_lambda_.7} parent=1 // pred_check
      _
    $region19: #{_lambda_.7} parent=1 // pred_check_branch
      %60 = sbr.rel (0) target = $region21
    $region20: #{_lambda_.7} parent=1 // pred_region
      %61 = dma.done [#allocation3], 512
    $region21: #{_lambda_.7} parent=1 // pred_fallthru
      _
    // Predicated region
    $region22: #{_lambda_.7} parent=1 // pred_check
      _
    $region23: #{_lambda_.7} parent=1 // pred_check_branch
      %63 = sbr.rel (0) target = $region25
    $region24: #{_lambda_.7} parent=1 // pred_region
      %64 = dma.done [#allocation6], 256
    $region25: #{_lambda_.7} parent=1 // pred_fallthru
      _
    // Predicated region
    $region26: #{_lambda_.7} parent=1 // pred_check
      _
    $region27: #{_lambda_.7} parent=1 // pred_check_branch
      %66 = sbr.rel (0) target = $region29
    $region28: #{_lambda_.7} parent=1 // pred_region
      %67 = dma.done [#allocation6], 256
    $region29: #{_lambda_.7} parent=1 // pred_fallthru
      _
    // Predicated region
    $region30: #{_lambda_.7} parent=1 // pred_check
      _
    $region31: #{_lambda_.7} parent=1 // pred_check_branch
      %69 = sbr.rel (0) target = $region33
    $region32: #{_lambda_.7} parent=1 // pred_region
      %70 = dma.done [#allocation9], 16
    $region33: #{_lambda_.7} parent=1 // pred_fallthru
      _
    %v72 = vld [vmem:[#allocation2] sm:$0x3]
    %v73 = vld [vmem:[#allocation2 + $0x4] sm:$0x3]
    %v74 = vld [vmem:[#allocation2 + $0x8] sm:$0x3]
    %v75 = vld [vmem:[#allocation2 + $0xc] sm:$0x3]
    %v76 = vld [vmem:[#allocation2 + $0x10] sm:$0x3]
    %v77 = vld [vmem:[#allocation2 + $0x14] sm:$0x3]
    %v78 = vld [vmem:[#allocation2 + $0x18] sm:$0x3]
    %v79 = vld [vmem:[#allocation2 + $0x1c] sm:$0x3]
    %s80 = scalar_lea.vmem [#allocation2], 2
    %v81 = vld [vmem:[%s80] sm:$0x3]
    %v82 = vld [vmem:[%s80 + $0x4] sm:$0x3]
    %v83 = vld [vmem:[%s80 + $0x8] sm:$0x3]
    %v84 = vld [vmem:[%s80 + $0xc] sm:$0x3]
    %v85 = vld [vmem:[%s80 + $0x10] sm:$0x3]
    %v86 = vld [vmem:[%s80 + $0x14] sm:$0x3]
    %v87 = vld [vmem:[%s80 + $0x18] sm:$0x3]
    %v88 = vld [vmem:[%s80 + $0x1c] sm:$0x3]
    %v89 = vld [vmem:[#allocation5] sm:$0xf]
    %v90 = vld [vmem:[#allocation5 + $0x4] sm:$0xf]
    %v91 = vld [vmem:[#allocation5 + $0x8] sm:$0xf]
    %v92 = vld [vmem:[#allocation5 + $0xc] sm:$0xf]
    %v93 = vld [vmem:[#allocation7] sm:$0xf]
    %v94 = vld [vmem:[#allocation7 + $0x4] sm:$0xf]
    %v95 = vld [vmem:[#allocation7 + $0x8] sm:$0xf]
    %v96 = vld [vmem:[#allocation7 + $0xc] sm:$0xf]
    %v105 = vcombine.low %v81, %v82
    %v106 = vcombine.low %v83, %v84
    %v108 = vunpack.c.l.s4 1983009808
    %v109 = vunpack.c.0.s8 %v108
    %v110 = vlaneseq
    %v111 = vshrl.u32 %v110, 7
    %v112 = vsub.s32 %v109, %v111
    %v113 = vrot.slane %v105, %v112
    %v115 = vunpack.c.l.s4 1983009808
    %v116 = vunpack.c.0.s8 %v115
    %v117 = vlaneseq
    %v118 = vshrl.u32 %v117, 7
    %v119 = vsub.s32 %v116, %v118
    %v120 = vrot.slane %v106, %v119
    %v121 = vcombine.low %v113, %v120
    %v122 = vcombine.low %v85, %v86
    %v123 = vcombine.low %v87, %v88
    %v125 = vunpack.c.l.s4 1983009808
    %v126 = vunpack.c.0.s8 %v125
    %v127 = vlaneseq
    %v128 = vshrl.u32 %v127, 7
    %v129 = vsub.s32 %v126, %v128
    %v130 = vrot.slane %v122, %v129
    %v132 = vunpack.c.l.s4 1983009808
    %v133 = vunpack.c.0.s8 %v132
    %v134 = vlaneseq
    %v135 = vshrl.u32 %v134, 7
    %v136 = vsub.s32 %v133, %v135
    %v137 = vrot.slane %v123, %v136
    %v138 = vcombine.low %v130, %v137
    %v143 = vunpack.c.l.b16 %v93
    %v144 = vunpack.c.l.b16 %v94
    %v145 = vunpack.c.l.b16 %v95
    %v146 = vunpack.c.l.b16 %v96
    %v147 = vpack.c.b16 %v144, %v143
    %v148 = vpack.c.b16 %v146, %v145
    %vm151 = vcmask 261120
    %v153 = vsel %vm151, %v121, 0
    %v156 = vsel %vm151, %v138, 0
    %158 = vmatprep.subr.bf16.mxu0 0
    %159 = vmatpush1.bf16.msra.mxu0 %v147
    %160 = vmatprep.subr.bf16.mxu0 0
    %161 = vmatpush1.bf16.msra.mxu0 %v148
    %162 = vmatprep.subr.bf16.mxu0 0
    %163 = vmatpush1.bf16.msra.mxu0 0
    %164 = vmatprep.subr.bf16.mxu0 0
    %165 = vmatpush1.bf16.msra.mxu0 0
    %166 = vmatprep.subr.bf16.mxu0 0
    %167 = vmatpush1.bf16.msra.mxu0 0
    %168 = vmatprep.subr.bf16.mxu0 0
    %169 = vmatpush1.bf16.msra.mxu0 0
    %170 = vmatprep.subr.bf16.mxu0 0
    %171 = vmatpush1.bf16.msra.mxu0 0
    %172 = vmatprep.subr.bf16.mxu0 0
    %173 = vmatpush1.bf16.msra.mxu0 0
    %174 = vmatprep.subr.bf16.mxu0 0
    %175 = vmatpush1.bf16.msra.mxu0 0
    %176 = vmatprep.subr.bf16.mxu0 0
    %177 = vmatpush1.bf16.msra.mxu0 0
    %178 = vmatprep.subr.bf16.mxu0 0
    %179 = vmatpush1.bf16.msra.mxu0 0
    %180 = vmatprep.subr.bf16.mxu0 0
    %181 = vmatpush1.bf16.msra.mxu0 0
    %182 = vmatprep.subr.bf16.mxu0 0
    %183 = vmatpush1.bf16.msra.mxu0 0
    %184 = vmatprep.subr.bf16.mxu0 0
    %185 = vmatpush1.bf16.msra.mxu0 0
    %186 = vmatprep.subr.bf16.mxu0 0
    %187 = vmatpush1.bf16.msra.mxu0 0
    %188 = vmatprep.subr.bf16.mxu0 0
    %189 = vmatpush1.bf16.msra.mxu0 0
    %190 = vmatprep.mubr.bf16.mxu0 0
    %191 = vmatmul.mubr.bf16.gmra.mrb[0].mxu0 %v153
    %v192 = vpop.f32.mrb[0].mxu0
    %v193 = vadd.f32 0.0, %v192
    %v194 = vpop.f32.mrb[0].mxu0
    %v195 = vpop.f32.mrb[0].mxu0
    %v196 = vadd.f32 0.0, %v195
    %v197 = vpop.f32.mrb[0].mxu0
    %198 = vmatprep.mubr.bf16.mxu0 0
    %199 = vmatmul.mubr.bf16.gmra.mrb[0].mxu0 %v156
    %v200 = vpop.f32.mrb[0].mxu0
    %v201 = vadd.f32 0.0, %v200
    %v202 = vpop.f32.mrb[0].mxu0
    %v203 = vpop.f32.mrb[0].mxu0
    %v204 = vadd.f32 0.0, %v203
    %v205 = vpop.f32.mrb[0].mxu0
    %206 = vdwg.mxu0
    %v215 = vcombine.low %v72, %v73
    %v216 = vcombine.low %v74, %v75
    %v218 = vunpack.c.l.s4 1983009808
    %v219 = vunpack.c.0.s8 %v218
    %v220 = vlaneseq
    %v221 = vshrl.u32 %v220, 7
    %v222 = vsub.s32 %v219, %v221
    %v223 = vrot.slane %v215, %v222
    %v225 = vunpack.c.l.s4 1983009808
    %v226 = vunpack.c.0.s8 %v225
    %v227 = vlaneseq
    %v228 = vshrl.u32 %v227, 7
    %v229 = vsub.s32 %v226, %v228
    %v230 = vrot.slane %v216, %v229
    %v231 = vcombine.low %v223, %v230
    %v232 = vcombine.low %v76, %v77
    %v233 = vcombine.low %v78, %v79
    %v235 = vunpack.c.l.s4 1983009808
    %v236 = vunpack.c.0.s8 %v235
    %v237 = vlaneseq
    %v238 = vshrl.u32 %v237, 7
    %v239 = vsub.s32 %v236, %v238
    %v240 = vrot.slane %v232, %v239
    %v242 = vunpack.c.l.s4 1983009808
    %v243 = vunpack.c.0.s8 %v242
    %v244 = vlaneseq
    %v245 = vshrl.u32 %v244, 7
    %v246 = vsub.s32 %v243, %v245
    %v247 = vrot.slane %v233, %v246
    %v248 = vcombine.low %v240, %v247
    %v253 = vunpack.c.l.b16 %v89
    %v254 = vunpack.c.l.b16 %v90
    %v255 = vunpack.c.l.b16 %v91
    %v256 = vunpack.c.l.b16 %v92
    %v257 = vpack.c.b16 %v254, %v253
    %v258 = vpack.c.b16 %v256, %v255
    %v262 = vsel %vm151, %v231, 0
    %v265 = vsel %vm151, %v248, 0
    %267 = vmatprep.subr.bf16.mxu0 0
    %268 = vmatpush1.bf16.msra.mxu0 %v257
    %269 = vmatprep.subr.bf16.mxu0 0
    %270 = vmatpush1.bf16.msra.mxu0 %v258
    %271 = vmatprep.subr.bf16.mxu0 0
    %272 = vmatpush1.bf16.msra.mxu0 0
    %273 = vmatprep.subr.bf16.mxu0 0
    %274 = vmatpush1.bf16.msra.mxu0 0
    %275 = vmatprep.subr.bf16.mxu0 0
    %276 = vmatpush1.bf16.msra.mxu0 0
    %277 = vmatprep.subr.bf16.mxu0 0
    %278 = vmatpush1.bf16.msra.mxu0 0
    %279 = vmatprep.subr.bf16.mxu0 0
    %280 = vmatpush1.bf16.msra.mxu0 0
    %281 = vmatprep.subr.bf16.mxu0 0
    %282 = vmatpush1.bf16.msra.mxu0 0
    %283 = vmatprep.subr.bf16.mxu0 0
    %284 = vmatpush1.bf16.msra.mxu0 0
    %285 = vmatprep.subr.bf16.mxu0 0
    %286 = vmatpush1.bf16.msra.mxu0 0
    %287 = vmatprep.subr.bf16.mxu0 0
    %288 = vmatpush1.bf16.msra.mxu0 0
    %289 = vmatprep.subr.bf16.mxu0 0
    %290 = vmatpush1.bf16.msra.mxu0 0
    %291 = vmatprep.subr.bf16.mxu0 0
    %292 = vmatpush1.bf16.msra.mxu0 0
    %293 = vmatprep.subr.bf16.mxu0 0
    %294 = vmatpush1.bf16.msra.mxu0 0
    %295 = vmatprep.subr.bf16.mxu0 0
    %296 = vmatpush1.bf16.msra.mxu0 0
    %297 = vmatprep.subr.bf16.mxu0 0
    %298 = vmatpush1.bf16.msra.mxu0 0
    %299 = vmatprep.mubr.bf16.mxu0 0
    %300 = vmatmul.mubr.bf16.gmra.mrb[0].mxu0 %v262
    %v301 = vpop.f32.mrb[0].mxu0
    %v302 = vadd.f32 %v193, %v301
    %v303 = vpop.f32.mrb[0].mxu0
    %v304 = vpop.f32.mrb[0].mxu0
    %v305 = vadd.f32 %v196, %v304
    %v306 = vpop.f32.mrb[0].mxu0
    %307 = vmatprep.mubr.bf16.mxu0 0
    %308 = vmatmul.mubr.bf16.gmra.mrb[0].mxu0 %v265
    %v309 = vpop.f32.mrb[0].mxu0
    %v310 = vadd.f32 %v201, %v309
    %v311 = vpop.f32.mrb[0].mxu0
    %v312 = vpop.f32.mrb[0].mxu0
    %v313 = vadd.f32 %v204, %v312
    %v314 = vpop.f32.mrb[0].mxu0
    %315 = vdwg.mxu0
    %v316 = vld [vmem:[#allocation8] sm:$0x1]
    %v318 = vlaneseq
    %v319 = vshrl.u32 %v318, 7
    %v320 = vsub.s32 0, %v319
    %v321 = vrot.slane %v316, %v320
    %v323 = vadd.f32 %v302, %v321
    %v324 = vadd.f32 %v305, %v321
    %v325 = vadd.f32 %v310, %v321
    %v326 = vadd.f32 %v313, %v321
    %v327 = vmax.f32 %v323, 0.0
    %v328 = vmax.f32 %v324, 0.0
    %v329 = vmax.f32 %v325, 0.0
    %v330 = vmax.f32 %v326, 0.0
    %v331 = vpack.c.bf16 %v328, %v327
    %v332 = vpack.c.bf16 %v330, %v329
    %v335 = vunpack.c.l.b16 %v331
    %v336 = vunpack.c.h.b16 %v331
    %v337 = vunpack.c.l.b16 %v332
    %v338 = vunpack.c.h.b16 %v332
    %v339 = vpack.c.b16 %v335, %v335
    %v340 = vpack.c.b16 %v336, %v336
    %v341 = vpack.c.b16 %v337, %v337
    %v342 = vpack.c.b16 %v338, %v338
    %vm347 = vcmask 257024
    %348 = vst.msk [vmem:[#allocation10] sm:$0xf] %vm347, %v339
    %349 = vst.msk [vmem:[#allocation10 + $0x4] sm:$0xf] %vm347, %v340
    %350 = vst.msk [vmem:[#allocation10 + $0x8] sm:$0xf] %vm347, %v341
    %351 = vst.msk [vmem:[#allocation10 + $0xc] sm:$0xf] %vm347, %v342
    // Predicated region
    $region34: #{_lambda_.7} parent=1 // pred_check
      _
    $region35: #{_lambda_.7} parent=1 // pred_check_branch
      %353 = sbr.rel (0) target = $region37
    $region36: #{_lambda_.7} parent=1 // pred_region
      %s355 = ssub.s32 256, 256
      %356 = vsyncadd [#allocation4], %s355
      %s357 = sshll.u32 [#allocation10], 4
      %s358 = int_to_ptr.vmem [resolvable:$true] %s357
      %363 = dma.vmem_to_hbm [thread:$0]  %s358, 256, %s4, [#allocation4], 64, 64, 4
    $region37: #{_lambda_.7} parent=1 // pred_fallthru
      _
    // Predicated region
    $region38: #{_lambda_.7} parent=1 // pred_check
      _
    $region39: #{_lambda_.7} parent=1 // pred_check_branch
      %365 = sbr.rel (0) target = $region41
    $region40: #{_lambda_.7} parent=1 // pred_region
      %366 = dma.done [#allocation4], 256
    $region41: #{_lambda_.7} parent=1 // pred_fallthru
      _
    %367 = vsyncpa [#allocation3], 1
    %368 = vsyncpa [#allocation6], 1
    %369 = vsyncpa [#allocation9], 1
    %370 = vsyncpa [#allocation4], 1

// kernel: _lambda_.6
$region0: #{_lambda_.6}
  #allocation0 [shape = 'u32[]', space=smem, size = 0x4, offset = 0x4, fixed_abs, tag = 'smem constant byte address 0x4 - core index']
  #allocation1 [shape = 'u32[144,128]{1,0:T(1,128)}', space=vmem, size = 0x12000, scoped, tag = 'internal scratch']
  %s0 = inlined_call_operand.hbm [shape: bf16[16,2,8,8], index: 0, kind: input, shape index: {}]
  %s1 = inlined_call_operand.hbm [shape: bf16[8,16], index: 1, kind: input, shape index: {}]
  %s2 = inlined_call_operand.hbm [shape: bf16[8,16], index: 2, kind: input, shape index: {}]
  %s3 = inlined_call_operand.hbm [shape: f32[1,16], index: 3, kind: input, shape index: {}]
  %s4 = inlined_call_operand.hbm [shape: bf16[128,16], index: 4, kind: output, shape index: {}]
  %s5 = sld [smem:[#allocation0]]
  $region42: #{_lambda_.6} parent=0
    _
  %s7 = ssub.s32 1, %s5
  %s8 = scalar_select 0, %s7, %s5
  $region1: #{_lambda_.6} parent=0
    #allocation2 [shape = 'u8[65536]{0}', space=vmem, size = 0x10000, scoped, tag = 'input window, operand 0, single buffered']
    #allocation3 [shape = 's32[1]{0}', space=sflag, size = 0x4, scoped, tag = 'scoped memory for _lambda_.6']
    #allocation4 [shape = 's32[1]{0}', space=sflag, size = 0x4, scoped, tag = 'scoped memory for _lambda_.6']
    #allocation5 [shape = 'u8[2048]{0}', space=vmem, size = 0x800, scoped, tag = 'input window, operand 1, single buffered']
    #allocation6 [shape = 's32[1]{0}', space=sflag, size = 0x4, scoped, tag = 'scoped memory for _lambda_.6']
    #allocation7 [shape = 'u8[2048]{0}', space=vmem, size = 0x800, scoped, tag = 'input window, operand 2, single buffered']
    #allocation8 [shape = 'u8[512]{0}', space=vmem, size = 0x400, scoped, tag = 'input window, operand 3, single buffered']
    #allocation9 [shape = 's32[1]{0}', space=sflag, size = 0x4, scoped, tag = 'scoped memory for _lambda_.6']
    #allocation10 [shape = 'u8[32768]{0}', space=vmem, size = 0x8000, scoped, tag = 'output window, operand 0, single buffered']
    %9 = vsyncpa [#allocation3], 0
    %10 = vsyncpa [#allocation6], 0
    %11 = vsyncpa [#allocation9], 0
    %12 = vsyncpa [#allocation4], 0
    // Predicated region
    $region2: #{_lambda_.6} parent=1 // pred_check
      _
    $region3: #{_lambda_.6} parent=1 // pred_check_branch
      %14 = sbr.rel (0) target = $region5
    $region4: #{_lambda_.6} parent=1 // pred_region
      %s16 = ssub.s32 2048, 2048
      %17 = vsyncadd [#allocation3], %s16
      %s18 = sshll.u32 [#allocation2], 4
      %s19 = int_to_ptr.vmem [resolvable:$true] %s18
      %24 = dma.hbm_to_vmem [thread:$0]  %s0, 2048, %s19, [#allocation3], 64, 64, 4
    $region5: #{_lambda_.6} parent=1 // pred_fallthru
      _
    // Predicated region
    $region6: #{_lambda_.6} parent=1 // pred_check
      _
    $region7: #{_lambda_.6} parent=1 // pred_check_branch
      %26 = sbr.rel (0) target = $region9
    $region8: #{_lambda_.6} parent=1 // pred_region
      %s28 = ssub.s32 64, 64
      %29 = vsyncadd [#allocation6], %s28
      %s31 = sshll.u32 [#allocation5], 4
      %s32 = int_to_ptr.vmem [resolvable:$true] %s31
      %34 = dma.hbm_to_vmem [thread:$0]  %s1, 64, %s32, [#allocation6]
    $region9: #{_lambda_.6} parent=1 // pred_fallthru
      _
    // Predicated region
    $region10: #{_lambda_.6} parent=1 // pred_check
      _
    $region11: #{_lambda_.6} parent=1 // pred_check_branch
      %36 = sbr.rel (0) target = $region13
    $region12: #{_lambda_.6} parent=1 // pred_region
      %s38 = ssub.s32 64, 64
      %39 = vsyncadd [#allocation6], %s38
      %s41 = sshll.u32 [#allocation7], 4
      %s42 = int_to_ptr.vmem [resolvable:$true] %s41
      %44 = dma.hbm_to_vmem [thread:$0]  %s2, 64, %s42, [#allocation6]
    $region13: #{_lambda_.6} parent=1 // pred_fallthru
      _
    // Predicated region
    $region14: #{_lambda_.6} parent=1 // pred_check
      _
    $region15: #{_lambda_.6} parent=1 // pred_check_branch
      %46 = sbr.rel (0) target = $region17
    $region16: #{_lambda_.6} parent=1 // pred_region
      %s48 = ssub.s32 16, 16
      %49 = vsyncadd [#allocation9], %s48
      %s51 = sshll.u32 [#allocation8], 4
      %s52 = int_to_ptr.vmem [resolvable:$true] %s51
      %54 = dma.hbm_to_vmem [thread:$0]  %s3, 16, %s52, [#allocation9]
    $region17: #{_lambda_.6} parent=1 // pred_fallthru
      _
    // Predicated region
    $region18: #{_lambda_.6} parent=1 // pred_check
      _
    $region19: #{_lambda_.6} parent=1 // pred_check_branch
      %56 = sbr.rel (0) target = $region21
    $region20: #{_lambda_.6} parent=1 // pred_region
      %57 = dma.done [#allocation3], 2048
    $region21: #{_lambda_.6} parent=1 // pred_fallthru
      _
    // Predicated region
    $region22: #{_lambda_.6} parent=1 // pred_check
      _
    $region23: #{_lambda_.6} parent=1 // pred_check_branch
      %59 = sbr.rel (0) target = $region25
    $region24: #{_lambda_.6} parent=1 // pred_region
      %60 = dma.done [#allocation6], 64
    $region25: #{_lambda_.6} parent=1 // pred_fallthru
      _
    // Predicated region
    $region26: #{_lambda_.6} parent=1 // pred_check
      _
    $region27: #{_lambda_.6} parent=1 // pred_check_branch
      %62 = sbr.rel (0) target = $region29
    $region28: #{_lambda_.6} parent=1 // pred_region
      %63 = dma.done [#allocation6], 64
    $region29: #{_lambda_.6} parent=1 // pred_fallthru
      _
    // Predicated region
    $region30: #{_lambda_.6} parent=1 // pred_check
      _
    $region31: #{_lambda_.6} parent=1 // pred_check_branch
      %65 = sbr.rel (0) target = $region33
    $region32: #{_lambda_.6} parent=1 // pred_region
      %66 = dma.done [#allocation9], 16
    $region33: #{_lambda_.6} parent=1 // pred_fallthru
      _
    %v68 = vld [vmem:[#allocation2] sm:$0xf]
    %v69 = vld [vmem:[#allocation2 + $0x8] sm:$0xf]
    %v70 = vld [vmem:[#allocation2 + $0x10] sm:$0xf]
    %v71 = vld [vmem:[#allocation2 + $0x18] sm:$0xf]
    %v72 = vld [vmem:[#allocation2 + $0x20] sm:$0xf]
    %v73 = vld [vmem:[#allocation2 + $0x28] sm:$0xf]
    %v74 = vld [vmem:[#allocation2 + $0x30] sm:$0xf]
    %v75 = vld [vmem:[#allocation2 + $0x38] sm:$0xf]
    %v76 = vld [vmem:[#allocation2 + $0x40] sm:$0xf]
    %v77 = vld [vmem:[#allocation2 + $0x48] sm:$0xf]
    %v78 = vld [vmem:[#allocation2 + $0x50] sm:$0xf]
    %v79 = vld [vmem:[#allocation2 + $0x58] sm:$0xf]
    %v80 = vld [vmem:[#allocation2 + $0x60] sm:$0xf]
    %v81 = vld [vmem:[#allocation2 + $0x68] sm:$0xf]
    %v82 = vld [vmem:[#allocation2 + $0x70] sm:$0xf]
    %v83 = vld [vmem:[#allocation2 + $0x78] sm:$0xf]
    %s84 = scalar_lea.vmem [#allocation2], 4
    %v85 = vld [vmem:[%s84] sm:$0xf]
    %v86 = vld [vmem:[%s84 + $0x8] sm:$0xf]
    %v87 = vld [vmem:[%s84 + $0x10] sm:$0xf]
    %v88 = vld [vmem:[%s84 + $0x18] sm:$0xf]
    %v89 = vld [vmem:[%s84 + $0x20] sm:$0xf]
    %v90 = vld [vmem:[%s84 + $0x28] sm:$0xf]
    %v91 = vld [vmem:[%s84 + $0x30] sm:$0xf]
    %v92 = vld [vmem:[%s84 + $0x38] sm:$0xf]
    %v93 = vld [vmem:[%s84 + $0x40] sm:$0xf]
    %v94 = vld [vmem:[%s84 + $0x48] sm:$0xf]
    %v95 = vld [vmem:[%s84 + $0x50] sm:$0xf]
    %v96 = vld [vmem:[%s84 + $0x58] sm:$0xf]
    %v97 = vld [vmem:[%s84 + $0x60] sm:$0xf]
    %v98 = vld [vmem:[%s84 + $0x68] sm:$0xf]
    %v99 = vld [vmem:[%s84 + $0x70] sm:$0xf]
    %v100 = vld [vmem:[%s84 + $0x78] sm:$0xf]
    %v101 = vld [vmem:[#allocation5] sm:$0xf]
    %v102 = vld [vmem:[#allocation7] sm:$0xf]
    %v119 = vunpack.c.l.b16 %v85
    %v120 = vunpack.c.l.b16 %v86
    %v121 = vunpack.c.l.b16 %v87
    %v122 = vunpack.c.l.b16 %v88
    %v123 = vunpack.c.l.b16 %v89
    %v124 = vunpack.c.l.b16 %v90
    %v125 = vunpack.c.l.b16 %v91
    %v126 = vunpack.c.l.b16 %v92
    %v127 = vunpack.c.l.b16 %v93
    %v128 = vunpack.c.l.b16 %v94
    %v129 = vunpack.c.l.b16 %v95
    %v130 = vunpack.c.l.b16 %v96
    %v131 = vunpack.c.l.b16 %v97
    %v132 = vunpack.c.l.b16 %v98
    %v133 = vunpack.c.l.b16 %v99
    %v134 = vunpack.c.l.b16 %v100
    %v135 = vpack.c.b16 %v120, %v119
    %v136 = vpack.c.b16 %v122, %v121
    %v137 = vpack.c.b16 %v124, %v123
    %v138 = vpack.c.b16 %v126, %v125
    %v139 = vpack.c.b16 %v128, %v127
    %v140 = vpack.c.b16 %v130, %v129
    %v141 = vpack.c.b16 %v132, %v131
    %v142 = vpack.c.b16 %v134, %v133
    %vm143 = vcmask 64512
    %v145 = vsel %vm143, %v135, 0
    %v148 = vsel %vm143, %v136, 0
    %v151 = vsel %vm143, %v137, 0
    %v154 = vsel %vm143, %v138, 0
    %v157 = vsel %vm143, %v139, 0
    %v160 = vsel %vm143, %v140, 0
    %v163 = vsel %vm143, %v141, 0
    %v166 = vsel %vm143, %v142, 0
    %vm168 = vcmask 1043456
    %v170 = vsel %vm168, %v102, 0
    %172 = vmatprep.subr.bf16.mxu0 0
    %173 = vmatpush1.bf16.msra.mxu0 %v170
    %174 = vmatprep.subr.bf16.mxu0 0
    %175 = vmatpush1.bf16.msra.mxu0 0
    %176 = vmatprep.subr.bf16.mxu0 0
    %177 = vmatpush1.bf16.msra.mxu0 0
    %178 = vmatprep.subr.bf16.mxu0 0
    %179 = vmatpush1.bf16.msra.mxu0 0
    %180 = vmatprep.subr.bf16.mxu0 0
    %181 = vmatpush1.bf16.msra.mxu0 0
    %182 = vmatprep.subr.bf16.mxu0 0
    %183 = vmatpush1.bf16.msra.mxu0 0
    %184 = vmatprep.subr.bf16.mxu0 0
    %185 = vmatpush1.bf16.msra.mxu0 0
    %186 = vmatprep.subr.bf16.mxu0 0
    %187 = vmatpush1.bf16.msra.mxu0 0
    %188 = vmatprep.subr.bf16.mxu0 0
    %189 = vmatpush1.bf16.msra.mxu0 0
    %190 = vmatprep.subr.bf16.mxu0 0
    %191 = vmatpush1.bf16.msra.mxu0 0
    %192 = vmatprep.subr.bf16.mxu0 0
    %193 = vmatpush1.bf16.msra.mxu0 0
    %194 = vmatprep.subr.bf16.mxu0 0
    %195 = vmatpush1.bf16.msra.mxu0 0
    %196 = vmatprep.subr.bf16.mxu0 0
    %197 = vmatpush1.bf16.msra.mxu0 0
    %198 = vmatprep.subr.bf16.mxu0 0
    %199 = vmatpush1.bf16.msra.mxu0 0
    %200 = vmatprep.subr.bf16.mxu0 0
    %201 = vmatpush1.bf16.msra.mxu0 0
    %202 = vmatprep.subr.bf16.mxu0 0
    %203 = vmatpush1.bf16.msra.mxu0 0
    %204 = vmatprep.mubr.bf16.mxu0 0
    %205 = vmatmul.mubr.bf16.gmra.mrb[0].mxu0 %v145
    %v206 = vpop.f32.mrb[0].mxu0
    %v207 = vadd.f32 0.0, %v206
    %v208 = vpop.f32.mrb[0].mxu0
    %v209 = vpop.f32.mrb[0].mxu0
    %v210 = vadd.f32 0.0, %v209
    %v211 = vpop.f32.mrb[0].mxu0
    %212 = vmatprep.mubr.bf16.mxu0 0
    %213 = vmatmul.mubr.bf16.gmra.mrb[0].mxu0 %v148
    %v214 = vpop.f32.mrb[0].mxu0
    %v215 = vadd.f32 0.0, %v214
    %v216 = vpop.f32.mrb[0].mxu0
    %v217 = vpop.f32.mrb[0].mxu0
    %v218 = vadd.f32 0.0, %v217
    %v219 = vpop.f32.mrb[0].mxu0
    %220 = vmatprep.mubr.bf16.mxu0 0
    %221 = vmatmul.mubr.bf16.gmra.mrb[0].mxu0 %v151
    %v222 = vpop.f32.mrb[0].mxu0
    %v223 = vadd.f32 0.0, %v222
    %v224 = vpop.f32.mrb[0].mxu0
    %v225 = vpop.f32.mrb[0].mxu0
    %v226 = vadd.f32 0.0, %v225
    %v227 = vpop.f32.mrb[0].mxu0
    %228 = vmatprep.mubr.bf16.mxu0 0
    %229 = vmatmul.mubr.bf16.gmra.mrb[0].mxu0 %v154
    %v230 = vpop.f32.mrb[0].mxu0
    %v231 = vadd.f32 0.0, %v230
    %v232 = vpop.f32.mrb[0].mxu0
    %v233 = vpop.f32.mrb[0].mxu0
    %v234 = vadd.f32 0.0, %v233
    %v235 = vpop.f32.mrb[0].mxu0
    %236 = vmatprep.mubr.bf16.mxu0 0
    %237 = vmatmul.mubr.bf16.gmra.mrb[0].mxu0 %v157
    %v238 = vpop.f32.mrb[0].mxu0
    %v239 = vadd.f32 0.0, %v238
    %v240 = vpop.f32.mrb[0].mxu0
    %v241 = vpop.f32.mrb[0].mxu0
    %v242 = vadd.f32 0.0, %v241
    %v243 = vpop.f32.mrb[0].mxu0
    %244 = vmatprep.mubr.bf16.mxu0 0
    %245 = vmatmul.mubr.bf16.gmra.mrb[0].mxu0 %v160
    %v246 = vpop.f32.mrb[0].mxu0
    %v247 = vadd.f32 0.0, %v246
    %v248 = vpop.f32.mrb[0].mxu0
    %v249 = vpop.f32.mrb[0].mxu0
    %v250 = vadd.f32 0.0, %v249
    %v251 = vpop.f32.mrb[0].mxu0
    %252 = vmatprep.mubr.bf16.mxu0 0
    %253 = vmatmul.mubr.bf16.gmra.mrb[0].mxu0 %v163
    %v254 = vpop.f32.mrb[0].mxu0
    %v255 = vadd.f32 0.0, %v254
    %v256 = vpop.f32.mrb[0].mxu0
    %v257 = vpop.f32.mrb[0].mxu0
    %v258 = vadd.f32 0.0, %v257
    %v259 = vpop.f32.mrb[0].mxu0
    %260 = vmatprep.mubr.bf16.mxu0 0
    %261 = vmatmul.mubr.bf16.gmra.mrb[0].mxu0 %v166
    %v262 = vpop.f32.mrb[0].mxu0
    %v263 = vadd.f32 0.0, %v262
    %v264 = vpop.f32.mrb[0].mxu0
    %v265 = vpop.f32.mrb[0].mxu0
    %v266 = vadd.f32 0.0, %v265
    %v267 = vpop.f32.mrb[0].mxu0
    %268 = vdwg.mxu0
    %v285 = vunpack.c.l.b16 %v68
    %v286 = vunpack.c.l.b16 %v69
    %v287 = vunpack.c.l.b16 %v70
    %v288 = vunpack.c.l.b16 %v71
    %v289 = vunpack.c.l.b16 %v72
    %v290 = vunpack.c.l.b16 %v73
    %v291 = vunpack.c.l.b16 %v74
    %v292 = vunpack.c.l.b16 %v75
    %v293 = vunpack.c.l.b16 %v76
    %v294 = vunpack.c.l.b16 %v77
    %v295 = vunpack.c.l.b16 %v78
    %v296 = vunpack.c.l.b16 %v79
    %v297 = vunpack.c.l.b16 %v80
    %v298 = vunpack.c.l.b16 %v81
    %v299 = vunpack.c.l.b16 %v82
    %v300 = vunpack.c.l.b16 %v83
    %v301 = vpack.c.b16 %v286, %v285
    %v302 = vpack.c.b16 %v288, %v287
    %v303 = vpack.c.b16 %v290, %v289
    %v304 = vpack.c.b16 %v292, %v291
    %v305 = vpack.c.b16 %v294, %v293
    %v306 = vpack.c.b16 %v296, %v295
    %v307 = vpack.c.b16 %v298, %v297
    %v308 = vpack.c.b16 %v300, %v299
    %v310 = vsel %vm143, %v301, 0
    %v313 = vsel %vm143, %v302, 0
    %v316 = vsel %vm143, %v303, 0
    %v319 = vsel %vm143, %v304, 0
    %v322 = vsel %vm143, %v305, 0
    %v325 = vsel %vm143, %v306, 0
    %v328 = vsel %vm143, %v307, 0
    %v331 = vsel %vm143, %v308, 0
    %v334 = vsel %vm168, %v101, 0
    %336 = vmatprep.subr.bf16.mxu0 0
    %337 = vmatpush1.bf16.msra.mxu0 %v334
    %338 = vmatprep.subr.bf16.mxu0 0
    %339 = vmatpush1.bf16.msra.mxu0 0
    %340 = vmatprep.subr.bf16.mxu0 0
    %341 = vmatpush1.bf16.msra.mxu0 0
    %342 = vmatprep.subr.bf16.mxu0 0
    %343 = vmatpush1.bf16.msra.mxu0 0
    %344 = vmatprep.subr.bf16.mxu0 0
    %345 = vmatpush1.bf16.msra.mxu0 0
    %346 = vmatprep.subr.bf16.mxu0 0
    %347 = vmatpush1.bf16.msra.mxu0 0
    %348 = vmatprep.subr.bf16.mxu0 0
    %349 = vmatpush1.bf16.msra.mxu0 0
    %350 = vmatprep.subr.bf16.mxu0 0
    %351 = vmatpush1.bf16.msra.mxu0 0
    %352 = vmatprep.subr.bf16.mxu0 0
    %353 = vmatpush1.bf16.msra.mxu0 0
    %354 = vmatprep.subr.bf16.mxu0 0
    %355 = vmatpush1.bf16.msra.mxu0 0
    %356 = vmatprep.subr.bf16.mxu0 0
    %357 = vmatpush1.bf16.msra.mxu0 0
    %358 = vmatprep.subr.bf16.mxu0 0
    %359 = vmatpush1.bf16.msra.mxu0 0
    %360 = vmatprep.subr.bf16.mxu0 0
    %361 = vmatpush1.bf16.msra.mxu0 0
    %362 = vmatprep.subr.bf16.mxu0 0
    %363 = vmatpush1.bf16.msra.mxu0 0
    %364 = vmatprep.subr.bf16.mxu0 0
    %365 = vmatpush1.bf16.msra.mxu0 0
    %366 = vmatprep.subr.bf16.mxu0 0
    %367 = vmatpush1.bf16.msra.mxu0 0
    %368 = vmatprep.mubr.bf16.mxu0 0
    %369 = vmatmul.mubr.bf16.gmra.mrb[0].mxu0 %v310
    %v370 = vpop.f32.mrb[0].mxu0
    %v371 = vadd.f32 %v207, %v370
    %v372 = vpop.f32.mrb[0].mxu0
    %v373 = vpop.f32.mrb[0].mxu0
    %v374 = vadd.f32 %v210, %v373
    %v375 = vpop.f32.mrb[0].mxu0
    %376 = vmatprep.mubr.bf16.mxu0 0
    %377 = vmatmul.mubr.bf16.gmra.mrb[0].mxu0 %v313
    %v378 = vpop.f32.mrb[0].mxu0
    %v379 = vadd.f32 %v215, %v378
    %v380 = vpop.f32.mrb[0].mxu0
    %v381 = vpop.f32.mrb[0].mxu0
    %v382 = vadd.f32 %v218, %v381
    %v383 = vpop.f32.mrb[0].mxu0
    %384 = vmatprep.mubr.bf16.mxu0 0
    %385 = vmatmul.mubr.bf16.gmra.mrb[0].mxu0 %v316
    %v386 = vpop.f32.mrb[0].mxu0
    %v387 = vadd.f32 %v223, %v386
    %v388 = vpop.f32.mrb[0].mxu0
    %v389 = vpop.f32.mrb[0].mxu0
    %v390 = vadd.f32 %v226, %v389
    %v391 = vpop.f32.mrb[0].mxu0
    %392 = vmatprep.mubr.bf16.mxu0 0
    %393 = vmatmul.mubr.bf16.gmra.mrb[0].mxu0 %v319
    %v394 = vpop.f32.mrb[0].mxu0
    %v395 = vadd.f32 %v231, %v394
    %v396 = vpop.f32.mrb[0].mxu0
    %v397 = vpop.f32.mrb[0].mxu0
    %v398 = vadd.f32 %v234, %v397
    %v399 = vpop.f32.mrb[0].mxu0
    %400 = vmatprep.mubr.bf16.mxu0 0
    %401 = vmatmul.mubr.bf16.gmra.mrb[0].mxu0 %v322
    %v402 = vpop.f32.mrb[0].mxu0
    %v403 = vadd.f32 %v239, %v402
    %v404 = vpop.f32.mrb[0].mxu0
    %v405 = vpop.f32.mrb[0].mxu0
    %v406 = vadd.f32 %v242, %v405
    %v407 = vpop.f32.mrb[0].mxu0
    %408 = vmatprep.mubr.bf16.mxu0 0
    %409 = vmatmul.mubr.bf16.gmra.mrb[0].mxu0 %v325
    %v410 = vpop.f32.mrb[0].mxu0
    %v411 = vadd.f32 %v247, %v410
    %v412 = vpop.f32.mrb[0].mxu0
    %v413 = vpop.f32.mrb[0].mxu0
    %v414 = vadd.f32 %v250, %v413
    %v415 = vpop.f32.mrb[0].mxu0
    %416 = vmatprep.mubr.bf16.mxu0 0
    %417 = vmatmul.mubr.bf16.gmra.mrb[0].mxu0 %v328
    %v418 = vpop.f32.mrb[0].mxu0
    %v419 = vadd.f32 %v255, %v418
    %v420 = vpop.f32.mrb[0].mxu0
    %v421 = vpop.f32.mrb[0].mxu0
    %v422 = vadd.f32 %v258, %v421
    %v423 = vpop.f32.mrb[0].mxu0
    %424 = vmatprep.mubr.bf16.mxu0 0
    %425 = vmatmul.mubr.bf16.gmra.mrb[0].mxu0 %v331
    %v426 = vpop.f32.mrb[0].mxu0
    %v427 = vadd.f32 %v263, %v426
    %v428 = vpop.f32.mrb[0].mxu0
    %v429 = vpop.f32.mrb[0].mxu0
    %v430 = vadd.f32 %v266, %v429
    %v431 = vpop.f32.mrb[0].mxu0
    %432 = vdwg.mxu0
    %v433 = vld [vmem:[#allocation8] sm:$0x1]
    %v435 = vlaneseq
    %v436 = vshrl.u32 %v435, 7
    %v437 = vsub.s32 0, %v436
    %v438 = vrot.slane %v433, %v437
    %v440 = vadd.f32 %v371, %v438
    %v441 = vadd.f32 %v374, %v438
    %v442 = vadd.f32 %v379, %v438
    %v443 = vadd.f32 %v382, %v438
    %v444 = vadd.f32 %v387, %v438
    %v445 = vadd.f32 %v390, %v438
    %v446 = vadd.f32 %v395, %v438
    %v447 = vadd.f32 %v398, %v438
    %v448 = vadd.f32 %v403, %v438
    %v449 = vadd.f32 %v406, %v438
    %v450 = vadd.f32 %v411, %v438
    %v451 = vadd.f32 %v414, %v438
    %v452 = vadd.f32 %v419, %v438
    %v453 = vadd.f32 %v422, %v438
    %v454 = vadd.f32 %v427, %v438
    %v455 = vadd.f32 %v430, %v438
    %v456 = vmax.f32 %v440, 0.0
    %v457 = vmax.f32 %v441, 0.0
    %v458 = vmax.f32 %v442, 0.0
    %v459 = vmax.f32 %v443, 0.0
    %v460 = vmax.f32 %v444, 0.0
    %v461 = vmax.f32 %v445, 0.0
    %v462 = vmax.f32 %v446, 0.0
    %v463 = vmax.f32 %v447, 0.0
    %v464 = vmax.f32 %v448, 0.0
    %v465 = vmax.f32 %v449, 0.0
    %v466 = vmax.f32 %v450, 0.0
    %v467 = vmax.f32 %v451, 0.0
    %v468 = vmax.f32 %v452, 0.0
    %v469 = vmax.f32 %v453, 0.0
    %v470 = vmax.f32 %v454, 0.0
    %v471 = vmax.f32 %v455, 0.0
    %v472 = vpack.c.bf16 %v457, %v456
    %v473 = vpack.c.bf16 %v459, %v458
    %v474 = vpack.c.bf16 %v461, %v460
    %v475 = vpack.c.bf16 %v463, %v462
    %v476 = vpack.c.bf16 %v465, %v464
    %v477 = vpack.c.bf16 %v467, %v466
    %v478 = vpack.c.bf16 %v469, %v468
    %v479 = vpack.c.bf16 %v471, %v470
    %v488 = vunpack.c.l.b16 %v472
    %v489 = vunpack.c.h.b16 %v472
    %v490 = vunpack.c.l.b16 %v473
    %v491 = vunpack.c.h.b16 %v473
    %v492 = vunpack.c.l.b16 %v474
    %v493 = vunpack.c.h.b16 %v474
    %v494 = vunpack.c.l.b16 %v475
    %v495 = vunpack.c.h.b16 %v475
    %v496 = vunpack.c.l.b16 %v476
    %v497 = vunpack.c.h.b16 %v476
    %v498 = vunpack.c.l.b16 %v477
    %v499 = vunpack.c.h.b16 %v477
    %v500 = vunpack.c.l.b16 %v478
    %v501 = vunpack.c.h.b16 %v478
    %v502 = vunpack.c.l.b16 %v479
    %v503 = vunpack.c.h.b16 %v479
    %v504 = vpack.c.b16 %v488, %v488
    %v505 = vpack.c.b16 %v489, %v489
    %v506 = vpack.c.b16 %v490, %v490
    %v507 = vpack.c.b16 %v491, %v491
    %v508 = vpack.c.b16 %v492, %v492
    %v509 = vpack.c.b16 %v493, %v493
    %v510 = vpack.c.b16 %v494, %v494
    %v511 = vpack.c.b16 %v495, %v495
    %v512 = vpack.c.b16 %v496, %v496
    %v513 = vpack.c.b16 %v497, %v497
    %v514 = vpack.c.b16 %v498, %v498
    %v515 = vpack.c.b16 %v499, %v499
    %v516 = vpack.c.b16 %v500, %v500
    %v517 = vpack.c.b16 %v501, %v501
    %v518 = vpack.c.b16 %v502, %v502
    %v519 = vpack.c.b16 %v503, %v503
    %vm536 = vcmask 125952
    %537 = vst.msk [vmem:[#allocation10] sm:$0xf] %vm536, %v504
    %538 = vst.msk [vmem:[#allocation10 + $0x4] sm:$0xf] %vm536, %v505
    %539 = vst.msk [vmem:[#allocation10 + $0x8] sm:$0xf] %vm536, %v506
    %540 = vst.msk [vmem:[#allocation10 + $0xc] sm:$0xf] %vm536, %v507
    %541 = vst.msk [vmem:[#allocation10 + $0x10] sm:$0xf] %vm536, %v508
    %542 = vst.msk [vmem:[#allocation10 + $0x14] sm:$0xf] %vm536, %v509
    %543 = vst.msk [vmem:[#allocation10 + $0x18] sm:$0xf] %vm536, %v510
    %544 = vst.msk [vmem:[#allocation10 + $0x1c] sm:$0xf] %vm536, %v511
    %545 = vst.msk [vmem:[#allocation10 + $0x20] sm:$0xf] %vm536, %v512
    %546 = vst.msk [vmem:[#allocation10 + $0x24] sm:$0xf] %vm536, %v513
    %547 = vst.msk [vmem:[#allocation10 + $0x28] sm:$0xf] %vm536, %v514
    %548 = vst.msk [vmem:[#allocation10 + $0x2c] sm:$0xf] %vm536, %v515
    %549 = vst.msk [vmem:[#allocation10 + $0x30] sm:$0xf] %vm536, %v516
    %550 = vst.msk [vmem:[#allocation10 + $0x34] sm:$0xf] %vm536, %v517
    %551 = vst.msk [vmem:[#allocation10 + $0x38] sm:$0xf] %vm536, %v518
    %552 = vst.msk [vmem:[#allocation10 + $0x3c] sm:$0xf] %vm536, %v519
    // Predicated region
    $region34: #{_lambda_.6} parent=1 // pred_check
      _
    $region35: #{_lambda_.6} parent=1 // pred_check_branch
      %554 = sbr.rel (0) target = $region37
    $region36: #{_lambda_.6} parent=1 // pred_region
      %s556 = ssub.s32 1024, 1024
      %557 = vsyncadd [#allocation4], %s556
      %s558 = sshll.u32 [#allocation10], 4
      %s559 = int_to_ptr.vmem [resolvable:$true] %s558
      %564 = dma.vmem_to_hbm [thread:$0]  %s559, 1024, %s4, [#allocation4], 64, 64, 4
    $region37: #{_lambda_.6} parent=1 // pred_fallthru
      _
    // Predicated region
    $region38: #{_lambda_.6} parent=1 // pred_check
      _
    $region39: #{_lambda_.6} parent=1 // pred_check_branch
      %566 = sbr.rel (0) target = $region41
    $region40: #{_lambda_.6} parent=1 // pred_region
      %567 = dma.done [#allocation4], 1024
    $region41: #{_lambda_.6} parent=1 // pred_fallthru
      _
    %568 = vsyncpa [#allocation3], 1
    %569 = vsyncpa [#allocation6], 1
    %570 = vsyncpa [#allocation9], 1
    %571 = vsyncpa [#allocation4], 1

// kernel: _lambda_.10
$region0: #{_lambda_.10}
  #allocation0 [shape = 'u32[]', space=smem, size = 0x4, offset = 0x4, fixed_abs, tag = 'smem constant byte address 0x4 - core index']
  #allocation1 [shape = 'u32[144,128]{1,0:T(1,128)}', space=vmem, size = 0x12000, scoped, tag = 'internal scratch']
  %s0 = inlined_call_operand.hbm [shape: bf16[2,8,4,4], index: 0, kind: input, shape index: {}]
  %s1 = inlined_call_operand.hbm [shape: bf16[16,4], index: 1, kind: input, shape index: {}]
  %s2 = inlined_call_operand.hbm [shape: bf16[4,16], index: 2, kind: input, shape index: {}]
  %s3 = inlined_call_operand.hbm [shape: bf16[2,8,16,16], index: 3, kind: output, shape index: {}]
  %s4 = sld [smem:[#allocation0]]
  $region57: #{_lambda_.10} parent=0
    _
  %s6 = ssub.s32 1, %s4
  %s7 = scalar_select 0, %s6, %s4
  $region1: #{_lambda_.10} parent=0
    #allocation2 [shape = 'u8[8192]{0}', space=vmem, size = 0x2000, scoped, tag = 'input window, operand 0']
    #allocation3 [shape = 's32[2]{0}', space=sflag, size = 0x8, scoped, tag = 'scoped memory for _lambda_.10']
    #allocation4 [shape = 's32[2]{0}', space=sflag, size = 0x8, scoped, tag = 'scoped memory for _lambda_.10']
    #allocation5 [shape = 'u8[4096]{0}', space=vmem, size = 0x1000, scoped, tag = 'input window, operand 1']
    #allocation6 [shape = 's32[2]{0}', space=sflag, size = 0x8, scoped, tag = 'scoped memory for _lambda_.10']
    #allocation7 [shape = 'u8[1024]{0}', space=vmem, size = 0x400, scoped, tag = 'input window, operand 2, single buffered']
    #allocation8 [shape = 'u8[16384]{0}', space=vmem, size = 0x4000, scoped, tag = 'output window, operand 0']
    %8 = vsyncpa [#allocation3], 0
    %s9 = scalar_lea.sflag [#allocation3], 1
    %10 = vsyncpa %s9, 0
    %11 = vsyncpa [#allocation6], 0
    %s12 = scalar_lea.sflag [#allocation6], 1
    %13 = vsyncpa %s12, 0
    %14 = vsyncpa [#allocation4], 0
    %s15 = scalar_lea.sflag [#allocation4], 1
    %16 = vsyncpa %s15, 0
    loop: start=0, step=1, limit=10
    $region2: #{_lambda_.10} parent=1 // loop_pre_header
      _
    $region3: #{_lambda_.10} parent=1 // loop_header
      %s18 = sphi 0, %s22
      %p19 = scmp.ge.s32.totalorder %s18, 10
      %s25 = sphi 0, %s44
      %s26 = sphi 0, %s40
      %s27 = sphi 0, %s36
      %s28 = sphi 0, %s25
      %s29 = sphi 0, %s26
      %s30 = sphi 0, %s27
      %s31 = sphi 0, %s28
      %s32 = sphi 0, %s29
      %s33 = sphi 0, %s30
      %s49 = sphi 0, %s51
      %s52 = sphi 0, %s49
      %s53 = sphi 0, %s52
      %s69 = sphi 0, %s53
      %s75 = sphi 0, %s77
      %s78 = sphi 0, %s75
      %s79 = sphi 0, %s78
      %s95 = sphi 0, %s79
      %s99 = sphi 0, %s99
      %s101 = sphi 0, %s99
      %s102 = sphi 0, %s101
      %s116 = sphi 0, %s102
      %s126 = sphi 0, %s128
      %s129 = sphi 0, %s126
      %s130 = sphi 0, %s129
      %s146 = sphi 0, %s130
    $region4: #{_lambda_.10} parent=1 // loop_header_branch
      %21 = sbr.rel (%p19) target = $region8
    $region5: #{_lambda_.10} parent=1 // loop_body
      %s23 = ssub.s32 %s18, 1
      %s24 = ssub.s32 %s18, 2
      %s34 = sadd.s32 1, %s27
      %p35 = scmp.ge.s32.totalorder %s34, 2
      %s36 = scalar_select %p35, 0, %s34
      %s37 = sadd.s32 1, %s26
      %s38 = scalar_select %p35, %s37, %s26
      %p39 = scmp.ge.s32.totalorder %s38, 2
      %s40 = scalar_select %p39, 0, %s38
      %s41 = sadd.s32 1, %s25
      %s42 = scalar_select %p39, %s41, %s25
      %p43 = scmp.ge.s32.totalorder %s42, 2
      %s44 = scalar_select %p43, 0, %s42
      %s45 = ssub.s32 %s25, %s44
      %s46 = ssub.s32 %s26, %s40
      %s47 = sor.u32 %s45, %s46
      %p48 = scmp.eq.s32.totalorder %s47, 0
      %s50 = sadd.s32 %s49, 1
      %s51 = scalar_select %p48, %s49, %s50
      %p54 = pneg %p48
      %p55 = scmp.eq.s32.totalorder %s18, 7
      %p56 = por %p54, %p55
      %p57 = scmp.ne.s32.totalorder %s49, %s52
      %p58 = scmp.eq.s32.totalorder %s18, 0
      %p59 = por %p57, %p58
      %p60 = scmp.ne.s32.totalorder %s49, %s52
      %p61 = scmp.eq.s32.totalorder %s23, 7
      %p62 = por %p60, %p61
      %p63 = scmp.ne.s32.totalorder %s52, %s53
      %p64 = scmp.eq.s32.totalorder %s23, 0
      %p65 = por %p63, %p64
      %p66 = scmp.ne.s32.totalorder %s52, %s53
      %p67 = scmp.eq.s32.totalorder %s24, 7
      %p68 = por %p66, %p67
      %p70 = scmp.ne.s32.totalorder %s53, %s69
      %p71 = scmp.eq.s32.totalorder %s24, 0
      %p72 = por %p70, %p71
      %s73 = ssub.s32 %s27, %s36
      %p74 = scmp.eq.s32.totalorder %s73, 0
      %s76 = sadd.s32 %s75, 1
      %s77 = scalar_select %p74, %s75, %s76
      %p80 = pneg %p74
      %p81 = scmp.eq.s32.totalorder %s18, 7
      %p82 = por %p80, %p81
      %p83 = scmp.ne.s32.totalorder %s75, %s78
      %p84 = scmp.eq.s32.totalorder %s18, 0
      %p85 = por %p83, %p84
      %p86 = scmp.ne.s32.totalorder %s75, %s78
      %p87 = scmp.eq.s32.totalorder %s23, 7
      %p88 = por %p86, %p87
      %p89 = scmp.ne.s32.totalorder %s78, %s79
      %p90 = scmp.eq.s32.totalorder %s23, 0
      %p91 = por %p89, %p90
      %p92 = scmp.ne.s32.totalorder %s78, %s79
      %p93 = scmp.eq.s32.totalorder %s24, 7
      %p94 = por %p92, %p93
      %p96 = scmp.ne.s32.totalorder %s79, %s95
      %p97 = scmp.eq.s32.totalorder %s24, 0
      %p98 = por %p96, %p97
      %s100 = sadd.s32 %s99, 1
      %p103 = scmp.eq.s32.totalorder %s18, 7
      %p104 = scmp.ne.s32.totalorder %s99, %s101
      %p105 = scmp.eq.s32.totalorder %s18, 0
      %p106 = por %p104, %p105
      %p107 = scmp.ne.s32.totalorder %s99, %s101
      %p108 = scmp.eq.s32.totalorder %s23, 7
      %p109 = por %p107, %p108
      %p110 = scmp.ne.s32.totalorder %s101, %s102
      %p111 = scmp.eq.s32.totalorder %s23, 0
      %p112 = por %p110, %p111
      %p113 = scmp.ne.s32.totalorder %s101, %s102
      %p114 = scmp.eq.s32.totalorder %s24, 7
      %p115 = por %p113, %p114
      %p117 = scmp.ne.s32.totalorder %s102, %s116
      %p118 = scmp.eq.s32.totalorder %s24, 0
      %p119 = por %p117, %p118
      %s120 = ssub.s32 %s25, %s44
      %s121 = ssub.s32 %s26, %s40
      %s122 = sor.u32 %s120, %s121
      %s123 = ssub.s32 %s27, %s36
      %s124 = sor.u32 %s122, %s123
      %p125 = scmp.eq.s32.totalorder %s124, 0
      %s127 = sadd.s32 %s126, 1
      %s128 = scalar_select %p125, %s126, %s127
      %p131 = pneg %p125
      %p132 = scmp.eq.s32.totalorder %s18, 7
      %p133 = por %p131, %p132
      %p134 = scmp.ne.s32.totalorder %s126, %s129
      %p135 = scmp.eq.s32.totalorder %s18, 0
      %p136 = por %p134, %p135
      %p137 = scmp.ne.s32.totalorder %s126, %s129
      %p138 = scmp.eq.s32.totalorder %s23, 7
      %p139 = por %p137, %p138
      %p140 = scmp.ne.s32.totalorder %s129, %s130
      %p141 = scmp.eq.s32.totalorder %s23, 0
      %p142 = por %p140, %p141
      %p143 = scmp.ne.s32.totalorder %s129, %s130
      %p144 = scmp.eq.s32.totalorder %s24, 7
      %p145 = por %p143, %p144
      %p147 = scmp.ne.s32.totalorder %s130, %s146
      %p148 = scmp.eq.s32.totalorder %s24, 0
      %p149 = por %p147, %p148
      %p150 = scmp.le.s32.totalorder 1, %s18
      %p151 = scmp.lt.s32.totalorder %s18, 9
      %p152 = pnand %p150, %p151
      %p153 = pneg %p152
      // Predicated region
      $region9: #{_lambda_.10} parent=5 // pred_check
        _
      $region10: #{_lambda_.10} parent=5 // pred_check_branch
        %155 = sbr.rel (%p152) target = $region12
      $region11: #{_lambda_.10} parent=5 // pred_region
        %s156 = ssub.s32 %s18, 1
        // Predicated region
        $region13: #{_lambda_.10} parent=11 // pred_check
          %p157 = pneg %p112
        $region14: #{_lambda_.10} parent=11 // pred_check_branch
          %159 = sbr.rel (%p157) target = $region16
        $region15: #{_lambda_.10} parent=11 // pred_region
          %s161 = ssub.s32 32, 32
          %162 = vsyncadd [#allocation6], %s161
          %s164 = sshll.u32 [#allocation7], 4
          %s165 = int_to_ptr.vmem [resolvable:$true] %s164
          %167 = dma.hbm_to_vmem [thread:$0]  %s2, 32, %s165, [#allocation6]
        $region16: #{_lambda_.10} parent=11 // pred_fallthru
          _
      $region12: #{_lambda_.10} parent=5 // pred_fallthru
        _
      %p168 = scmp.lt.s32.totalorder %s18, 8
      // Predicated region
      $region17: #{_lambda_.10} parent=5 // pred_check
        %p169 = pneg %p168
      $region18: #{_lambda_.10} parent=5 // pred_check_branch
        %171 = sbr.rel (%p169) target = $region20
      $region19: #{_lambda_.10} parent=5 // pred_region
        // Predicated region
        $region21: #{_lambda_.10} parent=19 // pred_check
          %p172 = pneg %p59
        $region22: #{_lambda_.10} parent=19 // pred_check_branch
          %174 = sbr.rel (%p172) target = $region24
        $region23: #{_lambda_.10} parent=19 // pred_region
          %s175 = sand.u32 %s49, 1
          %s176 = scalar_lea.sflag [#allocation3], %s175
          %s177 = sand.u32 %s49, 1
          %s178 = smul.addr %s177, 8
          %s179 = scalar_lea.vmem [#allocation2], %s178
          %s180 = smul.u32 4, %s26
          %s182 = ssub.s32 128, 128
          %183 = vsyncadd %s176, %s182
          %s184 = smul.addr %s25, 8
          %s185 = sadd.s32 %s180, %s184
          %s186 = smul.addr %s185, 32
          %s187 = scalar_lea.hbm %s0, %s186
          %s188 = sshll.u32 %s179, 4
          %s189 = int_to_ptr.vmem [resolvable:$true] %s188
          %194 = dma.hbm_to_vmem [thread:$0]  %s187, 128, %s189, %s176, 32, 32, 2
        $region24: #{_lambda_.10} parent=19 // pred_fallthru
          _
        // Predicated region
        $region25: #{_lambda_.10} parent=19 // pred_check
          %p195 = pneg %p85
        $region26: #{_lambda_.10} parent=19 // pred_check_branch
          %197 = sbr.rel (%p195) target = $region28
        $region27: #{_lambda_.10} parent=19 // pred_region
          %s198 = sand.u32 %s18, 1
          %s199 = scalar_lea.sflag [#allocation6], %s198
          %s200 = sand.u32 %s75, 1
          %s201 = smul.addr %s200, 4
          %s202 = scalar_lea.vmem [#allocation5], %s201
          %s204 = ssub.s32 64, 64
          %205 = vsyncadd %s199, %s204
          %s206 = smul.addr %s27, 64
          %s207 = scalar_lea.hbm %s1, %s206
          %s209 = sshll.u32 %s202, 4
          %s210 = int_to_ptr.vmem [resolvable:$true] %s209
          %212 = dma.hbm_to_vmem [thread:$0]  %s207, 64, %s210, %s199
        $region28: #{_lambda_.10} parent=19 // pred_fallthru
          _
      $region20: #{_lambda_.10} parent=5 // pred_fallthru
        _
      %p213 = scmp.le.s32.totalorder 1, %s18
      %p214 = scmp.lt.s32.totalorder %s18, 9
      %p215 = pnand %p213, %p214
      %p216 = pneg %p215
      // Predicated region
      $region29: #{_lambda_.10} parent=5 // pred_check
        _
      $region30: #{_lambda_.10} parent=5 // pred_check_branch
        %218 = sbr.rel (%p215) target = $region32
      $region31: #{_lambda_.10} parent=5 // pred_region
        %s219 = ssub.s32 %s18, 1
        %s220 = sand.u32 %s52, 1
        %s221 = scalar_lea.sflag [#allocation3], %s220
        %s222 = sand.u32 %s52, 1
        %s223 = smul.addr %s222, 8
        %s224 = scalar_lea.vmem [#allocation2], %s223
        // Predicated region
        $region33: #{_lambda_.10} parent=31 // pred_check
          %p225 = pneg %p65
        $region34: #{_lambda_.10} parent=31 // pred_check_branch
          %227 = sbr.rel (%p225) target = $region36
        $region35: #{_lambda_.10} parent=31 // pred_region
          %228 = dma.done %s221, 128
        $region36: #{_lambda_.10} parent=31 // pred_fallthru
          _
        %s229 = sand.u32 %s23, 1
        %s230 = scalar_lea.sflag [#allocation6], %s229
        %s231 = sand.u32 %s78, 1
        %s232 = smul.addr %s231, 4
        %s233 = scalar_lea.vmem [#allocation5], %s232
        // Predicated region
        $region37: #{_lambda_.10} parent=31 // pred_check
          %p234 = pneg %p91
        $region38: #{_lambda_.10} parent=31 // pred_check_branch
          %236 = sbr.rel (%p234) target = $region40
        $region39: #{_lambda_.10} parent=31 // pred_region
          %237 = dma.done %s230, 64
        $region40: #{_lambda_.10} parent=31 // pred_fallthru
          _
        // Predicated region
        $region41: #{_lambda_.10} parent=31 // pred_check
          %p238 = pneg %p112
        $region42: #{_lambda_.10} parent=31 // pred_check_branch
          %240 = sbr.rel (%p238) target = $region44
        $region43: #{_lambda_.10} parent=31 // pred_region
          %241 = dma.done [#allocation6], 32
        $region44: #{_lambda_.10} parent=31 // pred_fallthru
          _
        %s242 = sand.u32 %s52, 1
        %s243 = scalar_lea.sflag [#allocation3], %s242
        %s244 = sand.u32 %s52, 1
        %s245 = smul.addr %s244, 8
        %s246 = scalar_lea.vmem [#allocation2], %s245
        %p247 = pneg %p65
        %p248 = pneg %p62
        %s249 = sand.u32 %s23, 1
        %s250 = scalar_lea.sflag [#allocation6], %s249
        %s251 = sand.u32 %s78, 1
        %s252 = smul.addr %s251, 4
        %s253 = scalar_lea.vmem [#allocation5], %s252
        %p254 = pneg %p91
        %p255 = pneg %p88
        %p256 = pneg %p112
        %p257 = pneg %p109
        %p258 = pneg %p142
        %p259 = pneg %p139
        %s260 = sand.u32 %s129, 1
        %s261 = scalar_lea.sflag [#allocation4], %s260
        %s262 = sand.u32 %s129, 1
        %s263 = smul.addr %s262, 16
        %s264 = scalar_lea.vmem [#allocation8], %s263
        %s265 = smul.u32 4, %s29
        %s266 = smul.u32 4, %s29
        %v268 = vld [vmem:[%s233] sm:$0xf]
        %v269 = vld [vmem:[#allocation7] sm:$0x3]
        %v270 = vld [vmem:[%s224] sm:$0x3]
        %vm271 = vcmask 31744
        %v273 = vsel %vm271, %v270, 0
        %vm275 = vcmask 1041408
        %v277 = vsel %vm275, %v269, 0
        %279 = vmatprep.subr.bf16.mxu0 0
        %280 = vmatpush1.bf16.msra.mxu0 %v277
        %281 = vmatprep.subr.bf16.mxu0 0
        %282 = vmatpush1.bf16.msra.mxu0 0
        %283 = vmatprep.subr.bf16.mxu0 0
        %284 = vmatpush1.bf16.msra.mxu0 0
        %285 = vmatprep.subr.bf16.mxu0 0
        %286 = vmatpush1.bf16.msra.mxu0 0
        %287 = vmatprep.subr.bf16.mxu0 0
        %288 = vmatpush1.bf16.msra.mxu0 0
        %289 = vmatprep.subr.bf16.mxu0 0
        %290 = vmatpush1.bf16.msra.mxu0 0
        %291 = vmatprep.subr.bf16.mxu0 0
        %292 = vmatpush1.bf16.msra.mxu0 0
        %293 = vmatprep.subr.bf16.mxu0 0
        %294 = vmatpush1.bf16.msra.mxu0 0
        %295 = vmatprep.subr.bf16.mxu0 0
        %296 = vmatpush1.bf16.msra.mxu0 0
        %297 = vmatprep.subr.bf16.mxu0 0
        %298 = vmatpush1.bf16.msra.mxu0 0
        %299 = vmatprep.subr.bf16.mxu0 0
        %300 = vmatpush1.bf16.msra.mxu0 0
        %301 = vmatprep.subr.bf16.mxu0 0
        %302 = vmatpush1.bf16.msra.mxu0 0
        %303 = vmatprep.subr.bf16.mxu0 0
        %304 = vmatpush1.bf16.msra.mxu0 0
        %305 = vmatprep.subr.bf16.mxu0 0
        %306 = vmatpush1.bf16.msra.mxu0 0
        %307 = vmatprep.subr.bf16.mxu0 0
        %308 = vmatpush1.bf16.msra.mxu0 0
        %309 = vmatprep.subr.bf16.mxu0 0
        %310 = vmatpush1.bf16.msra.mxu0 0
        %311 = vmatprep.mubr.bf16.mxu0 0
        %312 = vmatmul.mubr.bf16.gmra.mrb[0].mxu0 %v273
        %v313 = vpop.f32.mrb[0].mxu0
        %v314 = vadd.f32 0.0, %v313
        %v315 = vpop.f32.mrb[0].mxu0
        %v316 = vpop.f32.mrb[0].mxu0
        %v317 = vpop.f32.mrb[0].mxu0
        %318 = vdwg.mxu0
        %v319 = vpack.c.bf16 %v314, %v314
        %v321 = vsel %vm271, %v268, 0
        %v324 = vsel %vm275, %v319, 0
        %326 = vmatprep.subr.bf16.mxu0 0
        %327 = vmatpush1.bf16.msra.mxu0 %v324
        %328 = vmatprep.subr.bf16.mxu0 0
        %329 = vmatpush1.bf16.msra.mxu0 0
        %330 = vmatprep.subr.bf16.mxu0 0
        %331 = vmatpush1.bf16.msra.mxu0 0
        %332 = vmatprep.subr.bf16.mxu0 0
        %333 = vmatpush1.bf16.msra.mxu0 0
        %334 = vmatprep.subr.bf16.mxu0 0
        %335 = vmatpush1.bf16.msra.mxu0 0
        %336 = vmatprep.subr.bf16.mxu0 0
        %337 = vmatpush1.bf16.msra.mxu0 0
        %338 = vmatprep.subr.bf16.mxu0 0
        %339 = vmatpush1.bf16.msra.mxu0 0
        %340 = vmatprep.subr.bf16.mxu0 0
        %341 = vmatpush1.bf16.msra.mxu0 0
        %342 = vmatprep.subr.bf16.mxu0 0
        %343 = vmatpush1.bf16.msra.mxu0 0
        %344 = vmatprep.subr.bf16.mxu0 0
        %345 = vmatpush1.bf16.msra.mxu0 0
        %346 = vmatprep.subr.bf16.mxu0 0
        %347 = vmatpush1.bf16.msra.mxu0 0
        %348 = vmatprep.subr.bf16.mxu0 0
        %349 = vmatpush1.bf16.msra.mxu0 0
        %350 = vmatprep.subr.bf16.mxu0 0
        %351 = vmatpush1.bf16.msra.mxu0 0
        %352 = vmatprep.subr.bf16.mxu0 0
        %353 = vmatpush1.bf16.msra.mxu0 0
        %354 = vmatprep.subr.bf16.mxu0 0
        %355 = vmatpush1.bf16.msra.mxu0 0
        %356 = vmatprep.subr.bf16.mxu0 0
        %357 = vmatpush1.bf16.msra.mxu0 0
        %358 = vmatprep.mubr.bf16.mxu0 0
        %359 = vmatmul.mubr.bf16.gmra.mrb[0].mxu0 %v321
        %v360 = vpop.f32.mrb[0].mxu0
        %v361 = vadd.f32 0.0, %v360
        %v362 = vpop.f32.mrb[0].mxu0
        %v363 = vpop.f32.mrb[0].mxu0
        %v364 = vpop.f32.mrb[0].mxu0
        %365 = vdwg.mxu0
        %v366 = vpack.c.bf16 %v361, %v361
        %vm367 = vcmask 125952
        %368 = vst.msk [vmem:[%s264] sm:$0xf] %vm367, %v366
        %s369 = scalar_lea.vmem %s224, 2 [#allocation2]
        %v370 = vld [vmem:[%s369] sm:$0x3]
        %v372 = vsel %vm271, %v370, 0
        %374 = vmatprep.subr.bf16.mxu0 0
        %375 = vmatpush1.bf16.msra.mxu0 %v277
        %376 = vmatprep.subr.bf16.mxu0 0
        %377 = vmatpush1.bf16.msra.mxu0 0
        %378 = vmatprep.subr.bf16.mxu0 0
        %379 = vmatpush1.bf16.msra.mxu0 0
        %380 = vmatprep.subr.bf16.mxu0 0
        %381 = vmatpush1.bf16.msra.mxu0 0
        %382 = vmatprep.subr.bf16.mxu0 0
        %383 = vmatpush1.bf16.msra.mxu0 0
        %384 = vmatprep.subr.bf16.mxu0 0
        %385 = vmatpush1.bf16.msra.mxu0 0
        %386 = vmatprep.subr.bf16.mxu0 0
        %387 = vmatpush1.bf16.msra.mxu0 0
        %388 = vmatprep.subr.bf16.mxu0 0
        %389 = vmatpush1.bf16.msra.mxu0 0
        %390 = vmatprep.subr.bf16.mxu0 0
        %391 = vmatpush1.bf16.msra.mxu0 0
        %392 = vmatprep.subr.bf16.mxu0 0
        %393 = vmatpush1.bf16.msra.mxu0 0
        %394 = vmatprep.subr.bf16.mxu0 0
        %395 = vmatpush1.bf16.msra.mxu0 0
        %396 = vmatprep.subr.bf16.mxu0 0
        %397 = vmatpush1.bf16.msra.mxu0 0
        %398 = vmatprep.subr.bf16.mxu0 0
        %399 = vmatpush1.bf16.msra.mxu0 0
        %400 = vmatprep.subr.bf16.mxu0 0
        %401 = vmatpush1.bf16.msra.mxu0 0
        %402 = vmatprep.subr.bf16.mxu0 0
        %403 = vmatpush1.bf16.msra.mxu0 0
        %404 = vmatprep.subr.bf16.mxu0 0
        %405 = vmatpush1.bf16.msra.mxu0 0
        %406 = vmatprep.mubr.bf16.mxu0 0
        %407 = vmatmul.mubr.bf16.gmra.mrb[0].mxu0 %v372
        %v408 = vpop.f32.mrb[0].mxu0
        %v409 = vadd.f32 0.0, %v408
        %v410 = vpop.f32.mrb[0].mxu0
        %v411 = vpop.f32.mrb[0].mxu0
        %v412 = vpop.f32.mrb[0].mxu0
        %413 = vdwg.mxu0
        %v414 = vpack.c.bf16 %v409, %v409
        %v416 = vsel %vm275, %v414, 0
        %418 = vmatprep.subr.bf16.mxu0 0
        %419 = vmatpush1.bf16.msra.mxu0 %v416
        %420 = vmatprep.subr.bf16.mxu0 0
        %421 = vmatpush1.bf16.msra.mxu0 0
        %422 = vmatprep.subr.bf16.mxu0 0
        %423 = vmatpush1.bf16.msra.mxu0 0
        %424 = vmatprep.subr.bf16.mxu0 0
        %425 = vmatpush1.bf16.msra.mxu0 0
        %426 = vmatprep.subr.bf16.mxu0 0
        %427 = vmatpush1.bf16.msra.mxu0 0
        %428 = vmatprep.subr.bf16.mxu0 0
        %429 = vmatpush1.bf16.msra.mxu0 0
        %430 = vmatprep.subr.bf16.mxu0 0
        %431 = vmatpush1.bf16.msra.mxu0 0
        %432 = vmatprep.subr.bf16.mxu0 0
        %433 = vmatpush1.bf16.msra.mxu0 0
        %434 = vmatprep.subr.bf16.mxu0 0
        %435 = vmatpush1.bf16.msra.mxu0 0
        %436 = vmatprep.subr.bf16.mxu0 0
        %437 = vmatpush1.bf16.msra.mxu0 0
        %438 = vmatprep.subr.bf16.mxu0 0
        %439 = vmatpush1.bf16.msra.mxu0 0
        %440 = vmatprep.subr.bf16.mxu0 0
        %441 = vmatpush1.bf16.msra.mxu0 0
        %442 = vmatprep.subr.bf16.mxu0 0
        %443 = vmatpush1.bf16.msra.mxu0 0
        %444 = vmatprep.subr.bf16.mxu0 0
        %445 = vmatpush1.bf16.msra.mxu0 0
        %446 = vmatprep.subr.bf16.mxu0 0
        %447 = vmatpush1.bf16.msra.mxu0 0
        %448 = vmatprep.subr.bf16.mxu0 0
        %449 = vmatpush1.bf16.msra.mxu0 0
        %450 = vmatprep.mubr.bf16.mxu0 0
        %451 = vmatmul.mubr.bf16.gmra.mrb[0].mxu0 %v321
        %v452 = vpop.f32.mrb[0].mxu0
        %v453 = vadd.f32 0.0, %v452
        %v454 = vpop.f32.mrb[0].mxu0
        %v455 = vpop.f32.mrb[0].mxu0
        %v456 = vpop.f32.mrb[0].mxu0
        %457 = vdwg.mxu0
        %v458 = vpack.c.bf16 %v453, %v453
        %s459 = scalar_lea.vmem %s264, 4 [#allocation8]
        %460 = vst.msk [vmem:[%s459] sm:$0xf] %vm367, %v458
        %s461 = scalar_lea.vmem %s224, 4 [#allocation2]
        %v462 = vld [vmem:[%s461] sm:$0x3]
        %v464 = vsel %vm271, %v462, 0
        %466 = vmatprep.subr.bf16.mxu0 0
        %467 = vmatpush1.bf16.msra.mxu0 %v277
        %468 = vmatprep.subr.bf16.mxu0 0
        %469 = vmatpush1.bf16.msra.mxu0 0
        %470 = vmatprep.subr.bf16.mxu0 0
        %471 = vmatpush1.bf16.msra.mxu0 0
        %472 = vmatprep.subr.bf16.mxu0 0
        %473 = vmatpush1.bf16.msra.mxu0 0
        %474 = vmatprep.subr.bf16.mxu0 0
        %475 = vmatpush1.bf16.msra.mxu0 0
        %476 = vmatprep.subr.bf16.mxu0 0
        %477 = vmatpush1.bf16.msra.mxu0 0
        %478 = vmatprep.subr.bf16.mxu0 0
        %479 = vmatpush1.bf16.msra.mxu0 0
        %480 = vmatprep.subr.bf16.mxu0 0
        %481 = vmatpush1.bf16.msra.mxu0 0
        %482 = vmatprep.subr.bf16.mxu0 0
        %483 = vmatpush1.bf16.msra.mxu0 0
        %484 = vmatprep.subr.bf16.mxu0 0
        %485 = vmatpush1.bf16.msra.mxu0 0
        %486 = vmatprep.subr.bf16.mxu0 0
        %487 = vmatpush1.bf16.msra.mxu0 0
        %488 = vmatprep.subr.bf16.mxu0 0
        %489 = vmatpush1.bf16.msra.mxu0 0
        %490 = vmatprep.subr.bf16.mxu0 0
        %491 = vmatpush1.bf16.msra.mxu0 0
        %492 = vmatprep.subr.bf16.mxu0 0
        %493 = vmatpush1.bf16.msra.mxu0 0
        %494 = vmatprep.subr.bf16.mxu0 0
        %495 = vmatpush1.bf16.msra.mxu0 0
        %496 = vmatprep.subr.bf16.mxu0 0
        %497 = vmatpush1.bf16.msra.mxu0 0
        %498 = vmatprep.mubr.bf16.mxu0 0
        %499 = vmatmul.mubr.bf16.gmra.mrb[0].mxu0 %v464
        %v500 = vpop.f32.mrb[0].mxu0
        %v501 = vadd.f32 0.0, %v500
        %v502 = vpop.f32.mrb[0].mxu0
        %v503 = vpop.f32.mrb[0].mxu0
        %v504 = vpop.f32.mrb[0].mxu0
        %505 = vdwg.mxu0
        %v506 = vpack.c.bf16 %v501, %v501
        %v508 = vsel %vm275, %v506, 0
        %510 = vmatprep.subr.bf16.mxu0 0
        %511 = vmatpush1.bf16.msra.mxu0 %v508
        %512 = vmatprep.subr.bf16.mxu0 0
        %513 = vmatpush1.bf16.msra.mxu0 0
        %514 = vmatprep.subr.bf16.mxu0 0
        %515 = vmatpush1.bf16.msra.mxu0 0
        %516 = vmatprep.subr.bf16.mxu0 0
        %517 = vmatpush1.bf16.msra.mxu0 0
        %518 = vmatprep.subr.bf16.mxu0 0
        %519 = vmatpush1.bf16.msra.mxu0 0
        %520 = vmatprep.subr.bf16.mxu0 0
        %521 = vmatpush1.bf16.msra.mxu0 0
        %522 = vmatprep.subr.bf16.mxu0 0
        %523 = vmatpush1.bf16.msra.mxu0 0
        %524 = vmatprep.subr.bf16.mxu0 0
        %525 = vmatpush1.bf16.msra.mxu0 0
        %526 = vmatprep.subr.bf16.mxu0 0
        %527 = vmatpush1.bf16.msra.mxu0 0
        %528 = vmatprep.subr.bf16.mxu0 0
        %529 = vmatpush1.bf16.msra.mxu0 0
        %530 = vmatprep.subr.bf16.mxu0 0
        %531 = vmatpush1.bf16.msra.mxu0 0
        %532 = vmatprep.subr.bf16.mxu0 0
        %533 = vmatpush1.bf16.msra.mxu0 0
        %534 = vmatprep.subr.bf16.mxu0 0
        %535 = vmatpush1.bf16.msra.mxu0 0
        %536 = vmatprep.subr.bf16.mxu0 0
        %537 = vmatpush1.bf16.msra.mxu0 0
        %538 = vmatprep.subr.bf16.mxu0 0
        %539 = vmatpush1.bf16.msra.mxu0 0
        %540 = vmatprep.subr.bf16.mxu0 0
        %541 = vmatpush1.bf16.msra.mxu0 0
        %542 = vmatprep.mubr.bf16.mxu0 0
        %543 = vmatmul.mubr.bf16.gmra.mrb[0].mxu0 %v321
        %v544 = vpop.f32.mrb[0].mxu0
        %v545 = vadd.f32 0.0, %v544
        %v546 = vpop.f32.mrb[0].mxu0
        %v547 = vpop.f32.mrb[0].mxu0
        %v548 = vpop.f32.mrb[0].mxu0
        %549 = vdwg.mxu0
        %v550 = vpack.c.bf16 %v545, %v545
        %s551 = scalar_lea.vmem %s264, 8 [#allocation8]
        %552 = vst.msk [vmem:[%s551] sm:$0xf] %vm367, %v550
        %s553 = scalar_lea.vmem %s224, 6 [#allocation2]
        %v554 = vld [vmem:[%s553] sm:$0x3]
        %v556 = vsel %vm271, %v554, 0
        %558 = vmatprep.subr.bf16.mxu0 0
        %559 = vmatpush1.bf16.msra.mxu0 %v277
        %560 = vmatprep.subr.bf16.mxu0 0
        %561 = vmatpush1.bf16.msra.mxu0 0
        %562 = vmatprep.subr.bf16.mxu0 0
        %563 = vmatpush1.bf16.msra.mxu0 0
        %564 = vmatprep.subr.bf16.mxu0 0
        %565 = vmatpush1.bf16.msra.mxu0 0
        %566 = vmatprep.subr.bf16.mxu0 0
        %567 = vmatpush1.bf16.msra.mxu0 0
        %568 = vmatprep.subr.bf16.mxu0 0
        %569 = vmatpush1.bf16.msra.mxu0 0
        %570 = vmatprep.subr.bf16.mxu0 0
        %571 = vmatpush1.bf16.msra.mxu0 0
        %572 = vmatprep.subr.bf16.mxu0 0
        %573 = vmatpush1.bf16.msra.mxu0 0
        %574 = vmatprep.subr.bf16.mxu0 0
        %575 = vmatpush1.bf16.msra.mxu0 0
        %576 = vmatprep.subr.bf16.mxu0 0
        %577 = vmatpush1.bf16.msra.mxu0 0
        %578 = vmatprep.subr.bf16.mxu0 0
        %579 = vmatpush1.bf16.msra.mxu0 0
        %580 = vmatprep.subr.bf16.mxu0 0
        %581 = vmatpush1.bf16.msra.mxu0 0
        %582 = vmatprep.subr.bf16.mxu0 0
        %583 = vmatpush1.bf16.msra.mxu0 0
        %584 = vmatprep.subr.bf16.mxu0 0
        %585 = vmatpush1.bf16.msra.mxu0 0
        %586 = vmatprep.subr.bf16.mxu0 0
        %587 = vmatpush1.bf16.msra.mxu0 0
        %588 = vmatprep.subr.bf16.mxu0 0
        %589 = vmatpush1.bf16.msra.mxu0 0
        %590 = vmatprep.mubr.bf16.mxu0 0
        %591 = vmatmul.mubr.bf16.gmra.mrb[0].mxu0 %v556
        %v592 = vpop.f32.mrb[0].mxu0
        %v593 = vadd.f32 0.0, %v592
        %v594 = vpop.f32.mrb[0].mxu0
        %v595 = vpop.f32.mrb[0].mxu0
        %v596 = vpop.f32.mrb[0].mxu0
        %597 = vdwg.mxu0
        %v598 = vpack.c.bf16 %v593, %v593
        %v600 = vsel %vm275, %v598, 0
        %602 = vmatprep.subr.bf16.mxu0 0
        %603 = vmatpush1.bf16.msra.mxu0 %v600
        %604 = vmatprep.subr.bf16.mxu0 0
        %605 = vmatpush1.bf16.msra.mxu0 0
        %606 = vmatprep.subr.bf16.mxu0 0
        %607 = vmatpush1.bf16.msra.mxu0 0
        %608 = vmatprep.subr.bf16.mxu0 0
        %609 = vmatpush1.bf16.msra.mxu0 0
        %610 = vmatprep.subr.bf16.mxu0 0
        %611 = vmatpush1.bf16.msra.mxu0 0
        %612 = vmatprep.subr.bf16.mxu0 0
        %613 = vmatpush1.bf16.msra.mxu0 0
        %614 = vmatprep.subr.bf16.mxu0 0
        %615 = vmatpush1.bf16.msra.mxu0 0
        %616 = vmatprep.subr.bf16.mxu0 0
        %617 = vmatpush1.bf16.msra.mxu0 0
        %618 = vmatprep.subr.bf16.mxu0 0
        %619 = vmatpush1.bf16.msra.mxu0 0
        %620 = vmatprep.subr.bf16.mxu0 0
        %621 = vmatpush1.bf16.msra.mxu0 0
        %622 = vmatprep.subr.bf16.mxu0 0
        %623 = vmatpush1.bf16.msra.mxu0 0
        %624 = vmatprep.subr.bf16.mxu0 0
        %625 = vmatpush1.bf16.msra.mxu0 0
        %626 = vmatprep.subr.bf16.mxu0 0
        %627 = vmatpush1.bf16.msra.mxu0 0
        %628 = vmatprep.subr.bf16.mxu0 0
        %629 = vmatpush1.bf16.msra.mxu0 0
        %630 = vmatprep.subr.bf16.mxu0 0
        %631 = vmatpush1.bf16.msra.mxu0 0
        %632 = vmatprep.subr.bf16.mxu0 0
        %633 = vmatpush1.bf16.msra.mxu0 0
        %634 = vmatprep.mubr.bf16.mxu0 0
        %635 = vmatmul.mubr.bf16.gmra.mrb[0].mxu0 %v321
        %v636 = vpop.f32.mrb[0].mxu0
        %v637 = vadd.f32 0.0, %v636
        %v638 = vpop.f32.mrb[0].mxu0
        %v639 = vpop.f32.mrb[0].mxu0
        %v640 = vpop.f32.mrb[0].mxu0
        %641 = vdwg.mxu0
        %v642 = vpack.c.bf16 %v637, %v637
        %s643 = scalar_lea.vmem %s264, 12 [#allocation8]
        %644 = vst.msk [vmem:[%s643] sm:$0xf] %vm367, %v642
        %s645 = sand.u32 %s129, 1
        %s646 = scalar_lea.sflag [#allocation4], %s645
        %s647 = sand.u32 %s129, 1
        %s648 = smul.addr %s647, 16
        %s649 = scalar_lea.vmem [#allocation8], %s648
        // Predicated region
        $region45: #{_lambda_.10} parent=31 // pred_check
          %p650 = pneg %p139
        $region46: #{_lambda_.10} parent=31 // pred_check_branch
          %652 = sbr.rel (%p650) target = $region48
        $region47: #{_lambda_.10} parent=31 // pred_region
          %s653 = smul.u32 4, %s29
          %s655 = ssub.s32 256, 256
          %656 = vsyncadd %s646, %s655
          %s657 = smul.addr %s653, 2
          %s658 = sadd.s32 %s30, %s657
          %s659 = smul.addr %s28, 16
          %s660 = sadd.s32 %s658, %s659
          %s661 = smul.addr %s660, 64
          %s662 = scalar_lea.hbm %s3, %s661
          %s663 = sshll.u32 %s649, 4
          %s664 = int_to_ptr.vmem [resolvable:$true] %s663
          %669 = dma.vmem_to_hbm [thread:$0]  %s664, 256, %s662, %s646, 64, 128, 4
        $region48: #{_lambda_.10} parent=31 // pred_fallthru
          _
      $region32: #{_lambda_.10} parent=5 // pred_fallthru
        _
      %p670 = scmp.le.s32.totalorder 2, %s18
      // Predicated region
      $region49: #{_lambda_.10} parent=5 // pred_check
        %p671 = pneg %p670
      $region50: #{_lambda_.10} parent=5 // pred_check_branch
        %673 = sbr.rel (%p671) target = $region52
      $region51: #{_lambda_.10} parent=5 // pred_region
        %s674 = ssub.s32 %s18, 2
        // Predicated region
        $region53: #{_lambda_.10} parent=51 // pred_check
          %p675 = pneg %p145
        $region54: #{_lambda_.10} parent=51 // pred_check_branch
          %677 = sbr.rel (%p675) target = $region56
        $region55: #{_lambda_.10} parent=51 // pred_region
          %s678 = sand.u32 %s130, 1
          %s679 = scalar_lea.sflag [#allocation4], %s678
          %s680 = sand.u32 %s130, 1
          %s681 = smul.addr %s680, 16
          %s682 = scalar_lea.vmem [#allocation8], %s681
          %683 = dma.done %s679, 256
        $region56: #{_lambda_.10} parent=51 // pred_fallthru
          _
      $region52: #{_lambda_.10} parent=5 // pred_fallthru
        _
    $region6: #{_lambda_.10} parent=1 // loop_footer
      %s22 = sadd.s32 1, %s18
    $region7: #{_lambda_.10} parent=1 // loop_footer_branch
      %17 = sbr.rel target = $region3
    $region8: #{_lambda_.10} parent=1 // loop_exit
      _
    %684 = vsyncpa [#allocation3], 1
    %s685 = scalar_lea.sflag [#allocation3], 1
    %686 = vsyncpa %s685, 1
    %687 = vsyncpa [#allocation6], 1
    %s688 = scalar_lea.sflag [#allocation6], 1
    %689 = vsyncpa %s688, 1
    %690 = vsyncpa [#allocation4], 1
    %s691 = scalar_lea.sflag [#allocation4], 1
    %692 = vsyncpa %s691, 1

// kernel: _lambda_.9
$region0: #{_lambda_.9}
  #allocation0 [shape = 'u32[]', space=smem, size = 0x4, offset = 0x4, fixed_abs, tag = 'smem constant byte address 0x4 - core index']
  #allocation1 [shape = 'u32[144,128]{1,0:T(1,128)}', space=vmem, size = 0x12000, scoped, tag = 'internal scratch']
  %s0 = inlined_call_operand.hbm [shape: bf16[2,64,16], index: 0, kind: input, shape index: {}]
  %s1 = inlined_call_operand.hbm [shape: bf16[16,16], index: 1, kind: input, shape index: {}]
  %s2 = inlined_call_operand.hbm [shape: f32[1,16], index: 2, kind: input, shape index: {}]
  %s3 = inlined_call_operand.hbm [shape: bf16[16,8], index: 3, kind: input, shape index: {}]
  %s4 = inlined_call_operand.hbm [shape: f32[1,8], index: 4, kind: input, shape index: {}]
  %s5 = inlined_call_operand.hbm [shape: bf16[2,8,64], index: 5, kind: output, shape index: {}]
  %s6 = sld [smem:[#allocation0]]
  $region73: #{_lambda_.9} parent=0
    _
  %s8 = ssub.s32 1, %s6
  %s9 = scalar_select 0, %s8, %s6
  $region1: #{_lambda_.9} parent=0
    #allocation2 [shape = 'u8[32768]{0}', space=vmem, size = 0x8000, scoped, tag = 'input window, operand 0']
    #allocation3 [shape = 's32[2]{0}', space=sflag, size = 0x8, scoped, tag = 'scoped memory for _lambda_.9']
    #allocation4 [shape = 's32[2]{0}', space=sflag, size = 0x8, scoped, tag = 'scoped memory for _lambda_.9']
    #allocation5 [shape = 'u8[4096]{0}', space=vmem, size = 0x1000, scoped, tag = 'input window, operand 1, single buffered']
    #allocation6 [shape = 's32[1]{0}', space=sflag, size = 0x4, scoped, tag = 'scoped memory for _lambda_.9']
    #allocation7 [shape = 'u8[512]{0}', space=vmem, size = 0x400, scoped, tag = 'input window, operand 2, single buffered']
    #allocation8 [shape = 'u8[4096]{0}', space=vmem, size = 0x1000, scoped, tag = 'input window, operand 3, single buffered']
    #allocation9 [shape = 's32[1]{0}', space=sflag, size = 0x4, scoped, tag = 'scoped memory for _lambda_.9']
    #allocation10 [shape = 'u8[512]{0}', space=vmem, size = 0x400, scoped, tag = 'input window, operand 4, single buffered']
    #allocation11 [shape = 'u8[4096]{0}', space=vmem, size = 0x1000, scoped, tag = 'output window, operand 0']
    %10 = vsyncpa [#allocation3], 0
    %s11 = scalar_lea.sflag [#allocation3], 1
    %12 = vsyncpa %s11, 0
    %13 = vsyncpa [#allocation6], 0
    %14 = vsyncpa [#allocation9], 0
    %15 = vsyncpa [#allocation4], 0
    %s16 = scalar_lea.sflag [#allocation4], 1
    %17 = vsyncpa %s16, 0
    loop: start=0, step=1, limit=4
    $region2: #{_lambda_.9} parent=1 // loop_pre_header
      _
    $region3: #{_lambda_.9} parent=1 // loop_header
      %s19 = sphi 0, %s23
      %p20 = scmp.ge.s32.totalorder %s19, 4
      %s26 = sphi 0, %s38
      %s27 = sphi 0, %s34
      %s28 = sphi 0, %s26
      %s29 = sphi 0, %s27
      %s30 = sphi 0, %s28
      %s31 = sphi 0, %s29
      %s43 = sphi 0, %s45
      %s46 = sphi 0, %s43
      %s47 = sphi 0, %s46
      %s63 = sphi 0, %s47
      %s67 = sphi 0, %s67
      %s69 = sphi 0, %s67
      %s70 = sphi 0, %s69
      %s84 = sphi 0, %s70
      %s88 = sphi 0, %s88
      %s90 = sphi 0, %s88
      %s91 = sphi 0, %s90
      %s105 = sphi 0, %s91
      %s109 = sphi 0, %s109
      %s111 = sphi 0, %s109
      %s112 = sphi 0, %s111
      %s126 = sphi 0, %s112
      %s130 = sphi 0, %s130
      %s132 = sphi 0, %s130
      %s133 = sphi 0, %s132
      %s147 = sphi 0, %s133
      %s155 = sphi 0, %s157
      %s158 = sphi 0, %s155
      %s159 = sphi 0, %s158
      %s175 = sphi 0, %s159
    $region4: #{_lambda_.9} parent=1 // loop_header_branch
      %22 = sbr.rel (%p20) target = $region8
    $region5: #{_lambda_.9} parent=1 // loop_body
      %s24 = ssub.s32 %s19, 1
      %s25 = ssub.s32 %s19, 2
      %s32 = sadd.s32 1, %s27
      %p33 = scmp.ge.s32.totalorder %s32, 1
      %s34 = scalar_select %p33, 0, %s32
      %s35 = sadd.s32 1, %s26
      %s36 = scalar_select %p33, %s35, %s26
      %p37 = scmp.ge.s32.totalorder %s36, 2
      %s38 = scalar_select %p37, 0, %s36
      %s39 = ssub.s32 %s26, %s38
      %s40 = ssub.s32 %s27, %s34
      %s41 = sor.u32 %s39, %s40
      %p42 = scmp.eq.s32.totalorder %s41, 0
      %s44 = sadd.s32 %s43, 1
      %s45 = scalar_select %p42, %s43, %s44
      %p48 = pneg %p42
      %p49 = scmp.eq.s32.totalorder %s19, 1
      %p50 = por %p48, %p49
      %p51 = scmp.ne.s32.totalorder %s43, %s46
      %p52 = scmp.eq.s32.totalorder %s19, 0
      %p53 = por %p51, %p52
      %p54 = scmp.ne.s32.totalorder %s43, %s46
      %p55 = scmp.eq.s32.totalorder %s24, 1
      %p56 = por %p54, %p55
      %p57 = scmp.ne.s32.totalorder %s46, %s47
      %p58 = scmp.eq.s32.totalorder %s24, 0
      %p59 = por %p57, %p58
      %p60 = scmp.ne.s32.totalorder %s46, %s47
      %p61 = scmp.eq.s32.totalorder %s25, 1
      %p62 = por %p60, %p61
      %p64 = scmp.ne.s32.totalorder %s47, %s63
      %p65 = scmp.eq.s32.totalorder %s25, 0
      %p66 = por %p64, %p65
      %s68 = sadd.s32 %s67, 1
      %p71 = scmp.eq.s32.totalorder %s19, 1
      %p72 = scmp.ne.s32.totalorder %s67, %s69
      %p73 = scmp.eq.s32.totalorder %s19, 0
      %p74 = por %p72, %p73
      %p75 = scmp.ne.s32.totalorder %s67, %s69
      %p76 = scmp.eq.s32.totalorder %s24, 1
      %p77 = por %p75, %p76
      %p78 = scmp.ne.s32.totalorder %s69, %s70
      %p79 = scmp.eq.s32.totalorder %s24, 0
      %p80 = por %p78, %p79
      %p81 = scmp.ne.s32.totalorder %s69, %s70
      %p82 = scmp.eq.s32.totalorder %s25, 1
      %p83 = por %p81, %p82
      %p85 = scmp.ne.s32.totalorder %s70, %s84
      %p86 = scmp.eq.s32.totalorder %s25, 0
      %p87 = por %p85, %p86
      %s89 = sadd.s32 %s88, 1
      %p92 = scmp.eq.s32.totalorder %s19, 1
      %p93 = scmp.ne.s32.totalorder %s88, %s90
      %p94 = scmp.eq.s32.totalorder %s19, 0
      %p95 = por %p93, %p94
      %p96 = scmp.ne.s32.totalorder %s88, %s90
      %p97 = scmp.eq.s32.totalorder %s24, 1
      %p98 = por %p96, %p97
      %p99 = scmp.ne.s32.totalorder %s90, %s91
      %p100 = scmp.eq.s32.totalorder %s24, 0
      %p101 = por %p99, %p100
      %p102 = scmp.ne.s32.totalorder %s90, %s91
      %p103 = scmp.eq.s32.totalorder %s25, 1
      %p104 = por %p102, %p103
      %p106 = scmp.ne.s32.totalorder %s91, %s105
      %p107 = scmp.eq.s32.totalorder %s25, 0
      %p108 = por %p106, %p107
      %s110 = sadd.s32 %s109, 1
      %p113 = scmp.eq.s32.totalorder %s19, 1
      %p114 = scmp.ne.s32.totalorder %s109, %s111
      %p115 = scmp.eq.s32.totalorder %s19, 0
      %p116 = por %p114, %p115
      %p117 = scmp.ne.s32.totalorder %s109, %s111
      %p118 = scmp.eq.s32.totalorder %s24, 1
      %p119 = por %p117, %p118
      %p120 = scmp.ne.s32.totalorder %s111, %s112
      %p121 = scmp.eq.s32.totalorder %s24, 0
      %p122 = por %p120, %p121
      %p123 = scmp.ne.s32.totalorder %s111, %s112
      %p124 = scmp.eq.s32.totalorder %s25, 1
      %p125 = por %p123, %p124
      %p127 = scmp.ne.s32.totalorder %s112, %s126
      %p128 = scmp.eq.s32.totalorder %s25, 0
      %p129 = por %p127, %p128
      %s131 = sadd.s32 %s130, 1
      %p134 = scmp.eq.s32.totalorder %s19, 1
      %p135 = scmp.ne.s32.totalorder %s130, %s132
      %p136 = scmp.eq.s32.totalorder %s19, 0
      %p137 = por %p135, %p136
      %p138 = scmp.ne.s32.totalorder %s130, %s132
      %p139 = scmp.eq.s32.totalorder %s24, 1
      %p140 = por %p138, %p139
      %p141 = scmp.ne.s32.totalorder %s132, %s133
      %p142 = scmp.eq.s32.totalorder %s24, 0
      %p143 = por %p141, %p142
      %p144 = scmp.ne.s32.totalorder %s132, %s133
      %p145 = scmp.eq.s32.totalorder %s25, 1
      %p146 = por %p144, %p145
      %p148 = scmp.ne.s32.totalorder %s133, %s147
      %p149 = scmp.eq.s32.totalorder %s25, 0
      %p150 = por %p148, %p149
      %s151 = ssub.s32 %s26, %s38
      %s152 = ssub.s32 %s27, %s34
      %s153 = sor.u32 %s151, %s152
      %p154 = scmp.eq.s32.totalorder %s153, 0
      %s156 = sadd.s32 %s155, 1
      %s157 = scalar_select %p154, %s155, %s156
      %p160 = pneg %p154
      %p161 = scmp.eq.s32.totalorder %s19, 1
      %p162 = por %p160, %p161
      %p163 = scmp.ne.s32.totalorder %s155, %s158
      %p164 = scmp.eq.s32.totalorder %s19, 0
      %p165 = por %p163, %p164
      %p166 = scmp.ne.s32.totalorder %s155, %s158
      %p167 = scmp.eq.s32.totalorder %s24, 1
      %p168 = por %p166, %p167
      %p169 = scmp.ne.s32.totalorder %s158, %s159
      %p170 = scmp.eq.s32.totalorder %s24, 0
      %p171 = por %p169, %p170
      %p172 = scmp.ne.s32.totalorder %s158, %s159
      %p173 = scmp.eq.s32.totalorder %s25, 1
      %p174 = por %p172, %p173
      %p176 = scmp.ne.s32.totalorder %s159, %s175
      %p177 = scmp.eq.s32.totalorder %s25, 0
      %p178 = por %p176, %p177
      %p179 = scmp.le.s32.totalorder 1, %s19
      %p180 = scmp.lt.s32.totalorder %s19, 3
      %p181 = pnand %p179, %p180
      %p182 = pneg %p181
      // Predicated region
      $region9: #{_lambda_.9} parent=5 // pred_check
        _
      $region10: #{_lambda_.9} parent=5 // pred_check_branch
        %184 = sbr.rel (%p181) target = $region12
      $region11: #{_lambda_.9} parent=5 // pred_region
        %s185 = ssub.s32 %s19, 1
        // Predicated region
        $region13: #{_lambda_.9} parent=11 // pred_check
          %p186 = pneg %p80
        $region14: #{_lambda_.9} parent=11 // pred_check_branch
          %188 = sbr.rel (%p186) target = $region16
        $region15: #{_lambda_.9} parent=11 // pred_region
          %s190 = ssub.s32 128, 128
          %191 = vsyncadd [#allocation6], %s190
          %s192 = sshll.u32 [#allocation5], 4
          %s193 = int_to_ptr.vmem [resolvable:$true] %s192
          %198 = dma.hbm_to_vmem [thread:$0]  %s1, 128, %s193, [#allocation6], 64, 64, 4
        $region16: #{_lambda_.9} parent=11 // pred_fallthru
          _
        // Predicated region
        $region17: #{_lambda_.9} parent=11 // pred_check
          %p199 = pneg %p101
        $region18: #{_lambda_.9} parent=11 // pred_check_branch
          %201 = sbr.rel (%p199) target = $region20
        $region19: #{_lambda_.9} parent=11 // pred_region
          %s203 = ssub.s32 16, 16
          %204 = vsyncadd [#allocation6], %s203
          %s206 = sshll.u32 [#allocation7], 4
          %s207 = int_to_ptr.vmem [resolvable:$true] %s206
          %209 = dma.hbm_to_vmem [thread:$0]  %s2, 16, %s207, [#allocation6]
        $region20: #{_lambda_.9} parent=11 // pred_fallthru
          _
        // Predicated region
        $region21: #{_lambda_.9} parent=11 // pred_check
          %p210 = pneg %p122
        $region22: #{_lambda_.9} parent=11 // pred_check_branch
          %212 = sbr.rel (%p210) target = $region24
        $region23: #{_lambda_.9} parent=11 // pred_region
          %s214 = ssub.s32 128, 128
          %215 = vsyncadd [#allocation9], %s214
          %s216 = sshll.u32 [#allocation8], 4
          %s217 = int_to_ptr.vmem [resolvable:$true] %s216
          %222 = dma.hbm_to_vmem [thread:$0]  %s3, 128, %s217, [#allocation9], 64, 64, 4
        $region24: #{_lambda_.9} parent=11 // pred_fallthru
          _
        // Predicated region
        $region25: #{_lambda_.9} parent=11 // pred_check
          %p223 = pneg %p143
        $region26: #{_lambda_.9} parent=11 // pred_check_branch
          %225 = sbr.rel (%p223) target = $region28
        $region27: #{_lambda_.9} parent=11 // pred_region
          %s227 = ssub.s32 16, 16
          %228 = vsyncadd [#allocation9], %s227
          %s230 = sshll.u32 [#allocation10], 4
          %s231 = int_to_ptr.vmem [resolvable:$true] %s230
          %233 = dma.hbm_to_vmem [thread:$0]  %s4, 16, %s231, [#allocation9]
        $region28: #{_lambda_.9} parent=11 // pred_fallthru
          _
      $region12: #{_lambda_.9} parent=5 // pred_fallthru
        _
      %p234 = scmp.lt.s32.totalorder %s19, 2
      // Predicated region
      $region29: #{_lambda_.9} parent=5 // pred_check
        %p235 = pneg %p234
      $region30: #{_lambda_.9} parent=5 // pred_check_branch
        %237 = sbr.rel (%p235) target = $region32
      $region31: #{_lambda_.9} parent=5 // pred_region
        // Predicated region
        $region33: #{_lambda_.9} parent=31 // pred_check
          %p238 = pneg %p53
        $region34: #{_lambda_.9} parent=31 // pred_check_branch
          %240 = sbr.rel (%p238) target = $region36
        $region35: #{_lambda_.9} parent=31 // pred_region
          %s241 = sand.u32 %s43, 1
          %s242 = scalar_lea.sflag [#allocation3], %s241
          %s243 = sand.u32 %s43, 1
          %s244 = smul.addr %s243, 32
          %s245 = scalar_lea.vmem [#allocation2], %s244
          %s246 = smul.u32 8, %s27
          %s248 = ssub.s32 512, 512
          %249 = vsyncadd %s242, %s248
          %s250 = smul.addr %s26, 8
          %s251 = sadd.s32 %s246, %s250
          %s252 = smul.addr %s251, 64
          %s253 = scalar_lea.hbm %s0, %s252
          %s254 = sshll.u32 %s245, 4
          %s255 = int_to_ptr.vmem [resolvable:$true] %s254
          %260 = dma.hbm_to_vmem [thread:$0]  %s253, 512, %s255, %s242, 64, 64, 4
        $region36: #{_lambda_.9} parent=31 // pred_fallthru
          _
      $region32: #{_lambda_.9} parent=5 // pred_fallthru
        _
      %p261 = scmp.le.s32.totalorder 1, %s19
      %p262 = scmp.lt.s32.totalorder %s19, 3
      %p263 = pnand %p261, %p262
      %p264 = pneg %p263
      // Predicated region
      $region37: #{_lambda_.9} parent=5 // pred_check
        _
      $region38: #{_lambda_.9} parent=5 // pred_check_branch
        %266 = sbr.rel (%p263) target = $region40
      $region39: #{_lambda_.9} parent=5 // pred_region
        %s267 = ssub.s32 %s19, 1
        %s268 = sand.u32 %s46, 1
        %s269 = scalar_lea.sflag [#allocation3], %s268
        %s270 = sand.u32 %s46, 1
        %s271 = smul.addr %s270, 32
        %s272 = scalar_lea.vmem [#allocation2], %s271
        // Predicated region
        $region41: #{_lambda_.9} parent=39 // pred_check
          %p273 = pneg %p59
        $region42: #{_lambda_.9} parent=39 // pred_check_branch
          %275 = sbr.rel (%p273) target = $region44
        $region43: #{_lambda_.9} parent=39 // pred_region
          %276 = dma.done %s269, 512
        $region44: #{_lambda_.9} parent=39 // pred_fallthru
          _
        // Predicated region
        $region45: #{_lambda_.9} parent=39 // pred_check
          %p277 = pneg %p80
        $region46: #{_lambda_.9} parent=39 // pred_check_branch
          %279 = sbr.rel (%p277) target = $region48
        $region47: #{_lambda_.9} parent=39 // pred_region
          %280 = dma.done [#allocation6], 128
        $region48: #{_lambda_.9} parent=39 // pred_fallthru
          _
        // Predicated region
        $region49: #{_lambda_.9} parent=39 // pred_check
          %p281 = pneg %p101
        $region50: #{_lambda_.9} parent=39 // pred_check_branch
          %283 = sbr.rel (%p281) target = $region52
        $region51: #{_lambda_.9} parent=39 // pred_region
          %284 = dma.done [#allocation6], 16
        $region52: #{_lambda_.9} parent=39 // pred_fallthru
          _
        // Predicated region
        $region53: #{_lambda_.9} parent=39 // pred_check
          %p285 = pneg %p122
        $region54: #{_lambda_.9} parent=39 // pred_check_branch
          %287 = sbr.rel (%p285) target = $region56
        $region55: #{_lambda_.9} parent=39 // pred_region
          %288 = dma.done [#allocation9], 128
        $region56: #{_lambda_.9} parent=39 // pred_fallthru
          _
        // Predicated region
        $region57: #{_lambda_.9} parent=39 // pred_check
          %p289 = pneg %p143
        $region58: #{_lambda_.9} parent=39 // pred_check_branch
          %291 = sbr.rel (%p289) target = $region60
        $region59: #{_lambda_.9} parent=39 // pred_region
          %292 = dma.done [#allocation9], 16
        $region60: #{_lambda_.9} parent=39 // pred_fallthru
          _
        %s293 = sand.u32 %s46, 1
        %s294 = scalar_lea.sflag [#allocation3], %s293
        %s295 = sand.u32 %s46, 1
        %s296 = smul.addr %s295, 32
        %s297 = scalar_lea.vmem [#allocation2], %s296
        %p298 = pneg %p59
        %p299 = pneg %p56
        %p300 = pneg %p80
        %p301 = pneg %p77
        %p302 = pneg %p101
        %p303 = pneg %p98
        %p304 = pneg %p122
        %p305 = pneg %p119
        %p306 = pneg %p143
        %p307 = pneg %p140
        %p308 = pneg %p171
        %p309 = pneg %p168
        %s310 = sand.u32 %s158, 1
        %s311 = scalar_lea.sflag [#allocation4], %s310
        %s312 = sand.u32 %s158, 1
        %s313 = smul.addr %s312, 4
        %s314 = scalar_lea.vmem [#allocation11], %s313
        %s315 = smul.u32 8, %s29
        %v317 = vld [vmem:[%s272] sm:$0xf]
        %v318 = vld [vmem:[%s272 + $0x4] sm:$0xf]
        %v319 = vld [vmem:[%s272 + $0x8] sm:$0xf]
        %v320 = vld [vmem:[%s272 + $0xc] sm:$0xf]
        %v321 = vld [vmem:[%s272 + $0x10] sm:$0xf]
        %v322 = vld [vmem:[%s272 + $0x14] sm:$0xf]
        %v323 = vld [vmem:[%s272 + $0x18] sm:$0xf]
        %v324 = vld [vmem:[%s272 + $0x1c] sm:$0xf]
        %v325 = vld [vmem:[#allocation5] sm:$0xf]
        %v326 = vld [vmem:[#allocation5 + $0x4] sm:$0xf]
        %v327 = vld [vmem:[#allocation7] sm:$0x1]
        %v329 = vlaneseq
        %v330 = vshrl.u32 %v329, 7
        %v331 = vsub.s32 0, %v330
        %v332 = vrot.slane %v327, %v331
        %v342 = vunpack.c.l.b16 %v317
        %v343 = vunpack.c.l.b16 %v318
        %v344 = vunpack.c.l.b16 %v319
        %v345 = vunpack.c.l.b16 %v320
        %v346 = vunpack.c.l.b16 %v321
        %v347 = vunpack.c.l.b16 %v322
        %v348 = vunpack.c.l.b16 %v323
        %v349 = vunpack.c.l.b16 %v324
        %v350 = vpack.c.b16 %v343, %v342
        %v351 = vpack.c.b16 %v345, %v344
        %v352 = vpack.c.b16 %v347, %v346
        %v353 = vpack.c.b16 %v349, %v348
        %v356 = vunpack.c.l.b16 %v325
        %v357 = vunpack.c.l.b16 %v326
        %v358 = vpack.c.b16 %v357, %v356
        %vm360 = vcmask 130048
        %v362 = vsel %vm360, %v350, 0
        %v365 = vsel %vm360, %v351, 0
        %v368 = vsel %vm360, %v352, 0
        %v371 = vsel %vm360, %v353, 0
        %373 = vmatprep.subr.bf16.mxu0 0
        %374 = vmatpush1.bf16.msra.mxu0 %v358
        %375 = vmatprep.subr.bf16.mxu0 0
        %376 = vmatpush1.bf16.msra.mxu0 0
        %377 = vmatprep.subr.bf16.mxu0 0
        %378 = vmatpush1.bf16.msra.mxu0 0
        %379 = vmatprep.subr.bf16.mxu0 0
        %380 = vmatpush1.bf16.msra.mxu0 0
        %381 = vmatprep.subr.bf16.mxu0 0
        %382 = vmatpush1.bf16.msra.mxu0 0
        %383 = vmatprep.subr.bf16.mxu0 0
        %384 = vmatpush1.bf16.msra.mxu0 0
        %385 = vmatprep.subr.bf16.mxu0 0
        %386 = vmatpush1.bf16.msra.mxu0 0
        %387 = vmatprep.subr.bf16.mxu0 0
        %388 = vmatpush1.bf16.msra.mxu0 0
        %389 = vmatprep.subr.bf16.mxu0 0
        %390 = vmatpush1.bf16.msra.mxu0 0
        %391 = vmatprep.subr.bf16.mxu0 0
        %392 = vmatpush1.bf16.msra.mxu0 0
        %393 = vmatprep.subr.bf16.mxu0 0
        %394 = vmatpush1.bf16.msra.mxu0 0
        %395 = vmatprep.subr.bf16.mxu0 0
        %396 = vmatpush1.bf16.msra.mxu0 0
        %397 = vmatprep.subr.bf16.mxu0 0
        %398 = vmatpush1.bf16.msra.mxu0 0
        %399 = vmatprep.subr.bf16.mxu0 0
        %400 = vmatpush1.bf16.msra.mxu0 0
        %401 = vmatprep.subr.bf16.mxu0 0
        %402 = vmatpush1.bf16.msra.mxu0 0
        %403 = vmatprep.subr.bf16.mxu0 0
        %404 = vmatpush1.bf16.msra.mxu0 0
        %405 = vmatprep.mubr.bf16.mxu0 0
        %406 = vmatmul.mubr.bf16.gmra.mrb[0].mxu0 %v362
        %v407 = vpop.f32.mrb[0].mxu0
        %v408 = vadd.f32 %v332, %v407
        %v409 = vpop.f32.mrb[0].mxu0
        %v410 = vpop.f32.mrb[0].mxu0
        %v411 = vadd.f32 %v332, %v410
        %v412 = vpop.f32.mrb[0].mxu0
        %413 = vmatprep.mubr.bf16.mxu0 0
        %414 = vmatmul.mubr.bf16.gmra.mrb[0].mxu0 %v365
        %v415 = vpop.f32.mrb[0].mxu0
        %v416 = vadd.f32 %v332, %v415
        %v417 = vpop.f32.mrb[0].mxu0
        %v418 = vpop.f32.mrb[0].mxu0
        %v419 = vadd.f32 %v332, %v418
        %v420 = vpop.f32.mrb[0].mxu0
        %421 = vmatprep.mubr.bf16.mxu0 0
        %422 = vmatmul.mubr.bf16.gmra.mrb[0].mxu0 %v368
        %v423 = vpop.f32.mrb[0].mxu0
        %v424 = vadd.f32 %v332, %v423
        %v425 = vpop.f32.mrb[0].mxu0
        %v426 = vpop.f32.mrb[0].mxu0
        %v427 = vadd.f32 %v332, %v426
        %v428 = vpop.f32.mrb[0].mxu0
        %429 = vmatprep.mubr.bf16.mxu0 0
        %430 = vmatmul.mubr.bf16.gmra.mrb[0].mxu0 %v371
        %v431 = vpop.f32.mrb[0].mxu0
        %v432 = vadd.f32 %v332, %v431
        %v433 = vpop.f32.mrb[0].mxu0
        %v434 = vpop.f32.mrb[0].mxu0
        %v435 = vadd.f32 %v332, %v434
        %v436 = vpop.f32.mrb[0].mxu0
        %437 = vdwg.mxu0
        %v438 = vmax.f32 %v408, 0.0
        %v439 = vmax.f32 %v411, 0.0
        %v440 = vmax.f32 %v416, 0.0
        %v441 = vmax.f32 %v419, 0.0
        %v442 = vmax.f32 %v424, 0.0
        %v443 = vmax.f32 %v427, 0.0
        %v444 = vmax.f32 %v432, 0.0
        %v445 = vmax.f32 %v435, 0.0
        %v446 = vpack.c.bf16 %v439, %v438
        %v447 = vpack.c.bf16 %v441, %v440
        %v448 = vpack.c.bf16 %v443, %v442
        %v449 = vpack.c.bf16 %v445, %v444
        %v450 = vld [vmem:[#allocation8] sm:$0xf]
        %v451 = vld [vmem:[#allocation8 + $0x4] sm:$0xf]
        %v452 = vld [vmem:[#allocation10] sm:$0x1]
        %v454 = vlaneseq
        %v455 = vshrl.u32 %v454, 7
        %v456 = vsub.s32 0, %v455
        %v457 = vrot.slane %v452, %v456
        %v461 = vunpack.c.l.b16 %v450
        %v462 = vunpack.c.l.b16 %v451
        %v463 = vpack.c.b16 %v462, %v461
        %v466 = vsel %vm360, %v446, 0
        %v469 = vsel %vm360, %v447, 0
        %v472 = vsel %vm360, %v448, 0
        %v475 = vsel %vm360, %v449, 0
        %477 = vmatprep.subr.bf16.mxu0 0
        %478 = vmatpush1.bf16.msra.mxu0 %v463
        %479 = vmatprep.subr.bf16.mxu0 0
        %480 = vmatpush1.bf16.msra.mxu0 0
        %481 = vmatprep.subr.bf16.mxu0 0
        %482 = vmatpush1.bf16.msra.mxu0 0
        %483 = vmatprep.subr.bf16.mxu0 0
        %484 = vmatpush1.bf16.msra.mxu0 0
        %485 = vmatprep.subr.bf16.mxu0 0
        %486 = vmatpush1.bf16.msra.mxu0 0
        %487 = vmatprep.subr.bf16.mxu0 0
        %488 = vmatpush1.bf16.msra.mxu0 0
        %489 = vmatprep.subr.bf16.mxu0 0
        %490 = vmatpush1.bf16.msra.mxu0 0
        %491 = vmatprep.subr.bf16.mxu0 0
        %492 = vmatpush1.bf16.msra.mxu0 0
        %493 = vmatprep.subr.bf16.mxu0 0
        %494 = vmatpush1.bf16.msra.mxu0 0
        %495 = vmatprep.subr.bf16.mxu0 0
        %496 = vmatpush1.bf16.msra.mxu0 0
        %497 = vmatprep.subr.bf16.mxu0 0
        %498 = vmatpush1.bf16.msra.mxu0 0
        %499 = vmatprep.subr.bf16.mxu0 0
        %500 = vmatpush1.bf16.msra.mxu0 0
        %501 = vmatprep.subr.bf16.mxu0 0
        %502 = vmatpush1.bf16.msra.mxu0 0
        %503 = vmatprep.subr.bf16.mxu0 0
        %504 = vmatpush1.bf16.msra.mxu0 0
        %505 = vmatprep.subr.bf16.mxu0 0
        %506 = vmatpush1.bf16.msra.mxu0 0
        %507 = vmatprep.subr.bf16.mxu0 0
        %508 = vmatpush1.bf16.msra.mxu0 0
        %509 = vmatprep.mubr.bf16.mxu0 0
        %510 = vmatmul.mubr.bf16.gmra.mrb[0].mxu0 %v466
        %v511 = vpop.f32.mrb[0].mxu0
        %v512 = vadd.f32 %v457, %v511
        %v513 = vpop.f32.mrb[0].mxu0
        %v514 = vpop.f32.mrb[0].mxu0
        %v515 = vadd.f32 %v457, %v514
        %v516 = vpop.f32.mrb[0].mxu0
        %517 = vmatprep.mubr.bf16.mxu0 0
        %518 = vmatmul.mubr.bf16.gmra.mrb[0].mxu0 %v469
        %v519 = vpop.f32.mrb[0].mxu0
        %v520 = vadd.f32 %v457, %v519
        %v521 = vpop.f32.mrb[0].mxu0
        %v522 = vpop.f32.mrb[0].mxu0
        %v523 = vadd.f32 %v457, %v522
        %v524 = vpop.f32.mrb[0].mxu0
        %525 = vmatprep.mubr.bf16.mxu0 0
        %526 = vmatmul.mubr.bf16.gmra.mrb[0].mxu0 %v472
        %v527 = vpop.f32.mrb[0].mxu0
        %v528 = vadd.f32 %v457, %v527
        %v529 = vpop.f32.mrb[0].mxu0
        %v530 = vpop.f32.mrb[0].mxu0
        %v531 = vadd.f32 %v457, %v530
        %v532 = vpop.f32.mrb[0].mxu0
        %533 = vmatprep.mubr.bf16.mxu0 0
        %534 = vmatmul.mubr.bf16.gmra.mrb[0].mxu0 %v475
        %v535 = vpop.f32.mrb[0].mxu0
        %v536 = vadd.f32 %v457, %v535
        %v537 = vpop.f32.mrb[0].mxu0
        %v538 = vpop.f32.mrb[0].mxu0
        %v539 = vadd.f32 %v457, %v538
        %v540 = vpop.f32.mrb[0].mxu0
        %541 = vdwg.mxu0
        %542 = vxpose.xlu0.b32.start [1/16] %v512, 128
        %543 = vxpose.xlu0.b32.cont [2/16] %v515, 128
        %544 = vxpose.xlu0.b32.cont [3/16] %v520, 128
        %545 = vxpose.xlu0.b32.cont [4/16] %v523, 128
        %546 = vxpose.xlu0.b32.cont [5/16] %v528, 128
        %547 = vxpose.xlu0.b32.cont [6/16] %v531, 128
        %548 = vxpose.xlu0.b32.cont [7/16] %v536, 128
        %549 = vxpose.xlu0.b32.cont [8/16] %v539, 128
        %550 = vxpose.xlu0.b32.cont [9/16] 0.0, 128
        %551 = vxpose.xlu0.b32.cont [10/16] 0.0, 128
        %552 = vxpose.xlu0.b32.cont [11/16] 0.0, 128
        %553 = vxpose.xlu0.b32.cont [12/16] 0.0, 128
        %554 = vxpose.xlu0.b32.cont [13/16] 0.0, 128
        %555 = vxpose.xlu0.b32.cont [14/16] 0.0, 128
        %556 = vxpose.xlu0.b32.cont [15/16] 0.0, 128
        %557 = vxpose.xlu0.b32.end [16/16] 0.0, 128
        %v558 = vpop.trf.xlu0
        %v559 = vpop.trf.xlu0
        %v560 = vpop.trf.xlu0
        %v561 = vpop.trf.xlu0
        %v562 = vpop.trf.xlu0
        %v563 = vpop.trf.xlu0
        %v564 = vpop.trf.xlu0
        %v565 = vpop.trf.xlu0
        %v566 = vpop.trf.xlu0
        %v567 = vpop.trf.xlu0
        %v568 = vpop.trf.xlu0
        %v569 = vpop.trf.xlu0
        %v570 = vpop.trf.xlu0
        %v571 = vpop.trf.xlu0
        %v572 = vpop.trf.xlu0
        %v573 = vpop.trf.xlu0
        %v574 = vpack.c.bf16 %v558, %v558
        %vm575 = vcmask 519168
        %576 = vst.msk [vmem:[%s314] sm:$0xf] %vm575, %v574
        %s577 = sand.u32 %s158, 1
        %s578 = scalar_lea.sflag [#allocation4], %s577
        %s579 = sand.u32 %s158, 1
        %s580 = smul.addr %s579, 4
        %s581 = scalar_lea.vmem [#allocation11], %s580
        // Predicated region
        $region61: #{_lambda_.9} parent=39 // pred_check
          %p582 = pneg %p168
        $region62: #{_lambda_.9} parent=39 // pred_check_branch
          %584 = sbr.rel (%p582) target = $region64
        $region63: #{_lambda_.9} parent=39 // pred_region
          %s586 = ssub.s32 64, 64
          %587 = vsyncadd %s578, %s586
          %s588 = sadd.s32 %s29, %s28
          %s589 = smul.addr %s588, 64
          %s590 = scalar_lea.hbm %s5, %s589
          %s592 = sshll.u32 %s581, 4
          %s593 = int_to_ptr.vmem [resolvable:$true] %s592
          %595 = dma.vmem_to_hbm [thread:$0]  %s593, 64, %s590, %s578
        $region64: #{_lambda_.9} parent=39 // pred_fallthru
          _
      $region40: #{_lambda_.9} parent=5 // pred_fallthru
        _
      %p596 = scmp.le.s32.totalorder 2, %s19
      // Predicated region
      $region65: #{_lambda_.9} parent=5 // pred_check
        %p597 = pneg %p596
      $region66: #{_lambda_.9} parent=5 // pred_check_branch
        %599 = sbr.rel (%p597) target = $region68
      $region67: #{_lambda_.9} parent=5 // pred_region
        %s600 = ssub.s32 %s19, 2
        // Predicated region
        $region69: #{_lambda_.9} parent=67 // pred_check
          %p601 = pneg %p174
        $region70: #{_lambda_.9} parent=67 // pred_check_branch
          %603 = sbr.rel (%p601) target = $region72
        $region71: #{_lambda_.9} parent=67 // pred_region
          %s604 = sand.u32 %s159, 1
          %s605 = scalar_lea.sflag [#allocation4], %s604
          %s606 = sand.u32 %s159, 1
          %s607 = smul.addr %s606, 4
          %s608 = scalar_lea.vmem [#allocation11], %s607
          %609 = dma.done %s605, 64
        $region72: #{_lambda_.9} parent=67 // pred_fallthru
          _
      $region68: #{_lambda_.9} parent=5 // pred_fallthru
        _
    $region6: #{_lambda_.9} parent=1 // loop_footer
      %s23 = sadd.s32 1, %s19
    $region7: #{_lambda_.9} parent=1 // loop_footer_branch
      %18 = sbr.rel target = $region3
    $region8: #{_lambda_.9} parent=1 // loop_exit
      _
    %610 = vsyncpa [#allocation3], 1
    %s611 = scalar_lea.sflag [#allocation3], 1
    %612 = vsyncpa %s611, 1
    %613 = vsyncpa [#allocation6], 1
    %614 = vsyncpa [#allocation9], 1
    %615 = vsyncpa [#allocation4], 1
    %s616 = scalar_lea.sflag [#allocation4], 1
    %617 = vsyncpa %s616, 1

// kernel: _lambda_.11
$region0: #{_lambda_.11}
  #allocation0 [shape = 'u32[]', space=smem, size = 0x4, offset = 0x4, fixed_abs, tag = 'smem constant byte address 0x4 - core index']
  #allocation1 [shape = 'u32[144,128]{1,0:T(1,128)}', space=vmem, size = 0x12000, scoped, tag = 'internal scratch']
  %s0 = inlined_call_operand.hbm [shape: bf16[2,8,8,8], index: 0, kind: input, shape index: {}]
  %s1 = inlined_call_operand.hbm [shape: bf16[16,8], index: 1, kind: input, shape index: {}]
  %s2 = inlined_call_operand.hbm [shape: bf16[8,16], index: 2, kind: input, shape index: {}]
  %s3 = inlined_call_operand.hbm [shape: bf16[2,8,16,16], index: 3, kind: output, shape index: {}]
  %s4 = sld [smem:[#allocation0]]
  $region57: #{_lambda_.11} parent=0
    _
  %s6 = ssub.s32 1, %s4
  %s7 = scalar_select 0, %s6, %s4
  $region1: #{_lambda_.11} parent=0
    #allocation2 [shape = 'u8[16384]{0}', space=vmem, size = 0x4000, scoped, tag = 'input window, operand 0']
    #allocation3 [shape = 's32[2]{0}', space=sflag, size = 0x8, scoped, tag = 'scoped memory for _lambda_.11']
    #allocation4 [shape = 's32[2]{0}', space=sflag, size = 0x8, scoped, tag = 'scoped memory for _lambda_.11']
    #allocation5 [shape = 'u8[4096]{0}', space=vmem, size = 0x1000, scoped, tag = 'input window, operand 1']
    #allocation6 [shape = 's32[2]{0}', space=sflag, size = 0x8, scoped, tag = 'scoped memory for _lambda_.11']
    #allocation7 [shape = 'u8[2048]{0}', space=vmem, size = 0x800, scoped, tag = 'input window, operand 2, single buffered']
    #allocation8 [shape = 'u8[16384]{0}', space=vmem, size = 0x4000, scoped, tag = 'output window, operand 0']
    %8 = vsyncpa [#allocation3], 0
    %s9 = scalar_lea.sflag [#allocation3], 1
    %10 = vsyncpa %s9, 0
    %11 = vsyncpa [#allocation6], 0
    %s12 = scalar_lea.sflag [#allocation6], 1
    %13 = vsyncpa %s12, 0
    %14 = vsyncpa [#allocation4], 0
    %s15 = scalar_lea.sflag [#allocation4], 1
    %16 = vsyncpa %s15, 0
    loop: start=0, step=1, limit=10
    $region2: #{_lambda_.11} parent=1 // loop_pre_header
      _
    $region3: #{_lambda_.11} parent=1 // loop_header
      %s18 = sphi 0, %s22
      %p19 = scmp.ge.s32.totalorder %s18, 10
      %s25 = sphi 0, %s44
      %s26 = sphi 0, %s40
      %s27 = sphi 0, %s36
      %s28 = sphi 0, %s25
      %s29 = sphi 0, %s26
      %s30 = sphi 0, %s27
      %s31 = sphi 0, %s28
      %s32 = sphi 0, %s29
      %s33 = sphi 0, %s30
      %s49 = sphi 0, %s51
      %s52 = sphi 0, %s49
      %s53 = sphi 0, %s52
      %s69 = sphi 0, %s53
      %s75 = sphi 0, %s77
      %s78 = sphi 0, %s75
      %s79 = sphi 0, %s78
      %s95 = sphi 0, %s79
      %s99 = sphi 0, %s99
      %s101 = sphi 0, %s99
      %s102 = sphi 0, %s101
      %s116 = sphi 0, %s102
      %s126 = sphi 0, %s128
      %s129 = sphi 0, %s126
      %s130 = sphi 0, %s129
      %s146 = sphi 0, %s130
    $region4: #{_lambda_.11} parent=1 // loop_header_branch
      %21 = sbr.rel (%p19) target = $region8
    $region5: #{_lambda_.11} parent=1 // loop_body
      %s23 = ssub.s32 %s18, 1
      %s24 = ssub.s32 %s18, 2
      %s34 = sadd.s32 1, %s27
      %p35 = scmp.ge.s32.totalorder %s34, 2
      %s36 = scalar_select %p35, 0, %s34
      %s37 = sadd.s32 1, %s26
      %s38 = scalar_select %p35, %s37, %s26
      %p39 = scmp.ge.s32.totalorder %s38, 2
      %s40 = scalar_select %p39, 0, %s38
      %s41 = sadd.s32 1, %s25
      %s42 = scalar_select %p39, %s41, %s25
      %p43 = scmp.ge.s32.totalorder %s42, 2
      %s44 = scalar_select %p43, 0, %s42
      %s45 = ssub.s32 %s25, %s44
      %s46 = ssub.s32 %s26, %s40
      %s47 = sor.u32 %s45, %s46
      %p48 = scmp.eq.s32.totalorder %s47, 0
      %s50 = sadd.s32 %s49, 1
      %s51 = scalar_select %p48, %s49, %s50
      %p54 = pneg %p48
      %p55 = scmp.eq.s32.totalorder %s18, 7
      %p56 = por %p54, %p55
      %p57 = scmp.ne.s32.totalorder %s49, %s52
      %p58 = scmp.eq.s32.totalorder %s18, 0
      %p59 = por %p57, %p58
      %p60 = scmp.ne.s32.totalorder %s49, %s52
      %p61 = scmp.eq.s32.totalorder %s23, 7
      %p62 = por %p60, %p61
      %p63 = scmp.ne.s32.totalorder %s52, %s53
      %p64 = scmp.eq.s32.totalorder %s23, 0
      %p65 = por %p63, %p64
      %p66 = scmp.ne.s32.totalorder %s52, %s53
      %p67 = scmp.eq.s32.totalorder %s24, 7
      %p68 = por %p66, %p67
      %p70 = scmp.ne.s32.totalorder %s53, %s69
      %p71 = scmp.eq.s32.totalorder %s24, 0
      %p72 = por %p70, %p71
      %s73 = ssub.s32 %s27, %s36
      %p74 = scmp.eq.s32.totalorder %s73, 0
      %s76 = sadd.s32 %s75, 1
      %s77 = scalar_select %p74, %s75, %s76
      %p80 = pneg %p74
      %p81 = scmp.eq.s32.totalorder %s18, 7
      %p82 = por %p80, %p81
      %p83 = scmp.ne.s32.totalorder %s75, %s78
      %p84 = scmp.eq.s32.totalorder %s18, 0
      %p85 = por %p83, %p84
      %p86 = scmp.ne.s32.totalorder %s75, %s78
      %p87 = scmp.eq.s32.totalorder %s23, 7
      %p88 = por %p86, %p87
      %p89 = scmp.ne.s32.totalorder %s78, %s79
      %p90 = scmp.eq.s32.totalorder %s23, 0
      %p91 = por %p89, %p90
      %p92 = scmp.ne.s32.totalorder %s78, %s79
      %p93 = scmp.eq.s32.totalorder %s24, 7
      %p94 = por %p92, %p93
      %p96 = scmp.ne.s32.totalorder %s79, %s95
      %p97 = scmp.eq.s32.totalorder %s24, 0
      %p98 = por %p96, %p97
      %s100 = sadd.s32 %s99, 1
      %p103 = scmp.eq.s32.totalorder %s18, 7
      %p104 = scmp.ne.s32.totalorder %s99, %s101
      %p105 = scmp.eq.s32.totalorder %s18, 0
      %p106 = por %p104, %p105
      %p107 = scmp.ne.s32.totalorder %s99, %s101
      %p108 = scmp.eq.s32.totalorder %s23, 7
      %p109 = por %p107, %p108
      %p110 = scmp.ne.s32.totalorder %s101, %s102
      %p111 = scmp.eq.s32.totalorder %s23, 0
      %p112 = por %p110, %p111
      %p113 = scmp.ne.s32.totalorder %s101, %s102
      %p114 = scmp.eq.s32.totalorder %s24, 7
      %p115 = por %p113, %p114
      %p117 = scmp.ne.s32.totalorder %s102, %s116
      %p118 = scmp.eq.s32.totalorder %s24, 0
      %p119 = por %p117, %p118
      %s120 = ssub.s32 %s25, %s44
      %s121 = ssub.s32 %s26, %s40
      %s122 = sor.u32 %s120, %s121
      %s123 = ssub.s32 %s27, %s36
      %s124 = sor.u32 %s122, %s123
      %p125 = scmp.eq.s32.totalorder %s124, 0
      %s127 = sadd.s32 %s126, 1
      %s128 = scalar_select %p125, %s126, %s127
      %p131 = pneg %p125
      %p132 = scmp.eq.s32.totalorder %s18, 7
      %p133 = por %p131, %p132
      %p134 = scmp.ne.s32.totalorder %s126, %s129
      %p135 = scmp.eq.s32.totalorder %s18, 0
      %p136 = por %p134, %p135
      %p137 = scmp.ne.s32.totalorder %s126, %s129
      %p138 = scmp.eq.s32.totalorder %s23, 7
      %p139 = por %p137, %p138
      %p140 = scmp.ne.s32.totalorder %s129, %s130
      %p141 = scmp.eq.s32.totalorder %s23, 0
      %p142 = por %p140, %p141
      %p143 = scmp.ne.s32.totalorder %s129, %s130
      %p144 = scmp.eq.s32.totalorder %s24, 7
      %p145 = por %p143, %p144
      %p147 = scmp.ne.s32.totalorder %s130, %s146
      %p148 = scmp.eq.s32.totalorder %s24, 0
      %p149 = por %p147, %p148
      %p150 = scmp.le.s32.totalorder 1, %s18
      %p151 = scmp.lt.s32.totalorder %s18, 9
      %p152 = pnand %p150, %p151
      %p153 = pneg %p152
      // Predicated region
      $region9: #{_lambda_.11} parent=5 // pred_check
        _
      $region10: #{_lambda_.11} parent=5 // pred_check_branch
        %155 = sbr.rel (%p152) target = $region12
      $region11: #{_lambda_.11} parent=5 // pred_region
        %s156 = ssub.s32 %s18, 1
        // Predicated region
        $region13: #{_lambda_.11} parent=11 // pred_check
          %p157 = pneg %p112
        $region14: #{_lambda_.11} parent=11 // pred_check_branch
          %159 = sbr.rel (%p157) target = $region16
        $region15: #{_lambda_.11} parent=11 // pred_region
          %s161 = ssub.s32 64, 64
          %162 = vsyncadd [#allocation6], %s161
          %s164 = sshll.u32 [#allocation7], 4
          %s165 = int_to_ptr.vmem [resolvable:$true] %s164
          %167 = dma.hbm_to_vmem [thread:$0]  %s2, 64, %s165, [#allocation6]
        $region16: #{_lambda_.11} parent=11 // pred_fallthru
          _
      $region12: #{_lambda_.11} parent=5 // pred_fallthru
        _
      %p168 = scmp.lt.s32.totalorder %s18, 8
      // Predicated region
      $region17: #{_lambda_.11} parent=5 // pred_check
        %p169 = pneg %p168
      $region18: #{_lambda_.11} parent=5 // pred_check_branch
        %171 = sbr.rel (%p169) target = $region20
      $region19: #{_lambda_.11} parent=5 // pred_region
        // Predicated region
        $region21: #{_lambda_.11} parent=19 // pred_check
          %p172 = pneg %p59
        $region22: #{_lambda_.11} parent=19 // pred_check_branch
          %174 = sbr.rel (%p172) target = $region24
        $region23: #{_lambda_.11} parent=19 // pred_region
          %s175 = sand.u32 %s49, 1
          %s176 = scalar_lea.sflag [#allocation3], %s175
          %s177 = sand.u32 %s49, 1
          %s178 = smul.addr %s177, 16
          %s179 = scalar_lea.vmem [#allocation2], %s178
          %s180 = smul.u32 4, %s26
          %s182 = ssub.s32 256, 256
          %183 = vsyncadd %s176, %s182
          %s184 = smul.addr %s25, 8
          %s185 = sadd.s32 %s180, %s184
          %s186 = smul.addr %s185, 64
          %s187 = scalar_lea.hbm %s0, %s186
          %s188 = sshll.u32 %s179, 4
          %s189 = int_to_ptr.vmem [resolvable:$true] %s188
          %194 = dma.hbm_to_vmem [thread:$0]  %s187, 256, %s189, %s176, 64, 64, 4
        $region24: #{_lambda_.11} parent=19 // pred_fallthru
          _
        // Predicated region
        $region25: #{_lambda_.11} parent=19 // pred_check
          %p195 = pneg %p85
        $region26: #{_lambda_.11} parent=19 // pred_check_branch
          %197 = sbr.rel (%p195) target = $region28
        $region27: #{_lambda_.11} parent=19 // pred_region
          %s198 = sand.u32 %s18, 1
          %s199 = scalar_lea.sflag [#allocation6], %s198
          %s200 = sand.u32 %s75, 1
          %s201 = smul.addr %s200, 4
          %s202 = scalar_lea.vmem [#allocation5], %s201
          %s204 = ssub.s32 64, 64
          %205 = vsyncadd %s199, %s204
          %s206 = smul.addr %s27, 64
          %s207 = scalar_lea.hbm %s1, %s206
          %s209 = sshll.u32 %s202, 4
          %s210 = int_to_ptr.vmem [resolvable:$true] %s209
          %212 = dma.hbm_to_vmem [thread:$0]  %s207, 64, %s210, %s199
        $region28: #{_lambda_.11} parent=19 // pred_fallthru
          _
      $region20: #{_lambda_.11} parent=5 // pred_fallthru
        _
      %p213 = scmp.le.s32.totalorder 1, %s18
      %p214 = scmp.lt.s32.totalorder %s18, 9
      %p215 = pnand %p213, %p214
      %p216 = pneg %p215
      // Predicated region
      $region29: #{_lambda_.11} parent=5 // pred_check
        _
      $region30: #{_lambda_.11} parent=5 // pred_check_branch
        %218 = sbr.rel (%p215) target = $region32
      $region31: #{_lambda_.11} parent=5 // pred_region
        %s219 = ssub.s32 %s18, 1
        %s220 = sand.u32 %s52, 1
        %s221 = scalar_lea.sflag [#allocation3], %s220
        %s222 = sand.u32 %s52, 1
        %s223 = smul.addr %s222, 16
        %s224 = scalar_lea.vmem [#allocation2], %s223
        // Predicated region
        $region33: #{_lambda_.11} parent=31 // pred_check
          %p225 = pneg %p65
        $region34: #{_lambda_.11} parent=31 // pred_check_branch
          %227 = sbr.rel (%p225) target = $region36
        $region35: #{_lambda_.11} parent=31 // pred_region
          %228 = dma.done %s221, 256
        $region36: #{_lambda_.11} parent=31 // pred_fallthru
          _
        %s229 = sand.u32 %s23, 1
        %s230 = scalar_lea.sflag [#allocation6], %s229
        %s231 = sand.u32 %s78, 1
        %s232 = smul.addr %s231, 4
        %s233 = scalar_lea.vmem [#allocation5], %s232
        // Predicated region
        $region37: #{_lambda_.11} parent=31 // pred_check
          %p234 = pneg %p91
        $region38: #{_lambda_.11} parent=31 // pred_check_branch
          %236 = sbr.rel (%p234) target = $region40
        $region39: #{_lambda_.11} parent=31 // pred_region
          %237 = dma.done %s230, 64
        $region40: #{_lambda_.11} parent=31 // pred_fallthru
          _
        // Predicated region
        $region41: #{_lambda_.11} parent=31 // pred_check
          %p238 = pneg %p112
        $region42: #{_lambda_.11} parent=31 // pred_check_branch
          %240 = sbr.rel (%p238) target = $region44
        $region43: #{_lambda_.11} parent=31 // pred_region
          %241 = dma.done [#allocation6], 64
        $region44: #{_lambda_.11} parent=31 // pred_fallthru
          _
        %s242 = sand.u32 %s52, 1
        %s243 = scalar_lea.sflag [#allocation3], %s242
        %s244 = sand.u32 %s52, 1
        %s245 = smul.addr %s244, 16
        %s246 = scalar_lea.vmem [#allocation2], %s245
        %p247 = pneg %p65
        %p248 = pneg %p62
        %s249 = sand.u32 %s23, 1
        %s250 = scalar_lea.sflag [#allocation6], %s249
        %s251 = sand.u32 %s78, 1
        %s252 = smul.addr %s251, 4
        %s253 = scalar_lea.vmem [#allocation5], %s252
        %p254 = pneg %p91
        %p255 = pneg %p88
        %p256 = pneg %p112
        %p257 = pneg %p109
        %p258 = pneg %p142
        %p259 = pneg %p139
        %s260 = sand.u32 %s129, 1
        %s261 = scalar_lea.sflag [#allocation4], %s260
        %s262 = sand.u32 %s129, 1
        %s263 = smul.addr %s262, 16
        %s264 = scalar_lea.vmem [#allocation8], %s263
        %s265 = smul.u32 4, %s29
        %s266 = smul.u32 4, %s29
        %v268 = vld [vmem:[%s233] sm:$0xf]
        %v269 = vld [vmem:[#allocation7] sm:$0xf]
        %v270 = vld [vmem:[%s224] sm:$0xf]
        %v271 = vld [vmem:[%s224 + $0x4] sm:$0xf]
        %v272 = vld [vmem:[%s224 + $0x8] sm:$0xf]
        %v273 = vld [vmem:[%s224 + $0xc] sm:$0xf]
        %v278 = vunpack.c.l.b16 %v270
        %v279 = vunpack.c.l.b16 %v271
        %v280 = vunpack.c.l.b16 %v272
        %v281 = vunpack.c.l.b16 %v273
        %v282 = vpack.c.b16 %v279, %v278
        %v283 = vpack.c.b16 %v281, %v280
        %vm284 = vcmask 64512
        %v286 = vsel %vm284, %v282, 0
        %v289 = vsel %vm284, %v283, 0
        %vm291 = vcmask 1043456
        %v293 = vsel %vm291, %v269, 0
        %295 = vmatprep.subr.bf16.mxu0 0
        %296 = vmatpush1.bf16.msra.mxu0 %v293
        %297 = vmatprep.subr.bf16.mxu0 0
        %298 = vmatpush1.bf16.msra.mxu0 0
        %299 = vmatprep.subr.bf16.mxu0 0
        %300 = vmatpush1.bf16.msra.mxu0 0
        %301 = vmatprep.subr.bf16.mxu0 0
        %302 = vmatpush1.bf16.msra.mxu0 0
        %303 = vmatprep.subr.bf16.mxu0 0
        %304 = vmatpush1.bf16.msra.mxu0 0
        %305 = vmatprep.subr.bf16.mxu0 0
        %306 = vmatpush1.bf16.msra.mxu0 0
        %307 = vmatprep.subr.bf16.mxu0 0
        %308 = vmatpush1.bf16.msra.mxu0 0
        %309 = vmatprep.subr.bf16.mxu0 0
        %310 = vmatpush1.bf16.msra.mxu0 0
        %311 = vmatprep.subr.bf16.mxu0 0
        %312 = vmatpush1.bf16.msra.mxu0 0
        %313 = vmatprep.subr.bf16.mxu0 0
        %314 = vmatpush1.bf16.msra.mxu0 0
        %315 = vmatprep.subr.bf16.mxu0 0
        %316 = vmatpush1.bf16.msra.mxu0 0
        %317 = vmatprep.subr.bf16.mxu0 0
        %318 = vmatpush1.bf16.msra.mxu0 0
        %319 = vmatprep.subr.bf16.mxu0 0
        %320 = vmatpush1.bf16.msra.mxu0 0
        %321 = vmatprep.subr.bf16.mxu0 0
        %322 = vmatpush1.bf16.msra.mxu0 0
        %323 = vmatprep.subr.bf16.mxu0 0
        %324 = vmatpush1.bf16.msra.mxu0 0
        %325 = vmatprep.subr.bf16.mxu0 0
        %326 = vmatpush1.bf16.msra.mxu0 0
        %327 = vmatprep.mubr.bf16.mxu0 0
        %328 = vmatmul.mubr.bf16.gmra.mrb[0].mxu0 %v286
        %v329 = vpop.f32.mrb[0].mxu0
        %v330 = vadd.f32 0.0, %v329
        %v331 = vpop.f32.mrb[0].mxu0
        %v332 = vpop.f32.mrb[0].mxu0
        %v333 = vadd.f32 0.0, %v332
        %v334 = vpop.f32.mrb[0].mxu0
        %335 = vmatprep.mubr.bf16.mxu0 0
        %336 = vmatmul.mubr.bf16.gmra.mrb[0].mxu0 %v289
        %v337 = vpop.f32.mrb[0].mxu0
        %v338 = vadd.f32 0.0, %v337
        %v339 = vpop.f32.mrb[0].mxu0
        %v340 = vpop.f32.mrb[0].mxu0
        %v341 = vadd.f32 0.0, %v340
        %v342 = vpop.f32.mrb[0].mxu0
        %343 = vdwg.mxu0
        %v344 = vpack.c.bf16 %v333, %v330
        %v345 = vpack.c.bf16 %v341, %v338
        %v348 = vunpack.c.l.b16 %v344
        %v349 = vunpack.c.h.b16 %v344
        %v350 = vunpack.c.l.b16 %v345
        %v351 = vunpack.c.h.b16 %v345
        %v352 = vpack.c.b16 %v348, %v348
        %v353 = vpack.c.b16 %v349, %v349
        %v354 = vpack.c.b16 %v350, %v350
        %v355 = vpack.c.b16 %v351, %v351
        %v357 = vsel %vm284, %v268, 0
        %v360 = vsel %vm291, %v352, 0
        %362 = vmatprep.subr.bf16.mxu0 0
        %363 = vmatpush1.bf16.msra.mxu0 %v360
        %364 = vmatprep.subr.bf16.mxu0 0
        %365 = vmatpush1.bf16.msra.mxu0 0
        %366 = vmatprep.subr.bf16.mxu0 0
        %367 = vmatpush1.bf16.msra.mxu0 0
        %368 = vmatprep.subr.bf16.mxu0 0
        %369 = vmatpush1.bf16.msra.mxu0 0
        %370 = vmatprep.subr.bf16.mxu0 0
        %371 = vmatpush1.bf16.msra.mxu0 0
        %372 = vmatprep.subr.bf16.mxu0 0
        %373 = vmatpush1.bf16.msra.mxu0 0
        %374 = vmatprep.subr.bf16.mxu0 0
        %375 = vmatpush1.bf16.msra.mxu0 0
        %376 = vmatprep.subr.bf16.mxu0 0
        %377 = vmatpush1.bf16.msra.mxu0 0
        %378 = vmatprep.subr.bf16.mxu0 0
        %379 = vmatpush1.bf16.msra.mxu0 0
        %380 = vmatprep.subr.bf16.mxu0 0
        %381 = vmatpush1.bf16.msra.mxu0 0
        %382 = vmatprep.subr.bf16.mxu0 0
        %383 = vmatpush1.bf16.msra.mxu0 0
        %384 = vmatprep.subr.bf16.mxu0 0
        %385 = vmatpush1.bf16.msra.mxu0 0
        %386 = vmatprep.subr.bf16.mxu0 0
        %387 = vmatpush1.bf16.msra.mxu0 0
        %388 = vmatprep.subr.bf16.mxu0 0
        %389 = vmatpush1.bf16.msra.mxu0 0
        %390 = vmatprep.subr.bf16.mxu0 0
        %391 = vmatpush1.bf16.msra.mxu0 0
        %392 = vmatprep.subr.bf16.mxu0 0
        %393 = vmatpush1.bf16.msra.mxu0 0
        %394 = vmatprep.mubr.bf16.mxu0 0
        %395 = vmatmul.mubr.bf16.gmra.mrb[0].mxu0 %v357
        %v396 = vpop.f32.mrb[0].mxu0
        %v397 = vadd.f32 0.0, %v396
        %v398 = vpop.f32.mrb[0].mxu0
        %v399 = vpop.f32.mrb[0].mxu0
        %v400 = vpop.f32.mrb[0].mxu0
        %401 = vdwg.mxu0
        %v402 = vpack.c.bf16 %v397, %v397
        %vm403 = vcmask 125952
        %404 = vst.msk [vmem:[%s264] sm:$0xf] %vm403, %v402
        %v406 = vsel %vm291, %v353, 0
        %408 = vmatprep.subr.bf16.mxu0 0
        %409 = vmatpush1.bf16.msra.mxu0 %v406
        %410 = vmatprep.subr.bf16.mxu0 0
        %411 = vmatpush1.bf16.msra.mxu0 0
        %412 = vmatprep.subr.bf16.mxu0 0
        %413 = vmatpush1.bf16.msra.mxu0 0
        %414 = vmatprep.subr.bf16.mxu0 0
        %415 = vmatpush1.bf16.msra.mxu0 0
        %416 = vmatprep.subr.bf16.mxu0 0
        %417 = vmatpush1.bf16.msra.mxu0 0
        %418 = vmatprep.subr.bf16.mxu0 0
        %419 = vmatpush1.bf16.msra.mxu0 0
        %420 = vmatprep.subr.bf16.mxu0 0
        %421 = vmatpush1.bf16.msra.mxu0 0
        %422 = vmatprep.subr.bf16.mxu0 0
        %423 = vmatpush1.bf16.msra.mxu0 0
        %424 = vmatprep.subr.bf16.mxu0 0
        %425 = vmatpush1.bf16.msra.mxu0 0
        %426 = vmatprep.subr.bf16.mxu0 0
        %427 = vmatpush1.bf16.msra.mxu0 0
        %428 = vmatprep.subr.bf16.mxu0 0
        %429 = vmatpush1.bf16.msra.mxu0 0
        %430 = vmatprep.subr.bf16.mxu0 0
        %431 = vmatpush1.bf16.msra.mxu0 0
        %432 = vmatprep.subr.bf16.mxu0 0
        %433 = vmatpush1.bf16.msra.mxu0 0
        %434 = vmatprep.subr.bf16.mxu0 0
        %435 = vmatpush1.bf16.msra.mxu0 0
        %436 = vmatprep.subr.bf16.mxu0 0
        %437 = vmatpush1.bf16.msra.mxu0 0
        %438 = vmatprep.subr.bf16.mxu0 0
        %439 = vmatpush1.bf16.msra.mxu0 0
        %440 = vmatprep.mubr.bf16.mxu0 0
        %441 = vmatmul.mubr.bf16.gmra.mrb[0].mxu0 %v357
        %v442 = vpop.f32.mrb[0].mxu0
        %v443 = vadd.f32 0.0, %v442
        %v444 = vpop.f32.mrb[0].mxu0
        %v445 = vpop.f32.mrb[0].mxu0
        %v446 = vpop.f32.mrb[0].mxu0
        %447 = vdwg.mxu0
        %v448 = vpack.c.bf16 %v443, %v443
        %s449 = scalar_lea.vmem %s264, 4 [#allocation8]
        %450 = vst.msk [vmem:[%s449] sm:$0xf] %vm403, %v448
        %v452 = vsel %vm291, %v354, 0
        %454 = vmatprep.subr.bf16.mxu0 0
        %455 = vmatpush1.bf16.msra.mxu0 %v452
        %456 = vmatprep.subr.bf16.mxu0 0
        %457 = vmatpush1.bf16.msra.mxu0 0
        %458 = vmatprep.subr.bf16.mxu0 0
        %459 = vmatpush1.bf16.msra.mxu0 0
        %460 = vmatprep.subr.bf16.mxu0 0
        %461 = vmatpush1.bf16.msra.mxu0 0
        %462 = vmatprep.subr.bf16.mxu0 0
        %463 = vmatpush1.bf16.msra.mxu0 0
        %464 = vmatprep.subr.bf16.mxu0 0
        %465 = vmatpush1.bf16.msra.mxu0 0
        %466 = vmatprep.subr.bf16.mxu0 0
        %467 = vmatpush1.bf16.msra.mxu0 0
        %468 = vmatprep.subr.bf16.mxu0 0
        %469 = vmatpush1.bf16.msra.mxu0 0
        %470 = vmatprep.subr.bf16.mxu0 0
        %471 = vmatpush1.bf16.msra.mxu0 0
        %472 = vmatprep.subr.bf16.mxu0 0
        %473 = vmatpush1.bf16.msra.mxu0 0
        %474 = vmatprep.subr.bf16.mxu0 0
        %475 = vmatpush1.bf16.msra.mxu0 0
        %476 = vmatprep.subr.bf16.mxu0 0
        %477 = vmatpush1.bf16.msra.mxu0 0
        %478 = vmatprep.subr.bf16.mxu0 0
        %479 = vmatpush1.bf16.msra.mxu0 0
        %480 = vmatprep.subr.bf16.mxu0 0
        %481 = vmatpush1.bf16.msra.mxu0 0
        %482 = vmatprep.subr.bf16.mxu0 0
        %483 = vmatpush1.bf16.msra.mxu0 0
        %484 = vmatprep.subr.bf16.mxu0 0
        %485 = vmatpush1.bf16.msra.mxu0 0
        %486 = vmatprep.mubr.bf16.mxu0 0
        %487 = vmatmul.mubr.bf16.gmra.mrb[0].mxu0 %v357
        %v488 = vpop.f32.mrb[0].mxu0
        %v489 = vadd.f32 0.0, %v488
        %v490 = vpop.f32.mrb[0].mxu0
        %v491 = vpop.f32.mrb[0].mxu0
        %v492 = vpop.f32.mrb[0].mxu0
        %493 = vdwg.mxu0
        %v494 = vpack.c.bf16 %v489, %v489
        %s495 = scalar_lea.vmem %s264, 8 [#allocation8]
        %496 = vst.msk [vmem:[%s495] sm:$0xf] %vm403, %v494
        %v498 = vsel %vm291, %v355, 0
        %500 = vmatprep.subr.bf16.mxu0 0
        %501 = vmatpush1.bf16.msra.mxu0 %v498
        %502 = vmatprep.subr.bf16.mxu0 0
        %503 = vmatpush1.bf16.msra.mxu0 0
        %504 = vmatprep.subr.bf16.mxu0 0
        %505 = vmatpush1.bf16.msra.mxu0 0
        %506 = vmatprep.subr.bf16.mxu0 0
        %507 = vmatpush1.bf16.msra.mxu0 0
        %508 = vmatprep.subr.bf16.mxu0 0
        %509 = vmatpush1.bf16.msra.mxu0 0
        %510 = vmatprep.subr.bf16.mxu0 0
        %511 = vmatpush1.bf16.msra.mxu0 0
        %512 = vmatprep.subr.bf16.mxu0 0
        %513 = vmatpush1.bf16.msra.mxu0 0
        %514 = vmatprep.subr.bf16.mxu0 0
        %515 = vmatpush1.bf16.msra.mxu0 0
        %516 = vmatprep.subr.bf16.mxu0 0
        %517 = vmatpush1.bf16.msra.mxu0 0
        %518 = vmatprep.subr.bf16.mxu0 0
        %519 = vmatpush1.bf16.msra.mxu0 0
        %520 = vmatprep.subr.bf16.mxu0 0
        %521 = vmatpush1.bf16.msra.mxu0 0
        %522 = vmatprep.subr.bf16.mxu0 0
        %523 = vmatpush1.bf16.msra.mxu0 0
        %524 = vmatprep.subr.bf16.mxu0 0
        %525 = vmatpush1.bf16.msra.mxu0 0
        %526 = vmatprep.subr.bf16.mxu0 0
        %527 = vmatpush1.bf16.msra.mxu0 0
        %528 = vmatprep.subr.bf16.mxu0 0
        %529 = vmatpush1.bf16.msra.mxu0 0
        %530 = vmatprep.subr.bf16.mxu0 0
        %531 = vmatpush1.bf16.msra.mxu0 0
        %532 = vmatprep.mubr.bf16.mxu0 0
        %533 = vmatmul.mubr.bf16.gmra.mrb[0].mxu0 %v357
        %v534 = vpop.f32.mrb[0].mxu0
        %v535 = vadd.f32 0.0, %v534
        %v536 = vpop.f32.mrb[0].mxu0
        %v537 = vpop.f32.mrb[0].mxu0
        %v538 = vpop.f32.mrb[0].mxu0
        %539 = vdwg.mxu0
        %v540 = vpack.c.bf16 %v535, %v535
        %s541 = scalar_lea.vmem %s264, 12 [#allocation8]
        %542 = vst.msk [vmem:[%s541] sm:$0xf] %vm403, %v540
        %s543 = sand.u32 %s129, 1
        %s544 = scalar_lea.sflag [#allocation4], %s543
        %s545 = sand.u32 %s129, 1
        %s546 = smul.addr %s545, 16
        %s547 = scalar_lea.vmem [#allocation8], %s546
        // Predicated region
        $region45: #{_lambda_.11} parent=31 // pred_check
          %p548 = pneg %p139
        $region46: #{_lambda_.11} parent=31 // pred_check_branch
          %550 = sbr.rel (%p548) target = $region48
        $region47: #{_lambda_.11} parent=31 // pred_region
          %s551 = smul.u32 4, %s29
          %s553 = ssub.s32 256, 256
          %554 = vsyncadd %s544, %s553
          %s555 = smul.addr %s551, 2
          %s556 = sadd.s32 %s30, %s555
          %s557 = smul.addr %s28, 16
          %s558 = sadd.s32 %s556, %s557
          %s559 = smul.addr %s558, 64
          %s560 = scalar_lea.hbm %s3, %s559
          %s561 = sshll.u32 %s547, 4
          %s562 = int_to_ptr.vmem [resolvable:$true] %s561
          %567 = dma.vmem_to_hbm [thread:$0]  %s562, 256, %s560, %s544, 64, 128, 4
        $region48: #{_lambda_.11} parent=31 // pred_fallthru
          _
      $region32: #{_lambda_.11} parent=5 // pred_fallthru
        _
      %p568 = scmp.le.s32.totalorder 2, %s18
      // Predicated region
      $region49: #{_lambda_.11} parent=5 // pred_check
        %p569 = pneg %p568
      $region50: #{_lambda_.11} parent=5 // pred_check_branch
        %571 = sbr.rel (%p569) target = $region52
      $region51: #{_lambda_.11} parent=5 // pred_region
        %s572 = ssub.s32 %s18, 2
        // Predicated region
        $region53: #{_lambda_.11} parent=51 // pred_check
          %p573 = pneg %p145
        $region54: #{_lambda_.11} parent=51 // pred_check_branch
          %575 = sbr.rel (%p573) target = $region56
        $region55: #{_lambda_.11} parent=51 // pred_region
          %s576 = sand.u32 %s130, 1
          %s577 = scalar_lea.sflag [#allocation4], %s576
          %s578 = sand.u32 %s130, 1
          %s579 = smul.addr %s578, 16
          %s580 = scalar_lea.vmem [#allocation8], %s579
          %581 = dma.done %s577, 256
        $region56: #{_lambda_.11} parent=51 // pred_fallthru
          _
      $region52: #{_lambda_.11} parent=5 // pred_fallthru
        _
    $region6: #{_lambda_.11} parent=1 // loop_footer
      %s22 = sadd.s32 1, %s18
    $region7: #{_lambda_.11} parent=1 // loop_footer_branch
      %17 = sbr.rel target = $region3
    $region8: #{_lambda_.11} parent=1 // loop_exit
      _
    %582 = vsyncpa [#allocation3], 1
    %s583 = scalar_lea.sflag [#allocation3], 1
    %584 = vsyncpa %s583, 1
    %585 = vsyncpa [#allocation6], 1
    %s586 = scalar_lea.sflag [#allocation6], 1
    %587 = vsyncpa %s586, 1
    %588 = vsyncpa [#allocation4], 1
    %s589 = scalar_lea.sflag [#allocation4], 1
    %590 = vsyncpa %s589, 1

</llo_original>
